<compile_context>
chip_gen: v7x
topology: tpu7x:2x2x1
jax: 0.10.0
libtpu: 0.0.40
codegen_flags: <defaults>
</compile_context>

<pallas_src>
import jax
import jax.numpy as jnp
import numpy as np
from jax.experimental import pallas as pl
from jax.experimental.pallas import tpu as pltpu

T, B = 8, 2
NB_CLASSES, NB_MEASURES, H = 3, 8, 32
NB_LAYERS = 2  # kernel body below is written for 2 layers
CM = NB_CLASSES + NB_MEASURES


def _rows8(n):  # round row count up to a sublane multiple (8)
    return ((n + 7) // 8) * 8


# Row offsets of each parameter inside the single packed weight slab.
_OFF_W0C = 0
_OFF_W0V = _OFF_W0C + _rows8(NB_CLASSES)       # 8
_OFF_WHH0 = _OFF_W0V + _rows8(NB_MEASURES)     # 16
_OFF_W1 = _OFF_WHH0 + _rows8(H)                # 48
_OFF_WHH1 = _OFF_W1 + _rows8(H)                # 80
_OFF_WHEAD = _OFF_WHH1 + _rows8(H)             # 112
_OFF_B0 = _OFF_WHEAD + _rows8(H)               # 144
_OFF_B1 = _OFF_B0 + _rows8(1)                  # 152
_OFF_BHEAD = _OFF_B1 + _rows8(1)               # 160
_SLAB_ROWS = _OFF_BHEAD + _rows8(1)            # 168


def rnn_interp_kernel(cat_ref, val_ref, w_ref, out_cat_ref):
    steps, Bn, C = out_cat_ref.shape
    M = NB_MEASURES
    Hh = H

    # Hoisted parameter reads: loaded once, reused by every unrolled time step.
    w0c = w_ref[_OFF_W0C:_OFF_W0C + C, :]          # (C, H)
    w0v = w_ref[_OFF_W0V:_OFF_W0V + M, :]          # (M, H)
    whh0 = w_ref[_OFF_WHH0:_OFF_WHH0 + Hh, :]      # (H, H)
    w1 = w_ref[_OFF_W1:_OFF_W1 + Hh, :]            # (H, H)
    whh1 = w_ref[_OFF_WHH1:_OFF_WHH1 + Hh, :]      # (H, H)
    whead = w_ref[_OFF_WHEAD:_OFF_WHEAD + Hh, :]   # (H, H) cols >= C+M are zero
    b0 = w_ref[_OFF_B0:_OFF_B0 + 1, :]             # (1, H)  (b_ih0 + b_hh0)
    b1 = w_ref[_OFF_B1:_OFF_B1 + 1, :]             # (1, H)  (b_ih1 + b_hh1)
    bhead = w_ref[_OFF_BHEAD:_OFF_BHEAD + 1, :]    # (1, H)  (b_cat | b_val | 0)

    h0 = jnp.zeros((Bn, Hh), jnp.float32)          # init_hidden_state: zeros
    h1 = jnp.zeros((Bn, Hh), jnp.float32)
    o_cat = jnp.zeros((Bn, C), jnp.float32)
    o_val = jnp.zeros((Bn, M), jnp.float32)

    # steps is tiny and static -> fully unrolled, all indices static.
    for t in range(steps):
        cat_raw = cat_ref[t]   # (B, C)
        val_raw = val_ref[t]   # (B, M)

        # Missing-value interpolation: from step 1 on, NaN entries are replaced
        # by the previous step's predictions (same as the torch in-place fill).
        if t == 0:
            cat_t, val_t = cat_raw, val_raw
        else:
            cat_t = jnp.where(jnp.isnan(cat_raw), o_cat, cat_raw)
            val_t = jnp.where(jnp.isnan(val_raw), o_val, val_raw)

        # Layer 0: concat(cat_t, val_t) implemented as a split matmul.
        pre0 = (
            jnp.dot(cat_t, w0c, preferred_element_type=jnp.float32)
            + jnp.dot(val_t, w0v, preferred_element_type=jnp.float32)
            + jnp.dot(h0, whh0, preferred_element_type=jnp.float32)
            + b0
        )
        h0 = jnp.tanh(pre0)

        # Layer 1.
        pre1 = (
            jnp.dot(h0, w1, preferred_element_type=jnp.float32)
            + jnp.dot(h1, whh1, preferred_element_type=jnp.float32)
            + b1
        )
        h1 = jnp.tanh(pre1)

        # Fused output head: one matmul covers hid2category and hid2measures.
        head = jnp.dot(h1, whead, preferred_element_type=jnp.float32) + bhead
        logits = head[:, :C]
        o_val = head[:, C:C + M] + val_t

        # Stable softmax; divide via approx reciprocal (EUP slot, ~free).
        logits = logits - jnp.max(logits, axis=-1, keepdims=True)
        e = jnp.exp(logits)
        o_cat = e * pl.reciprocal(jnp.sum(e, axis=-1, keepdims=True), approx=True)

        out_cat_ref[t] = o_cat.astype(out_cat_ref.dtype)


def rnn_model_interp_forward(cat_seq, val_seq, w_slab):
    """cat_seq: (T, B, nb_classes), val_seq: (T, B, nb_measures) float32.
    w_slab: packed (168, H) parameter slab from kernel_params()."""
    Tn, Bn, C = cat_seq.shape
    steps = Tn - 1

    vmem = pl.BlockSpec(memory_space=pltpu.MemorySpace.VMEM)
    return pl.pallas_call(
        rnn_interp_kernel,
        out_shape=jax.ShapeDtypeStruct((steps, Bn, C), jnp.float32),
        in_specs=[vmem, vmem, vmem],
        out_specs=vmem,
    )(cat_seq, val_seq, w_slab)


def init_params(key):
    """Deterministic PyTorch-Linear-style init. Returns torch-oriented params."""
    ks = jax.random.split(key, 6)

    def lin(k, out_f, in_f):
        bound = 1.0 / np.sqrt(in_f)
        kw, kb = jax.random.split(k)
        w = jax.random.uniform(kw, (out_f, in_f), jnp.float32, -bound, bound)
        b = jax.random.uniform(kb, (out_f,), jnp.float32, -bound, bound)
        return w, b

    p = {}
    p["W_ih0"], p["b_ih0"] = lin(ks[0], H, NB_CLASSES + NB_MEASURES)
    p["W_hh0"], p["b_hh0"] = lin(ks[1], H, H)
    p["W_ih1"], p["b_ih1"] = lin(ks[2], H, H)
    p["W_hh1"], p["b_hh1"] = lin(ks[3], H, H)
    p["W_cat"], p["b_cat"] = lin(ks[4], NB_CLASSES, H)   # hid2category
    p["W_val"], p["b_val"] = lin(ks[5], NB_MEASURES, H)  # hid2measures
    return p


def kernel_params(p):
    """Pre-transpose, fuse (head weights, bias pairs) and pack everything into
    a single sublane-aligned (168, H) f32 slab the kernel slices statically."""
    C, M = NB_CLASSES, NB_MEASURES

    w0c = p["W_ih0"][:, :C].T                    # (C, H)
    w0v = p["W_ih0"][:, C:].T                    # (M, H)
    whh0 = p["W_hh0"].T                          # (H, H)
    w1 = p["W_ih1"].T                            # (H, H)
    whh1 = p["W_hh1"].T                          # (H, H)
    w_head = jnp.concatenate([p["W_cat"].T, p["W_val"].T], axis=1)  # (H, C+M)

    b0 = p["b_ih0"] + p["b_hh0"]                 # (H,)
    b1 = p["b_ih1"] + p["b_hh1"]                 # (H,)
    b_head = jnp.concatenate([p["b_cat"], p["b_val"]])              # (C+M,)

    slab = jnp.zeros((_SLAB_ROWS, H), jnp.float32)
    slab = slab.at[_OFF_W0C:_OFF_W0C + C, :].set(w0c)
    slab = slab.at[_OFF_W0V:_OFF_W0V + M, :].set(w0v)
    slab = slab.at[_OFF_WHH0:_OFF_WHH0 + H, :].set(whh0)
    slab = slab.at[_OFF_W1:_OFF_W1 + H, :].set(w1)
    slab = slab.at[_OFF_WHH1:_OFF_WHH1 + H, :].set(whh1)
    slab = slab.at[_OFF_WHEAD:_OFF_WHEAD + H, :CM].set(w_head)
    slab = slab.at[_OFF_B0, :].set(b0)
    slab = slab.at[_OFF_B1, :].set(b1)
    slab = slab.at[_OFF_BHEAD, :CM].set(b_head)
    return slab


def ref_forward(cat_seq, val_seq, p):
    """Pure-JAX replica of the torch forward (eval mode), for validation."""
    Tn, Bn, _ = cat_seq.shape
    cat = cat_seq
    val = val_seq
    h0 = jnp.zeros((Bn, H), jnp.float32)
    h1 = jnp.zeros((Bn, H), jnp.float32)
    outs = []
    for i in range(Tn - 1):
        x = jnp.concatenate([cat[i], val[i]], axis=-1)
        h0 = jnp.tanh(x @ p["W_ih0"].T + p["b_ih0"] + h0 @ p["W_hh0"].T + p["b_hh0"])
        h1 = jnp.tanh(h0 @ p["W_ih1"].T + p["b_ih1"] + h1 @ p["W_hh1"].T + p["b_hh1"])
        o_cat = jax.nn.softmax(h1 @ p["W_cat"].T + p["b_cat"], axis=-1)
        o_val = h1 @ p["W_val"].T + p["b_val"] + val[i]
        outs.append(o_cat)
        j = i + 1
        val = val.at[j].set(jnp.where(jnp.isnan(val[j]), o_val, val[j]))
        cat = cat.at[j].set(jnp.where(jnp.isnan(cat[j]), o_cat, cat[j]))
    return jnp.stack(outs)


if __name__ == "__main__":
    key = jax.random.PRNGKey(0)
    kp_params, kd1, kd2, kn1, kn2 = jax.random.split(key, 5)

    params = init_params(kp_params)
    w_slab = kernel_params(params)

    cat_seq = jax.random.normal(kd1, (T, B, NB_CLASSES), jnp.float32)
    val_seq = jax.random.normal(kd2, (T, B, NB_MEASURES), jnp.float32)

    # Inject missing values (NaN) for timesteps >= 1; they get filled in-loop.
    nan_c = jax.random.uniform(kn1, (T, B, NB_CLASSES)) < 0.25
    nan_v = jax.random.uniform(kn2, (T, B, NB_MEASURES)) < 0.25
    nan_c = nan_c.at[0].set(False)
    nan_v = nan_v.at[0].set(False)
    cat_seq = jnp.where(nan_c, jnp.nan, cat_seq)
    val_seq = jnp.where(nan_v, jnp.nan, val_seq)

    out = rnn_model_interp_forward(cat_seq, val_seq, w_slab)
    out = jax.block_until_ready(out)
    assert out.shape == (T - 1, B, NB_CLASSES)

    ref = jax.block_until_ready(ref_forward(cat_seq, val_seq, params))
    np.testing.assert_allclose(np.asarray(out), np.asarray(ref), rtol=2e-3, atol=2e-3)

    print("KERNEL_OK")
</pallas_src>

<mosaic_0001>
module attributes {stable_mosaic.version = 11 : i64} {
  func.func @rnn_interp_kernel(%arg0: memref<8x2x3xf32, #tpu.memory_space<vmem>>, %arg1: memref<8x2x8xf32, #tpu.memory_space<vmem>>, %arg2: memref<168x32xf32, #tpu.memory_space<vmem>>, %arg3: memref<7x2x3xf32, #tpu.memory_space<vmem>>) attributes {dimension_semantics = [], scalar_prefetch = 0 : i64, scratch_operands = 0 : i64, tpu.core_type = #tpu.core_type<tc>} {
    %c0 = arith.constant 0 : index
    %c0_0 = arith.constant 0 : index
    %0 = vector.load %arg2[%c0, %c0_0] : memref<168x32xf32, #tpu.memory_space<vmem>>, vector<3x32xf32>
    %c8 = arith.constant 8 : index
    %c0_1 = arith.constant 0 : index
    %1 = vector.load %arg2[%c8, %c0_1] : memref<168x32xf32, #tpu.memory_space<vmem>>, vector<8x32xf32>
    %c16 = arith.constant 16 : index
    %c0_2 = arith.constant 0 : index
    %2 = vector.load %arg2[%c16, %c0_2] : memref<168x32xf32, #tpu.memory_space<vmem>>, vector<32x32xf32>
    %c48 = arith.constant 48 : index
    %c0_3 = arith.constant 0 : index
    %3 = vector.load %arg2[%c48, %c0_3] : memref<168x32xf32, #tpu.memory_space<vmem>>, vector<32x32xf32>
    %c80 = arith.constant 80 : index
    %c0_4 = arith.constant 0 : index
    %4 = vector.load %arg2[%c80, %c0_4] : memref<168x32xf32, #tpu.memory_space<vmem>>, vector<32x32xf32>
    %c112 = arith.constant 112 : index
    %c0_5 = arith.constant 0 : index
    %5 = vector.load %arg2[%c112, %c0_5] : memref<168x32xf32, #tpu.memory_space<vmem>>, vector<32x32xf32>
    %c144 = arith.constant 144 : index
    %c0_6 = arith.constant 0 : index
    %6 = vector.load %arg2[%c144, %c0_6] : memref<168x32xf32, #tpu.memory_space<vmem>>, vector<1x32xf32>
    %c152 = arith.constant 152 : index
    %c0_7 = arith.constant 0 : index
    %7 = vector.load %arg2[%c152, %c0_7] : memref<168x32xf32, #tpu.memory_space<vmem>>, vector<1x32xf32>
    %c160 = arith.constant 160 : index
    %c0_8 = arith.constant 0 : index
    %8 = vector.load %arg2[%c160, %c0_8] : memref<168x32xf32, #tpu.memory_space<vmem>>, vector<1x32xf32>
    %cst = arith.constant 0.000000e+00 : f32
    %9 = vector.broadcast %cst : f32 to vector<2x32xf32>
    %cst_9 = arith.constant 0.000000e+00 : f32
    %10 = vector.broadcast %cst_9 : f32 to vector<2x32xf32>
    %c0_10 = arith.constant 0 : index
    %c0_11 = arith.constant 0 : index
    %c0_12 = arith.constant 0 : index
    %11 = vector.load %arg0[%c0_10, %c0_11, %c0_12] : memref<8x2x3xf32, #tpu.memory_space<vmem>>, vector<1x2x3xf32>
    %12 = vector.shape_cast %11 : vector<1x2x3xf32> to vector<2x3xf32>
    %c0_13 = arith.constant 0 : index
    %c0_14 = arith.constant 0 : index
    %c0_15 = arith.constant 0 : index
    %13 = vector.load %arg1[%c0_13, %c0_14, %c0_15] : memref<8x2x8xf32, #tpu.memory_space<vmem>>, vector<1x2x8xf32>
    %14 = vector.shape_cast %13 : vector<1x2x8xf32> to vector<2x8xf32>
    %cst_16 = arith.constant dense<0.000000e+00> : vector<2x32xf32>
    %15 = tpu.matmul %12, %0, %cst_16 {dimension_numbers = #tpu.dot_dimension_numbers<[1], [0], [0], [1], [0, 0, 1, 1], [], []>} : vector<2x3xf32>, vector<3x32xf32>, vector<2x32xf32> -> vector<2x32xf32>
    %cst_17 = arith.constant dense<0.000000e+00> : vector<2x32xf32>
    %16 = tpu.matmul %14, %1, %cst_17 {dimension_numbers = #tpu.dot_dimension_numbers<[1], [0], [0], [1], [0, 0, 1, 1], [], []>} : vector<2x8xf32>, vector<8x32xf32>, vector<2x32xf32> -> vector<2x32xf32>
    %17 = arith.addf %15, %16 : vector<2x32xf32>
    %cst_18 = arith.constant dense<0.000000e+00> : vector<2x32xf32>
    %18 = tpu.matmul %9, %2, %cst_18 {dimension_numbers = #tpu.dot_dimension_numbers<[1], [0], [0], [1], [0, 0, 1, 1], [], []>} : vector<2x32xf32>, vector<32x32xf32>, vector<2x32xf32> -> vector<2x32xf32>
    %19 = arith.addf %17, %18 : vector<2x32xf32>
    %20 = vector.broadcast %6 : vector<1x32xf32> to vector<2x32xf32>
    %21 = arith.addf %19, %20 : vector<2x32xf32>
    %22 = math.tanh %21 : vector<2x32xf32>
    %cst_19 = arith.constant dense<0.000000e+00> : vector<2x32xf32>
    %23 = tpu.matmul %22, %3, %cst_19 {dimension_numbers = #tpu.dot_dimension_numbers<[1], [0], [0], [1], [0, 0, 1, 1], [], []>} : vector<2x32xf32>, vector<32x32xf32>, vector<2x32xf32> -> vector<2x32xf32>
    %cst_20 = arith.constant dense<0.000000e+00> : vector<2x32xf32>
    %24 = tpu.matmul %10, %4, %cst_20 {dimension_numbers = #tpu.dot_dimension_numbers<[1], [0], [0], [1], [0, 0, 1, 1], [], []>} : vector<2x32xf32>, vector<32x32xf32>, vector<2x32xf32> -> vector<2x32xf32>
    %25 = arith.addf %23, %24 : vector<2x32xf32>
    %26 = vector.broadcast %7 : vector<1x32xf32> to vector<2x32xf32>
    %27 = arith.addf %25, %26 : vector<2x32xf32>
    %28 = math.tanh %27 : vector<2x32xf32>
    %cst_21 = arith.constant dense<0.000000e+00> : vector<2x32xf32>
    %29 = tpu.matmul %28, %5, %cst_21 {dimension_numbers = #tpu.dot_dimension_numbers<[1], [0], [0], [1], [0, 0, 1, 1], [], []>} : vector<2x32xf32>, vector<32x32xf32>, vector<2x32xf32> -> vector<2x32xf32>
    %30 = vector.broadcast %8 : vector<1x32xf32> to vector<2x32xf32>
    %31 = arith.addf %29, %30 : vector<2x32xf32>
    %32 = vector.extract_strided_slice %31 {offsets = [0, 0], sizes = [2, 3], strides = [1, 1]} : vector<2x32xf32> to vector<2x3xf32>
    %33 = vector.extract_strided_slice %31 {offsets = [0, 3], sizes = [2, 8], strides = [1, 1]} : vector<2x32xf32> to vector<2x8xf32>
    %34 = arith.addf %33, %14 : vector<2x8xf32>
    %cst_22 = arith.constant dense<0xFF800000> : vector<2xf32>
    %35 = vector.multi_reduction <maximumf>, %32, %cst_22 [1] : vector<2x3xf32> to vector<2xf32>
    %36 = vector.shape_cast %35 : vector<2xf32> to vector<2x1xf32>
    %37 = vector.broadcast %36 : vector<2x1xf32> to vector<2x3xf32>
    %38 = arith.subf %32, %37 : vector<2x3xf32>
    %39 = math.exp %38 : vector<2x3xf32>
    %cst_23 = arith.constant dense<0.000000e+00> : vector<2xf32>
    %40 = vector.multi_reduction <add>, %39, %cst_23 [1] : vector<2x3xf32> to vector<2xf32>
    %41 = vector.shape_cast %40 : vector<2xf32> to vector<2x1xf32>
    %42 = tpu.reciprocal %41 {approx = true} : vector<2x1xf32> -> vector<2x1xf32>
    %43 = vector.broadcast %42 : vector<2x1xf32> to vector<2x3xf32>
    %44 = arith.mulf %39, %43 : vector<2x3xf32>
    %c0_24 = arith.constant 0 : index
    %c0_25 = arith.constant 0 : index
    %c0_26 = arith.constant 0 : index
    %45 = vector.load %arg3[%c0_24, %c0_25, %c0_26] : memref<7x2x3xf32, #tpu.memory_space<vmem>>, vector<1x2x3xf32>
    %46 = vector.shape_cast %45 : vector<1x2x3xf32> to vector<2x3xf32>
    %47 = vector.shape_cast %44 : vector<2x3xf32> to vector<1x2x3xf32>
    tpu.vector_store %arg3[%c0_24, %c0_25, %c0_26], %47 {strides = array<i32>} : memref<7x2x3xf32, #tpu.memory_space<vmem>>, vector<1x2x3xf32>,
    %c1 = arith.constant 1 : index
    %c0_27 = arith.constant 0 : index
    %c0_28 = arith.constant 0 : index
    %48 = vector.load %arg0[%c1, %c0_27, %c0_28] : memref<8x2x3xf32, #tpu.memory_space<vmem>>, vector<1x2x3xf32>
    %49 = vector.shape_cast %48 : vector<1x2x3xf32> to vector<2x3xf32>
    %c1_29 = arith.constant 1 : index
    %c0_30 = arith.constant 0 : index
    %c0_31 = arith.constant 0 : index
    %50 = vector.load %arg1[%c1_29, %c0_30, %c0_31] : memref<8x2x8xf32, #tpu.memory_space<vmem>>, vector<1x2x8xf32>
    %51 = vector.shape_cast %50 : vector<1x2x8xf32> to vector<2x8xf32>
    %52 = arith.cmpf one, %49, %49 : vector<2x3xf32>
    %53 = arith.select %52, %44, %49 : vector<2x3xi1>, vector<2x3xf32>
    %54 = arith.cmpf one, %51, %51 : vector<2x8xf32>
    %55 = arith.select %54, %34, %51 : vector<2x8xi1>, vector<2x8xf32>
    %cst_32 = arith.constant dense<0.000000e+00> : vector<2x32xf32>
    %56 = tpu.matmul %53, %0, %cst_32 {dimension_numbers = #tpu.dot_dimension_numbers<[1], [0], [0], [1], [0, 0, 1, 1], [], []>} : vector<2x3xf32>, vector<3x32xf32>, vector<2x32xf32> -> vector<2x32xf32>
    %cst_33 = arith.constant dense<0.000000e+00> : vector<2x32xf32>
    %57 = tpu.matmul %55, %1, %cst_33 {dimension_numbers = #tpu.dot_dimension_numbers<[1], [0], [0], [1], [0, 0, 1, 1], [], []>} : vector<2x8xf32>, vector<8x32xf32>, vector<2x32xf32> -> vector<2x32xf32>
    %58 = arith.addf %56, %57 : vector<2x32xf32>
    %cst_34 = arith.constant dense<0.000000e+00> : vector<2x32xf32>
    %59 = tpu.matmul %22, %2, %cst_34 {dimension_numbers = #tpu.dot_dimension_numbers<[1], [0], [0], [1], [0, 0, 1, 1], [], []>} : vector<2x32xf32>, vector<32x32xf32>, vector<2x32xf32> -> vector<2x32xf32>
    %60 = arith.addf %58, %59 : vector<2x32xf32>
    %61 = vector.broadcast %6 : vector<1x32xf32> to vector<2x32xf32>
    %62 = arith.addf %60, %61 : vector<2x32xf32>
    %63 = math.tanh %62 : vector<2x32xf32>
    %cst_35 = arith.constant dense<0.000000e+00> : vector<2x32xf32>
    %64 = tpu.matmul %63, %3, %cst_35 {dimension_numbers = #tpu.dot_dimension_numbers<[1], [0], [0], [1], [0, 0, 1, 1], [], []>} : vector<2x32xf32>, vector<32x32xf32>, vector<2x32xf32> -> vector<2x32xf32>
    %cst_36 = arith.constant dense<0.000000e+00> : vector<2x32xf32>
    %65 = tpu.matmul %28, %4, %cst_36 {dimension_numbers = #tpu.dot_dimension_numbers<[1], [0], [0], [1], [0, 0, 1, 1], [], []>} : vector<2x32xf32>, vector<32x32xf32>, vector<2x32xf32> -> vector<2x32xf32>
    %66 = arith.addf %64, %65 : vector<2x32xf32>
    %67 = vector.broadcast %7 : vector<1x32xf32> to vector<2x32xf32>
    %68 = arith.addf %66, %67 : vector<2x32xf32>
    %69 = math.tanh %68 : vector<2x32xf32>
    %cst_37 = arith.constant dense<0.000000e+00> : vector<2x32xf32>
    %70 = tpu.matmul %69, %5, %cst_37 {dimension_numbers = #tpu.dot_dimension_numbers<[1], [0], [0], [1], [0, 0, 1, 1], [], []>} : vector<2x32xf32>, vector<32x32xf32>, vector<2x32xf32> -> vector<2x32xf32>
    %71 = vector.broadcast %8 : vector<1x32xf32> to vector<2x32xf32>
    %72 = arith.addf %70, %71 : vector<2x32xf32>
    %73 = vector.extract_strided_slice %72 {offsets = [0, 0], sizes = [2, 3], strides = [1, 1]} : vector<2x32xf32> to vector<2x3xf32>
    %74 = vector.extract_strided_slice %72 {offsets = [0, 3], sizes = [2, 8], strides = [1, 1]} : vector<2x32xf32> to vector<2x8xf32>
    %75 = arith.addf %74, %55 : vector<2x8xf32>
    %cst_38 = arith.constant dense<0xFF800000> : vector<2xf32>
    %76 = vector.multi_reduction <maximumf>, %73, %cst_38 [1] : vector<2x3xf32> to vector<2xf32>
    %77 = vector.shape_cast %76 : vector<2xf32> to vector<2x1xf32>
    %78 = vector.broadcast %77 : vector<2x1xf32> to vector<2x3xf32>
    %79 = arith.subf %73, %78 : vector<2x3xf32>
    %80 = math.exp %79 : vector<2x3xf32>
    %cst_39 = arith.constant dense<0.000000e+00> : vector<2xf32>
    %81 = vector.multi_reduction <add>, %80, %cst_39 [1] : vector<2x3xf32> to vector<2xf32>
    %82 = vector.shape_cast %81 : vector<2xf32> to vector<2x1xf32>
    %83 = tpu.reciprocal %82 {approx = true} : vector<2x1xf32> -> vector<2x1xf32>
    %84 = vector.broadcast %83 : vector<2x1xf32> to vector<2x3xf32>
    %85 = arith.mulf %80, %84 : vector<2x3xf32>
    %c1_40 = arith.constant 1 : index
    %c0_41 = arith.constant 0 : index
    %c0_42 = arith.constant 0 : index
    %86 = vector.load %arg3[%c1_40, %c0_41, %c0_42] : memref<7x2x3xf32, #tpu.memory_space<vmem>>, vector<1x2x3xf32>
    %87 = vector.shape_cast %86 : vector<1x2x3xf32> to vector<2x3xf32>
    %88 = vector.shape_cast %85 : vector<2x3xf32> to vector<1x2x3xf32>
    tpu.vector_store %arg3[%c1_40, %c0_41, %c0_42], %88 {strides = array<i32>} : memref<7x2x3xf32, #tpu.memory_space<vmem>>, vector<1x2x3xf32>,
    %c2 = arith.constant 2 : index
    %c0_43 = arith.constant 0 : index
    %c0_44 = arith.constant 0 : index
    %89 = vector.load %arg0[%c2, %c0_43, %c0_44] : memref<8x2x3xf32, #tpu.memory_space<vmem>>, vector<1x2x3xf32>
    %90 = vector.shape_cast %89 : vector<1x2x3xf32> to vector<2x3xf32>
    %c2_45 = arith.constant 2 : index
    %c0_46 = arith.constant 0 : index
    %c0_47 = arith.constant 0 : index
    %91 = vector.load %arg1[%c2_45, %c0_46, %c0_47] : memref<8x2x8xf32, #tpu.memory_space<vmem>>, vector<1x2x8xf32>
    %92 = vector.shape_cast %91 : vector<1x2x8xf32> to vector<2x8xf32>
    %93 = arith.cmpf one, %90, %90 : vector<2x3xf32>
    %94 = arith.select %93, %85, %90 : vector<2x3xi1>, vector<2x3xf32>
    %95 = arith.cmpf one, %92, %92 : vector<2x8xf32>
    %96 = arith.select %95, %75, %92 : vector<2x8xi1>, vector<2x8xf32>
    %cst_48 = arith.constant dense<0.000000e+00> : vector<2x32xf32>
    %97 = tpu.matmul %94, %0, %cst_48 {dimension_numbers = #tpu.dot_dimension_numbers<[1], [0], [0], [1], [0, 0, 1, 1], [], []>} : vector<2x3xf32>, vector<3x32xf32>, vector<2x32xf32> -> vector<2x32xf32>
    %cst_49 = arith.constant dense<0.000000e+00> : vector<2x32xf32>
    %98 = tpu.matmul %96, %1, %cst_49 {dimension_numbers = #tpu.dot_dimension_numbers<[1], [0], [0], [1], [0, 0, 1, 1], [], []>} : vector<2x8xf32>, vector<8x32xf32>, vector<2x32xf32> -> vector<2x32xf32>
    %99 = arith.addf %97, %98 : vector<2x32xf32>
    %cst_50 = arith.constant dense<0.000000e+00> : vector<2x32xf32>
    %100 = tpu.matmul %63, %2, %cst_50 {dimension_numbers = #tpu.dot_dimension_numbers<[1], [0], [0], [1], [0, 0, 1, 1], [], []>} : vector<2x32xf32>, vector<32x32xf32>, vector<2x32xf32> -> vector<2x32xf32>
    %101 = arith.addf %99, %100 : vector<2x32xf32>
    %102 = vector.broadcast %6 : vector<1x32xf32> to vector<2x32xf32>
    %103 = arith.addf %101, %102 : vector<2x32xf32>
    %104 = math.tanh %103 : vector<2x32xf32>
    %cst_51 = arith.constant dense<0.000000e+00> : vector<2x32xf32>
    %105 = tpu.matmul %104, %3, %cst_51 {dimension_numbers = #tpu.dot_dimension_numbers<[1], [0], [0], [1], [0, 0, 1, 1], [], []>} : vector<2x32xf32>, vector<32x32xf32>, vector<2x32xf32> -> vector<2x32xf32>
    %cst_52 = arith.constant dense<0.000000e+00> : vector<2x32xf32>
    %106 = tpu.matmul %69, %4, %cst_52 {dimension_numbers = #tpu.dot_dimension_numbers<[1], [0], [0], [1], [0, 0, 1, 1], [], []>} : vector<2x32xf32>, vector<32x32xf32>, vector<2x32xf32> -> vector<2x32xf32>
    %107 = arith.addf %105, %106 : vector<2x32xf32>
    %108 = vector.broadcast %7 : vector<1x32xf32> to vector<2x32xf32>
    %109 = arith.addf %107, %108 : vector<2x32xf32>
    %110 = math.tanh %109 : vector<2x32xf32>
    %cst_53 = arith.constant dense<0.000000e+00> : vector<2x32xf32>
    %111 = tpu.matmul %110, %5, %cst_53 {dimension_numbers = #tpu.dot_dimension_numbers<[1], [0], [0], [1], [0, 0, 1, 1], [], []>} : vector<2x32xf32>, vector<32x32xf32>, vector<2x32xf32> -> vector<2x32xf32>
    %112 = vector.broadcast %8 : vector<1x32xf32> to vector<2x32xf32>
    %113 = arith.addf %111, %112 : vector<2x32xf32>
    %114 = vector.extract_strided_slice %113 {offsets = [0, 0], sizes = [2, 3], strides = [1, 1]} : vector<2x32xf32> to vector<2x3xf32>
    %115 = vector.extract_strided_slice %113 {offsets = [0, 3], sizes = [2, 8], strides = [1, 1]} : vector<2x32xf32> to vector<2x8xf32>
    %116 = arith.addf %115, %96 : vector<2x8xf32>
    %cst_54 = arith.constant dense<0xFF800000> : vector<2xf32>
    %117 = vector.multi_reduction <maximumf>, %114, %cst_54 [1] : vector<2x3xf32> to vector<2xf32>
    %118 = vector.shape_cast %117 : vector<2xf32> to vector<2x1xf32>
    %119 = vector.broadcast %118 : vector<2x1xf32> to vector<2x3xf32>
    %120 = arith.subf %114, %119 : vector<2x3xf32>
    %121 = math.exp %120 : vector<2x3xf32>
    %cst_55 = arith.constant dense<0.000000e+00> : vector<2xf32>
    %122 = vector.multi_reduction <add>, %121, %cst_55 [1] : vector<2x3xf32> to vector<2xf32>
    %123 = vector.shape_cast %122 : vector<2xf32> to vector<2x1xf32>
    %124 = tpu.reciprocal %123 {approx = true} : vector<2x1xf32> -> vector<2x1xf32>
    %125 = vector.broadcast %124 : vector<2x1xf32> to vector<2x3xf32>
    %126 = arith.mulf %121, %125 : vector<2x3xf32>
    %c2_56 = arith.constant 2 : index
    %c0_57 = arith.constant 0 : index
    %c0_58 = arith.constant 0 : index
    %127 = vector.load %arg3[%c2_56, %c0_57, %c0_58] : memref<7x2x3xf32, #tpu.memory_space<vmem>>, vector<1x2x3xf32>
    %128 = vector.shape_cast %127 : vector<1x2x3xf32> to vector<2x3xf32>
    %129 = vector.shape_cast %126 : vector<2x3xf32> to vector<1x2x3xf32>
    tpu.vector_store %arg3[%c2_56, %c0_57, %c0_58], %129 {strides = array<i32>} : memref<7x2x3xf32, #tpu.memory_space<vmem>>, vector<1x2x3xf32>,
    %c3 = arith.constant 3 : index
    %c0_59 = arith.constant 0 : index
    %c0_60 = arith.constant 0 : index
    %130 = vector.load %arg0[%c3, %c0_59, %c0_60] : memref<8x2x3xf32, #tpu.memory_space<vmem>>, vector<1x2x3xf32>
    %131 = vector.shape_cast %130 : vector<1x2x3xf32> to vector<2x3xf32>
    %c3_61 = arith.constant 3 : index
    %c0_62 = arith.constant 0 : index
    %c0_63 = arith.constant 0 : index
    %132 = vector.load %arg1[%c3_61, %c0_62, %c0_63] : memref<8x2x8xf32, #tpu.memory_space<vmem>>, vector<1x2x8xf32>
    %133 = vector.shape_cast %132 : vector<1x2x8xf32> to vector<2x8xf32>
    %134 = arith.cmpf one, %131, %131 : vector<2x3xf32>
    %135 = arith.select %134, %126, %131 : vector<2x3xi1>, vector<2x3xf32>
    %136 = arith.cmpf one, %133, %133 : vector<2x8xf32>
    %137 = arith.select %136, %116, %133 : vector<2x8xi1>, vector<2x8xf32>
    %cst_64 = arith.constant dense<0.000000e+00> : vector<2x32xf32>
    %138 = tpu.matmul %135, %0, %cst_64 {dimension_numbers = #tpu.dot_dimension_numbers<[1], [0], [0], [1], [0, 0, 1, 1], [], []>} : vector<2x3xf32>, vector<3x32xf32>, vector<2x32xf32> -> vector<2x32xf32>
    %cst_65 = arith.constant dense<0.000000e+00> : vector<2x32xf32>
    %139 = tpu.matmul %137, %1, %cst_65 {dimension_numbers = #tpu.dot_dimension_numbers<[1], [0], [0], [1], [0, 0, 1, 1], [], []>} : vector<2x8xf32>, vector<8x32xf32>, vector<2x32xf32> -> vector<2x32xf32>
    %140 = arith.addf %138, %139 : vector<2x32xf32>
    %cst_66 = arith.constant dense<0.000000e+00> : vector<2x32xf32>
    %141 = tpu.matmul %104, %2, %cst_66 {dimension_numbers = #tpu.dot_dimension_numbers<[1], [0], [0], [1], [0, 0, 1, 1], [], []>} : vector<2x32xf32>, vector<32x32xf32>, vector<2x32xf32> -> vector<2x32xf32>
    %142 = arith.addf %140, %141 : vector<2x32xf32>
    %143 = vector.broadcast %6 : vector<1x32xf32> to vector<2x32xf32>
    %144 = arith.addf %142, %143 : vector<2x32xf32>
    %145 = math.tanh %144 : vector<2x32xf32>
    %cst_67 = arith.constant dense<0.000000e+00> : vector<2x32xf32>
    %146 = tpu.matmul %145, %3, %cst_67 {dimension_numbers = #tpu.dot_dimension_numbers<[1], [0], [0], [1], [0, 0, 1, 1], [], []>} : vector<2x32xf32>, vector<32x32xf32>, vector<2x32xf32> -> vector<2x32xf32>
    %cst_68 = arith.constant dense<0.000000e+00> : vector<2x32xf32>
    %147 = tpu.matmul %110, %4, %cst_68 {dimension_numbers = #tpu.dot_dimension_numbers<[1], [0], [0], [1], [0, 0, 1, 1], [], []>} : vector<2x32xf32>, vector<32x32xf32>, vector<2x32xf32> -> vector<2x32xf32>
    %148 = arith.addf %146, %147 : vector<2x32xf32>
    %149 = vector.broadcast %7 : vector<1x32xf32> to vector<2x32xf32>
    %150 = arith.addf %148, %149 : vector<2x32xf32>
    %151 = math.tanh %150 : vector<2x32xf32>
    %cst_69 = arith.constant dense<0.000000e+00> : vector<2x32xf32>
    %152 = tpu.matmul %151, %5, %cst_69 {dimension_numbers = #tpu.dot_dimension_numbers<[1], [0], [0], [1], [0, 0, 1, 1], [], []>} : vector<2x32xf32>, vector<32x32xf32>, vector<2x32xf32> -> vector<2x32xf32>
    %153 = vector.broadcast %8 : vector<1x32xf32> to vector<2x32xf32>
    %154 = arith.addf %152, %153 : vector<2x32xf32>
    %155 = vector.extract_strided_slice %154 {offsets = [0, 0], sizes = [2, 3], strides = [1, 1]} : vector<2x32xf32> to vector<2x3xf32>
    %156 = vector.extract_strided_slice %154 {offsets = [0, 3], sizes = [2, 8], strides = [1, 1]} : vector<2x32xf32> to vector<2x8xf32>
    %157 = arith.addf %156, %137 : vector<2x8xf32>
    %cst_70 = arith.constant dense<0xFF800000> : vector<2xf32>
    %158 = vector.multi_reduction <maximumf>, %155, %cst_70 [1] : vector<2x3xf32> to vector<2xf32>
    %159 = vector.shape_cast %158 : vector<2xf32> to vector<2x1xf32>
    %160 = vector.broadcast %159 : vector<2x1xf32> to vector<2x3xf32>
    %161 = arith.subf %155, %160 : vector<2x3xf32>
    %162 = math.exp %161 : vector<2x3xf32>
    %cst_71 = arith.constant dense<0.000000e+00> : vector<2xf32>
    %163 = vector.multi_reduction <add>, %162, %cst_71 [1] : vector<2x3xf32> to vector<2xf32>
    %164 = vector.shape_cast %163 : vector<2xf32> to vector<2x1xf32>
    %165 = tpu.reciprocal %164 {approx = true} : vector<2x1xf32> -> vector<2x1xf32>
    %166 = vector.broadcast %165 : vector<2x1xf32> to vector<2x3xf32>
    %167 = arith.mulf %162, %166 : vector<2x3xf32>
    %c3_72 = arith.constant 3 : index
    %c0_73 = arith.constant 0 : index
    %c0_74 = arith.constant 0 : index
    %168 = vector.load %arg3[%c3_72, %c0_73, %c0_74] : memref<7x2x3xf32, #tpu.memory_space<vmem>>, vector<1x2x3xf32>
    %169 = vector.shape_cast %168 : vector<1x2x3xf32> to vector<2x3xf32>
    %170 = vector.shape_cast %167 : vector<2x3xf32> to vector<1x2x3xf32>
    tpu.vector_store %arg3[%c3_72, %c0_73, %c0_74], %170 {strides = array<i32>} : memref<7x2x3xf32, #tpu.memory_space<vmem>>, vector<1x2x3xf32>,
    %c4 = arith.constant 4 : index
    %c0_75 = arith.constant 0 : index
    %c0_76 = arith.constant 0 : index
    %171 = vector.load %arg0[%c4, %c0_75, %c0_76] : memref<8x2x3xf32, #tpu.memory_space<vmem>>, vector<1x2x3xf32>
    %172 = vector.shape_cast %171 : vector<1x2x3xf32> to vector<2x3xf32>
    %c4_77 = arith.constant 4 : index
    %c0_78 = arith.constant 0 : index
    %c0_79 = arith.constant 0 : index
    %173 = vector.load %arg1[%c4_77, %c0_78, %c0_79] : memref<8x2x8xf32, #tpu.memory_space<vmem>>, vector<1x2x8xf32>
    %174 = vector.shape_cast %173 : vector<1x2x8xf32> to vector<2x8xf32>
    %175 = arith.cmpf one, %172, %172 : vector<2x3xf32>
    %176 = arith.select %175, %167, %172 : vector<2x3xi1>, vector<2x3xf32>
    %177 = arith.cmpf one, %174, %174 : vector<2x8xf32>
    %178 = arith.select %177, %157, %174 : vector<2x8xi1>, vector<2x8xf32>
    %cst_80 = arith.constant dense<0.000000e+00> : vector<2x32xf32>
    %179 = tpu.matmul %176, %0, %cst_80 {dimension_numbers = #tpu.dot_dimension_numbers<[1], [0], [0], [1], [0, 0, 1, 1], [], []>} : vector<2x3xf32>, vector<3x32xf32>, vector<2x32xf32> -> vector<2x32xf32>
    %cst_81 = arith.constant dense<0.000000e+00> : vector<2x32xf32>
    %180 = tpu.matmul %178, %1, %cst_81 {dimension_numbers = #tpu.dot_dimension_numbers<[1], [0], [0], [1], [0, 0, 1, 1], [], []>} : vector<2x8xf32>, vector<8x32xf32>, vector<2x32xf32> -> vector<2x32xf32>
    %181 = arith.addf %179, %180 : vector<2x32xf32>
    %cst_82 = arith.constant dense<0.000000e+00> : vector<2x32xf32>
    %182 = tpu.matmul %145, %2, %cst_82 {dimension_numbers = #tpu.dot_dimension_numbers<[1], [0], [0], [1], [0, 0, 1, 1], [], []>} : vector<2x32xf32>, vector<32x32xf32>, vector<2x32xf32> -> vector<2x32xf32>
    %183 = arith.addf %181, %182 : vector<2x32xf32>
    %184 = vector.broadcast %6 : vector<1x32xf32> to vector<2x32xf32>
    %185 = arith.addf %183, %184 : vector<2x32xf32>
    %186 = math.tanh %185 : vector<2x32xf32>
    %cst_83 = arith.constant dense<0.000000e+00> : vector<2x32xf32>
    %187 = tpu.matmul %186, %3, %cst_83 {dimension_numbers = #tpu.dot_dimension_numbers<[1], [0], [0], [1], [0, 0, 1, 1], [], []>} : vector<2x32xf32>, vector<32x32xf32>, vector<2x32xf32> -> vector<2x32xf32>
    %cst_84 = arith.constant dense<0.000000e+00> : vector<2x32xf32>
    %188 = tpu.matmul %151, %4, %cst_84 {dimension_numbers = #tpu.dot_dimension_numbers<[1], [0], [0], [1], [0, 0, 1, 1], [], []>} : vector<2x32xf32>, vector<32x32xf32>, vector<2x32xf32> -> vector<2x32xf32>
    %189 = arith.addf %187, %188 : vector<2x32xf32>
    %190 = vector.broadcast %7 : vector<1x32xf32> to vector<2x32xf32>
    %191 = arith.addf %189, %190 : vector<2x32xf32>
    %192 = math.tanh %191 : vector<2x32xf32>
    %cst_85 = arith.constant dense<0.000000e+00> : vector<2x32xf32>
    %193 = tpu.matmul %192, %5, %cst_85 {dimension_numbers = #tpu.dot_dimension_numbers<[1], [0], [0], [1], [0, 0, 1, 1], [], []>} : vector<2x32xf32>, vector<32x32xf32>, vector<2x32xf32> -> vector<2x32xf32>
    %194 = vector.broadcast %8 : vector<1x32xf32> to vector<2x32xf32>
    %195 = arith.addf %193, %194 : vector<2x32xf32>
    %196 = vector.extract_strided_slice %195 {offsets = [0, 0], sizes = [2, 3], strides = [1, 1]} : vector<2x32xf32> to vector<2x3xf32>
    %197 = vector.extract_strided_slice %195 {offsets = [0, 3], sizes = [2, 8], strides = [1, 1]} : vector<2x32xf32> to vector<2x8xf32>
    %198 = arith.addf %197, %178 : vector<2x8xf32>
    %cst_86 = arith.constant dense<0xFF800000> : vector<2xf32>
    %199 = vector.multi_reduction <maximumf>, %196, %cst_86 [1] : vector<2x3xf32> to vector<2xf32>
    %200 = vector.shape_cast %199 : vector<2xf32> to vector<2x1xf32>
    %201 = vector.broadcast %200 : vector<2x1xf32> to vector<2x3xf32>
    %202 = arith.subf %196, %201 : vector<2x3xf32>
    %203 = math.exp %202 : vector<2x3xf32>
    %cst_87 = arith.constant dense<0.000000e+00> : vector<2xf32>
    %204 = vector.multi_reduction <add>, %203, %cst_87 [1] : vector<2x3xf32> to vector<2xf32>
    %205 = vector.shape_cast %204 : vector<2xf32> to vector<2x1xf32>
    %206 = tpu.reciprocal %205 {approx = true} : vector<2x1xf32> -> vector<2x1xf32>
    %207 = vector.broadcast %206 : vector<2x1xf32> to vector<2x3xf32>
    %208 = arith.mulf %203, %207 : vector<2x3xf32>
    %c4_88 = arith.constant 4 : index
    %c0_89 = arith.constant 0 : index
    %c0_90 = arith.constant 0 : index
    %209 = vector.load %arg3[%c4_88, %c0_89, %c0_90] : memref<7x2x3xf32, #tpu.memory_space<vmem>>, vector<1x2x3xf32>
    %210 = vector.shape_cast %209 : vector<1x2x3xf32> to vector<2x3xf32>
    %211 = vector.shape_cast %208 : vector<2x3xf32> to vector<1x2x3xf32>
    tpu.vector_store %arg3[%c4_88, %c0_89, %c0_90], %211 {strides = array<i32>} : memref<7x2x3xf32, #tpu.memory_space<vmem>>, vector<1x2x3xf32>,
    %c5 = arith.constant 5 : index
    %c0_91 = arith.constant 0 : index
    %c0_92 = arith.constant 0 : index
    %212 = vector.load %arg0[%c5, %c0_91, %c0_92] : memref<8x2x3xf32, #tpu.memory_space<vmem>>, vector<1x2x3xf32>
    %213 = vector.shape_cast %212 : vector<1x2x3xf32> to vector<2x3xf32>
    %c5_93 = arith.constant 5 : index
    %c0_94 = arith.constant 0 : index
    %c0_95 = arith.constant 0 : index
    %214 = vector.load %arg1[%c5_93, %c0_94, %c0_95] : memref<8x2x8xf32, #tpu.memory_space<vmem>>, vector<1x2x8xf32>
    %215 = vector.shape_cast %214 : vector<1x2x8xf32> to vector<2x8xf32>
    %216 = arith.cmpf one, %213, %213 : vector<2x3xf32>
    %217 = arith.select %216, %208, %213 : vector<2x3xi1>, vector<2x3xf32>
    %218 = arith.cmpf one, %215, %215 : vector<2x8xf32>
    %219 = arith.select %218, %198, %215 : vector<2x8xi1>, vector<2x8xf32>
    %cst_96 = arith.constant dense<0.000000e+00> : vector<2x32xf32>
    %220 = tpu.matmul %217, %0, %cst_96 {dimension_numbers = #tpu.dot_dimension_numbers<[1], [0], [0], [1], [0, 0, 1, 1], [], []>} : vector<2x3xf32>, vector<3x32xf32>, vector<2x32xf32> -> vector<2x32xf32>
    %cst_97 = arith.constant dense<0.000000e+00> : vector<2x32xf32>
    %221 = tpu.matmul %219, %1, %cst_97 {dimension_numbers = #tpu.dot_dimension_numbers<[1], [0], [0], [1], [0, 0, 1, 1], [], []>} : vector<2x8xf32>, vector<8x32xf32>, vector<2x32xf32> -> vector<2x32xf32>
    %222 = arith.addf %220, %221 : vector<2x32xf32>
    %cst_98 = arith.constant dense<0.000000e+00> : vector<2x32xf32>
    %223 = tpu.matmul %186, %2, %cst_98 {dimension_numbers = #tpu.dot_dimension_numbers<[1], [0], [0], [1], [0, 0, 1, 1], [], []>} : vector<2x32xf32>, vector<32x32xf32>, vector<2x32xf32> -> vector<2x32xf32>
    %224 = arith.addf %222, %223 : vector<2x32xf32>
    %225 = vector.broadcast %6 : vector<1x32xf32> to vector<2x32xf32>
    %226 = arith.addf %224, %225 : vector<2x32xf32>
    %227 = math.tanh %226 : vector<2x32xf32>
    %cst_99 = arith.constant dense<0.000000e+00> : vector<2x32xf32>
    %228 = tpu.matmul %227, %3, %cst_99 {dimension_numbers = #tpu.dot_dimension_numbers<[1], [0], [0], [1], [0, 0, 1, 1], [], []>} : vector<2x32xf32>, vector<32x32xf32>, vector<2x32xf32> -> vector<2x32xf32>
    %cst_100 = arith.constant dense<0.000000e+00> : vector<2x32xf32>
    %229 = tpu.matmul %192, %4, %cst_100 {dimension_numbers = #tpu.dot_dimension_numbers<[1], [0], [0], [1], [0, 0, 1, 1], [], []>} : vector<2x32xf32>, vector<32x32xf32>, vector<2x32xf32> -> vector<2x32xf32>
    %230 = arith.addf %228, %229 : vector<2x32xf32>
    %231 = vector.broadcast %7 : vector<1x32xf32> to vector<2x32xf32>
    %232 = arith.addf %230, %231 : vector<2x32xf32>
    %233 = math.tanh %232 : vector<2x32xf32>
    %cst_101 = arith.constant dense<0.000000e+00> : vector<2x32xf32>
    %234 = tpu.matmul %233, %5, %cst_101 {dimension_numbers = #tpu.dot_dimension_numbers<[1], [0], [0], [1], [0, 0, 1, 1], [], []>} : vector<2x32xf32>, vector<32x32xf32>, vector<2x32xf32> -> vector<2x32xf32>
    %235 = vector.broadcast %8 : vector<1x32xf32> to vector<2x32xf32>
    %236 = arith.addf %234, %235 : vector<2x32xf32>
    %237 = vector.extract_strided_slice %236 {offsets = [0, 0], sizes = [2, 3], strides = [1, 1]} : vector<2x32xf32> to vector<2x3xf32>
    %238 = vector.extract_strided_slice %236 {offsets = [0, 3], sizes = [2, 8], strides = [1, 1]} : vector<2x32xf32> to vector<2x8xf32>
    %239 = arith.addf %238, %219 : vector<2x8xf32>
    %cst_102 = arith.constant dense<0xFF800000> : vector<2xf32>
    %240 = vector.multi_reduction <maximumf>, %237, %cst_102 [1] : vector<2x3xf32> to vector<2xf32>
    %241 = vector.shape_cast %240 : vector<2xf32> to vector<2x1xf32>
    %242 = vector.broadcast %241 : vector<2x1xf32> to vector<2x3xf32>
    %243 = arith.subf %237, %242 : vector<2x3xf32>
    %244 = math.exp %243 : vector<2x3xf32>
    %cst_103 = arith.constant dense<0.000000e+00> : vector<2xf32>
    %245 = vector.multi_reduction <add>, %244, %cst_103 [1] : vector<2x3xf32> to vector<2xf32>
    %246 = vector.shape_cast %245 : vector<2xf32> to vector<2x1xf32>
    %247 = tpu.reciprocal %246 {approx = true} : vector<2x1xf32> -> vector<2x1xf32>
    %248 = vector.broadcast %247 : vector<2x1xf32> to vector<2x3xf32>
    %249 = arith.mulf %244, %248 : vector<2x3xf32>
    %c5_104 = arith.constant 5 : index
    %c0_105 = arith.constant 0 : index
    %c0_106 = arith.constant 0 : index
    %250 = vector.load %arg3[%c5_104, %c0_105, %c0_106] : memref<7x2x3xf32, #tpu.memory_space<vmem>>, vector<1x2x3xf32>
    %251 = vector.shape_cast %250 : vector<1x2x3xf32> to vector<2x3xf32>
    %252 = vector.shape_cast %249 : vector<2x3xf32> to vector<1x2x3xf32>
    tpu.vector_store %arg3[%c5_104, %c0_105, %c0_106], %252 {strides = array<i32>} : memref<7x2x3xf32, #tpu.memory_space<vmem>>, vector<1x2x3xf32>,
    %c6 = arith.constant 6 : index
    %c0_107 = arith.constant 0 : index
    %c0_108 = arith.constant 0 : index
    %253 = vector.load %arg0[%c6, %c0_107, %c0_108] : memref<8x2x3xf32, #tpu.memory_space<vmem>>, vector<1x2x3xf32>
    %254 = vector.shape_cast %253 : vector<1x2x3xf32> to vector<2x3xf32>
    %c6_109 = arith.constant 6 : index
    %c0_110 = arith.constant 0 : index
    %c0_111 = arith.constant 0 : index
    %255 = vector.load %arg1[%c6_109, %c0_110, %c0_111] : memref<8x2x8xf32, #tpu.memory_space<vmem>>, vector<1x2x8xf32>
    %256 = vector.shape_cast %255 : vector<1x2x8xf32> to vector<2x8xf32>
    %257 = arith.cmpf one, %254, %254 : vector<2x3xf32>
    %258 = arith.select %257, %249, %254 : vector<2x3xi1>, vector<2x3xf32>
    %259 = arith.cmpf one, %256, %256 : vector<2x8xf32>
    %260 = arith.select %259, %239, %256 : vector<2x8xi1>, vector<2x8xf32>
    %cst_112 = arith.constant dense<0.000000e+00> : vector<2x32xf32>
    %261 = tpu.matmul %258, %0, %cst_112 {dimension_numbers = #tpu.dot_dimension_numbers<[1], [0], [0], [1], [0, 0, 1, 1], [], []>} : vector<2x3xf32>, vector<3x32xf32>, vector<2x32xf32> -> vector<2x32xf32>
    %cst_113 = arith.constant dense<0.000000e+00> : vector<2x32xf32>
    %262 = tpu.matmul %260, %1, %cst_113 {dimension_numbers = #tpu.dot_dimension_numbers<[1], [0], [0], [1], [0, 0, 1, 1], [], []>} : vector<2x8xf32>, vector<8x32xf32>, vector<2x32xf32> -> vector<2x32xf32>
    %263 = arith.addf %261, %262 : vector<2x32xf32>
    %cst_114 = arith.constant dense<0.000000e+00> : vector<2x32xf32>
    %264 = tpu.matmul %227, %2, %cst_114 {dimension_numbers = #tpu.dot_dimension_numbers<[1], [0], [0], [1], [0, 0, 1, 1], [], []>} : vector<2x32xf32>, vector<32x32xf32>, vector<2x32xf32> -> vector<2x32xf32>
    %265 = arith.addf %263, %264 : vector<2x32xf32>
    %266 = vector.broadcast %6 : vector<1x32xf32> to vector<2x32xf32>
    %267 = arith.addf %265, %266 : vector<2x32xf32>
    %268 = math.tanh %267 : vector<2x32xf32>
    %cst_115 = arith.constant dense<0.000000e+00> : vector<2x32xf32>
    %269 = tpu.matmul %268, %3, %cst_115 {dimension_numbers = #tpu.dot_dimension_numbers<[1], [0], [0], [1], [0, 0, 1, 1], [], []>} : vector<2x32xf32>, vector<32x32xf32>, vector<2x32xf32> -> vector<2x32xf32>
    %cst_116 = arith.constant dense<0.000000e+00> : vector<2x32xf32>
    %270 = tpu.matmul %233, %4, %cst_116 {dimension_numbers = #tpu.dot_dimension_numbers<[1], [0], [0], [1], [0, 0, 1, 1], [], []>} : vector<2x32xf32>, vector<32x32xf32>, vector<2x32xf32> -> vector<2x32xf32>
    %271 = arith.addf %269, %270 : vector<2x32xf32>
    %272 = vector.broadcast %7 : vector<1x32xf32> to vector<2x32xf32>
    %273 = arith.addf %271, %272 : vector<2x32xf32>
    %274 = math.tanh %273 : vector<2x32xf32>
    %cst_117 = arith.constant dense<0.000000e+00> : vector<2x32xf32>
    %275 = tpu.matmul %274, %5, %cst_117 {dimension_numbers = #tpu.dot_dimension_numbers<[1], [0], [0], [1], [0, 0, 1, 1], [], []>} : vector<2x32xf32>, vector<32x32xf32>, vector<2x32xf32> -> vector<2x32xf32>
    %276 = vector.broadcast %8 : vector<1x32xf32> to vector<2x32xf32>
    %277 = arith.addf %275, %276 : vector<2x32xf32>
    %278 = vector.extract_strided_slice %277 {offsets = [0, 0], sizes = [2, 3], strides = [1, 1]} : vector<2x32xf32> to vector<2x3xf32>
    %cst_118 = arith.constant dense<0xFF800000> : vector<2xf32>
    %279 = vector.multi_reduction <maximumf>, %278, %cst_118 [1] : vector<2x3xf32> to vector<2xf32>
    %280 = vector.shape_cast %279 : vector<2xf32> to vector<2x1xf32>
    %281 = vector.broadcast %280 : vector<2x1xf32> to vector<2x3xf32>
    %282 = arith.subf %278, %281 : vector<2x3xf32>
    %283 = math.exp %282 : vector<2x3xf32>
    %cst_119 = arith.constant dense<0.000000e+00> : vector<2xf32>
    %284 = vector.multi_reduction <add>, %283, %cst_119 [1] : vector<2x3xf32> to vector<2xf32>
    %285 = vector.shape_cast %284 : vector<2xf32> to vector<2x1xf32>
    %286 = tpu.reciprocal %285 {approx = true} : vector<2x1xf32> -> vector<2x1xf32>
    %287 = vector.broadcast %286 : vector<2x1xf32> to vector<2x3xf32>
    %288 = arith.mulf %283, %287 : vector<2x3xf32>
    %c6_120 = arith.constant 6 : index
    %c0_121 = arith.constant 0 : index
    %c0_122 = arith.constant 0 : index
    %289 = vector.load %arg3[%c6_120, %c0_121, %c0_122] : memref<7x2x3xf32, #tpu.memory_space<vmem>>, vector<1x2x3xf32>
    %290 = vector.shape_cast %289 : vector<1x2x3xf32> to vector<2x3xf32>
    %291 = vector.shape_cast %288 : vector<2x3xf32> to vector<1x2x3xf32>
    tpu.vector_store %arg3[%c6_120, %c0_121, %c0_122], %291 {strides = array<i32>} : memref<7x2x3xf32, #tpu.memory_space<vmem>>, vector<1x2x3xf32>,
    return
  }
}

</mosaic_0001>

<llo_original>
// kernel: tpu_custom_call.1
$region0: #{tpu_custom_call.1}
  #allocation0 [shape = 'u32[]', space=smem, size = 0x4, offset = 0x4, fixed_abs, tag = 'smem constant byte address 0x4 - core index']
  #allocation1 [shape = 'u32[144,128]{1,0:T(1,128)}', space=vmem, size = 0x12000, scoped, tag = 'internal scratch']
  %s0 = inlined_call_operand.vmem [shape: f32[8,2,3], index: 0, kind: input, shape index: {}]
  %s1 = inlined_call_operand.vmem [shape: f32[8,2,8], index: 1, kind: input, shape index: {}]
  %s2 = inlined_call_operand.vmem [shape: f32[168,32], index: 2, kind: input, shape index: {}]
  %s3 = inlined_call_operand.vmem [shape: f32[7,2,3], index: 3, kind: output, shape index: {}]
  %s4 = sld [smem:[#allocation0]]
  $region22: #{tpu_custom_call.1} parent=0
    _
  %s6 = ssub.s32 1, %s4
  %s7 = scalar_select 0, %s6, %s4
  // Predicated region
  $region2: #{tpu_custom_call.1} parent=0 // pred_check
    _
  $region3: #{tpu_custom_call.1} parent=0 // pred_check_branch
    %9 = sbr.rel (0) target = $region5
  $region4: #{tpu_custom_call.1} parent=0 // pred_region
    _
  $region5: #{tpu_custom_call.1} parent=0 // pred_fallthru
    _
  // Predicated region
  $region6: #{tpu_custom_call.1} parent=0 // pred_check
    _
  $region7: #{tpu_custom_call.1} parent=0 // pred_check_branch
    %11 = sbr.rel (0) target = $region9
  $region8: #{tpu_custom_call.1} parent=0 // pred_region
    _
  $region9: #{tpu_custom_call.1} parent=0 // pred_fallthru
    _
  // Predicated region
  $region10: #{tpu_custom_call.1} parent=0 // pred_check
    _
  $region11: #{tpu_custom_call.1} parent=0 // pred_check_branch
    %13 = sbr.rel (0) target = $region13
  $region12: #{tpu_custom_call.1} parent=0 // pred_region
    _
  $region13: #{tpu_custom_call.1} parent=0 // pred_fallthru
    _
  %v14 = vld [vmem:[%s2] sm:$0x7]
  %v15 = vld [vmem:[%s2 + $0x8] sm:$0xff]
  %v16 = vld [vmem:[%s2 + $0x10] sm:$0xff]
  %v17 = vld [vmem:[%s2 + $0x18] sm:$0xff]
  %v18 = vld [vmem:[%s2 + $0x20] sm:$0xff]
  %v19 = vld [vmem:[%s2 + $0x28] sm:$0xff]
  %v20 = vld [vmem:[%s2 + $0x30] sm:$0xff]
  %v21 = vld [vmem:[%s2 + $0x38] sm:$0xff]
  %v22 = vld [vmem:[%s2 + $0x40] sm:$0xff]
  %v23 = vld [vmem:[%s2 + $0x48] sm:$0xff]
  %v24 = vld [vmem:[%s2 + $0x50] sm:$0xff]
  %v25 = vld [vmem:[%s2 + $0x58] sm:$0xff]
  %v26 = vld [vmem:[%s2 + $0x60] sm:$0xff]
  %v27 = vld [vmem:[%s2 + $0x68] sm:$0xff]
  %v28 = vld [vmem:[%s2 + $0x70] sm:$0xff]
  %v29 = vld [vmem:[%s2 + $0x78] sm:$0xff]
  %v30 = vld [vmem:[%s2 + $0x80] sm:$0xff]
  %v31 = vld [vmem:[%s2 + $0x88] sm:$0xff]
  %v32 = vld [vmem:[%s2 + $0x90] sm:$0x1]
  %v33 = vld [vmem:[%s2 + $0x98] sm:$0x1]
  %v34 = vld [vmem:[%s2 + $0xa0] sm:$0x1]
  %v35 = vld [vmem:[%s0] sm:$0x3]
  %v36 = vld [vmem:[%s1] sm:$0x3]
  %vm37 = vcmask 64512
  %v39 = vsel %vm37, %v36, 0
  %41 = vmatprep.subr.mxu0 0.0
  %42 = vmatpush1.msra.mxu0 %v15
  %43 = vmatprep.subr.mxu0 0.0
  %44 = vmatpush1.msra.mxu0 0.0
  %45 = vmatprep.subr.mxu0 0.0
  %46 = vmatpush1.msra.mxu0 0.0
  %47 = vmatprep.subr.mxu0 0.0
  %48 = vmatpush1.msra.mxu0 0.0
  %49 = vmatprep.subr.mxu0 0.0
  %50 = vmatpush1.msra.mxu0 0.0
  %51 = vmatprep.subr.mxu0 0.0
  %52 = vmatpush1.msra.mxu0 0.0
  %53 = vmatprep.subr.mxu0 0.0
  %54 = vmatpush1.msra.mxu0 0.0
  %55 = vmatprep.subr.mxu0 0.0
  %56 = vmatpush1.msra.mxu0 0.0
  %57 = vmatprep.subr.mxu0 0.0
  %58 = vmatpush1.msra.mxu0 0.0
  %59 = vmatprep.subr.mxu0 0.0
  %60 = vmatpush1.msra.mxu0 0.0
  %61 = vmatprep.subr.mxu0 0.0
  %62 = vmatpush1.msra.mxu0 0.0
  %63 = vmatprep.subr.mxu0 0.0
  %64 = vmatpush1.msra.mxu0 0.0
  %65 = vmatprep.subr.mxu0 0.0
  %66 = vmatpush1.msra.mxu0 0.0
  %67 = vmatprep.subr.mxu0 0.0
  %68 = vmatpush1.msra.mxu0 0.0
  %69 = vmatprep.subr.mxu0 0.0
  %70 = vmatpush1.msra.mxu0 0.0
  %71 = vmatprep.subr.mxu0 0.0
  %72 = vmatpush1.msra.mxu0 0.0
  %73 = vmatprep.subr.mxu0 0.0
  %74 = vmatpush1.msra.mxu0 0.0
  %75 = vmatprep.subr.mxu0 0.0
  %76 = vmatpush1.msra.mxu0 0.0
  %77 = vmatprep.subr.mxu0 0.0
  %78 = vmatpush1.msra.mxu0 0.0
  %79 = vmatprep.subr.mxu0 0.0
  %80 = vmatpush1.msra.mxu0 0.0
  %81 = vmatprep.subr.mxu0 0.0
  %82 = vmatpush1.msra.mxu0 0.0
  %83 = vmatprep.subr.mxu0 0.0
  %84 = vmatpush1.msra.mxu0 0.0
  %85 = vmatprep.subr.mxu0 0.0
  %86 = vmatpush1.msra.mxu0 0.0
  %87 = vmatprep.subr.mxu0 0.0
  %88 = vmatpush1.msra.mxu0 0.0
  %89 = vmatprep.subr.mxu0 0.0
  %90 = vmatpush1.msra.mxu0 0.0
  %91 = vmatprep.subr.mxu0 0.0
  %92 = vmatpush1.msra.mxu0 0.0
  %93 = vmatprep.subr.mxu0 0.0
  %94 = vmatpush1.msra.mxu0 0.0
  %95 = vmatprep.subr.mxu0 0.0
  %96 = vmatpush1.msra.mxu0 0.0
  %97 = vmatprep.subr.mxu0 0.0
  %98 = vmatpush1.msra.mxu0 0.0
  %99 = vmatprep.subr.mxu0 0.0
  %100 = vmatpush1.msra.mxu0 0.0
  %101 = vmatprep.subr.mxu0 0.0
  %102 = vmatpush1.msra.mxu0 0.0
  %103 = vmatprep.subr.mxu0 0.0
  %104 = vmatpush1.msra.mxu0 0.0
  %105 = vmatprep.mubr.f32.mxu0 0.0
  %106 = vmatmul.mubr.f32.gmra.mrb[0].mxu0 %v39
  %v107 = vpop.f32.mrb[0].mxu0
  %v108 = vadd.f32 0.0, %v107
  %v109 = vpop.f32.mrb[0].mxu0
  %110 = vdwg.mxu0
  %vm111 = vcmask 23552
  %v113 = vsel %vm111, %v35, 0
  %vm115 = vcmask 1042432
  %v117 = vsel %vm115, %v14, 0
  %119 = vmatprep.subr.mxu0 0.0
  %120 = vmatpush1.msra.mxu0 %v117
  %121 = vmatprep.subr.mxu0 0.0
  %122 = vmatpush1.msra.mxu0 0.0
  %123 = vmatprep.subr.mxu0 0.0
  %124 = vmatpush1.msra.mxu0 0.0
  %125 = vmatprep.subr.mxu0 0.0
  %126 = vmatpush1.msra.mxu0 0.0
  %127 = vmatprep.subr.mxu0 0.0
  %128 = vmatpush1.msra.mxu0 0.0
  %129 = vmatprep.subr.mxu0 0.0
  %130 = vmatpush1.msra.mxu0 0.0
  %131 = vmatprep.subr.mxu0 0.0
  %132 = vmatpush1.msra.mxu0 0.0
  %133 = vmatprep.subr.mxu0 0.0
  %134 = vmatpush1.msra.mxu0 0.0
  %135 = vmatprep.subr.mxu0 0.0
  %136 = vmatpush1.msra.mxu0 0.0
  %137 = vmatprep.subr.mxu0 0.0
  %138 = vmatpush1.msra.mxu0 0.0
  %139 = vmatprep.subr.mxu0 0.0
  %140 = vmatpush1.msra.mxu0 0.0
  %141 = vmatprep.subr.mxu0 0.0
  %142 = vmatpush1.msra.mxu0 0.0
  %143 = vmatprep.subr.mxu0 0.0
  %144 = vmatpush1.msra.mxu0 0.0
  %145 = vmatprep.subr.mxu0 0.0
  %146 = vmatpush1.msra.mxu0 0.0
  %147 = vmatprep.subr.mxu0 0.0
  %148 = vmatpush1.msra.mxu0 0.0
  %149 = vmatprep.subr.mxu0 0.0
  %150 = vmatpush1.msra.mxu0 0.0
  %151 = vmatprep.subr.mxu0 0.0
  %152 = vmatpush1.msra.mxu0 0.0
  %153 = vmatprep.subr.mxu0 0.0
  %154 = vmatpush1.msra.mxu0 0.0
  %155 = vmatprep.subr.mxu0 0.0
  %156 = vmatpush1.msra.mxu0 0.0
  %157 = vmatprep.subr.mxu0 0.0
  %158 = vmatpush1.msra.mxu0 0.0
  %159 = vmatprep.subr.mxu0 0.0
  %160 = vmatpush1.msra.mxu0 0.0
  %161 = vmatprep.subr.mxu0 0.0
  %162 = vmatpush1.msra.mxu0 0.0
  %163 = vmatprep.subr.mxu0 0.0
  %164 = vmatpush1.msra.mxu0 0.0
  %165 = vmatprep.subr.mxu0 0.0
  %166 = vmatpush1.msra.mxu0 0.0
  %167 = vmatprep.subr.mxu0 0.0
  %168 = vmatpush1.msra.mxu0 0.0
  %169 = vmatprep.subr.mxu0 0.0
  %170 = vmatpush1.msra.mxu0 0.0
  %171 = vmatprep.subr.mxu0 0.0
  %172 = vmatpush1.msra.mxu0 0.0
  %173 = vmatprep.subr.mxu0 0.0
  %174 = vmatpush1.msra.mxu0 0.0
  %175 = vmatprep.subr.mxu0 0.0
  %176 = vmatpush1.msra.mxu0 0.0
  %177 = vmatprep.subr.mxu0 0.0
  %178 = vmatpush1.msra.mxu0 0.0
  %179 = vmatprep.subr.mxu0 0.0
  %180 = vmatpush1.msra.mxu0 0.0
  %181 = vmatprep.subr.mxu0 0.0
  %182 = vmatpush1.msra.mxu0 0.0
  %183 = vmatprep.mubr.f32.mxu0 0.0
  %184 = vmatmul.mubr.f32.gmra.mrb[0].mxu0 %v113
  %v185 = vpop.f32.mrb[0].mxu0
  %v186 = vadd.f32 %v108, %v185
  %v187 = vpop.f32.mrb[0].mxu0
  %188 = vdwg.mxu0
  %vm189 = vcmask 261120
  %v191 = vsel %vm189, 0.0, 0
  %193 = vmatprep.subr.mxu0 0.0
  %194 = vmatpush1.msra.mxu0 %v16
  %195 = vmatprep.subr.mxu0 0.0
  %196 = vmatpush1.msra.mxu0 %v17
  %197 = vmatprep.subr.mxu0 0.0
  %198 = vmatpush1.msra.mxu0 %v18
  %199 = vmatprep.subr.mxu0 0.0
  %200 = vmatpush1.msra.mxu0 %v19
  %201 = vmatprep.subr.mxu0 0.0
  %202 = vmatpush1.msra.mxu0 0.0
  %203 = vmatprep.subr.mxu0 0.0
  %204 = vmatpush1.msra.mxu0 0.0
  %205 = vmatprep.subr.mxu0 0.0
  %206 = vmatpush1.msra.mxu0 0.0
  %207 = vmatprep.subr.mxu0 0.0
  %208 = vmatpush1.msra.mxu0 0.0
  %209 = vmatprep.subr.mxu0 0.0
  %210 = vmatpush1.msra.mxu0 0.0
  %211 = vmatprep.subr.mxu0 0.0
  %212 = vmatpush1.msra.mxu0 0.0
  %213 = vmatprep.subr.mxu0 0.0
  %214 = vmatpush1.msra.mxu0 0.0
  %215 = vmatprep.subr.mxu0 0.0
  %216 = vmatpush1.msra.mxu0 0.0
  %217 = vmatprep.subr.mxu0 0.0
  %218 = vmatpush1.msra.mxu0 0.0
  %219 = vmatprep.subr.mxu0 0.0
  %220 = vmatpush1.msra.mxu0 0.0
  %221 = vmatprep.subr.mxu0 0.0
  %222 = vmatpush1.msra.mxu0 0.0
  %223 = vmatprep.subr.mxu0 0.0
  %224 = vmatpush1.msra.mxu0 0.0
  %225 = vmatprep.subr.mxu0 0.0
  %226 = vmatpush1.msra.mxu0 0.0
  %227 = vmatprep.subr.mxu0 0.0
  %228 = vmatpush1.msra.mxu0 0.0
  %229 = vmatprep.subr.mxu0 0.0
  %230 = vmatpush1.msra.mxu0 0.0
  %231 = vmatprep.subr.mxu0 0.0
  %232 = vmatpush1.msra.mxu0 0.0
  %233 = vmatprep.subr.mxu0 0.0
  %234 = vmatpush1.msra.mxu0 0.0
  %235 = vmatprep.subr.mxu0 0.0
  %236 = vmatpush1.msra.mxu0 0.0
  %237 = vmatprep.subr.mxu0 0.0
  %238 = vmatpush1.msra.mxu0 0.0
  %239 = vmatprep.subr.mxu0 0.0
  %240 = vmatpush1.msra.mxu0 0.0
  %241 = vmatprep.subr.mxu0 0.0
  %242 = vmatpush1.msra.mxu0 0.0
  %243 = vmatprep.subr.mxu0 0.0
  %244 = vmatpush1.msra.mxu0 0.0
  %245 = vmatprep.subr.mxu0 0.0
  %246 = vmatpush1.msra.mxu0 0.0
  %247 = vmatprep.subr.mxu0 0.0
  %248 = vmatpush1.msra.mxu0 0.0
  %249 = vmatprep.subr.mxu0 0.0
  %250 = vmatpush1.msra.mxu0 0.0
  %251 = vmatprep.subr.mxu0 0.0
  %252 = vmatpush1.msra.mxu0 0.0
  %253 = vmatprep.subr.mxu0 0.0
  %254 = vmatpush1.msra.mxu0 0.0
  %255 = vmatprep.subr.mxu0 0.0
  %256 = vmatpush1.msra.mxu0 0.0
  %257 = vmatprep.mubr.f32.mxu0 0.0
  %258 = vmatmul.mubr.f32.gmra.mrb[0].mxu0 %v191
  %v259 = vpop.f32.mrb[0].mxu0
  %v260 = vadd.f32 0.0, %v259
  %v261 = vpop.f32.mrb[0].mxu0
  %262 = vdwg.mxu0
  %v263 = vadd.f32 %v186, %v260
  %v264 = vlaneseq
  %v265 = vshrl.u32 %v264, 7
  %v266 = vsub.s32 0, %v265
  %v267 = vrot.slane %v32, %v266
  %v268 = vadd.f32 %v263, %v267
  %v269 = vtanh.pop %v268
  %270 = vmatprep.subr.mxu0 0.0
  %271 = vmatpush1.msra.mxu0 %v24
  %272 = vmatprep.subr.mxu0 0.0
  %273 = vmatpush1.msra.mxu0 %v25
  %274 = vmatprep.subr.mxu0 0.0
  %275 = vmatpush1.msra.mxu0 %v26
  %276 = vmatprep.subr.mxu0 0.0
  %277 = vmatpush1.msra.mxu0 %v27
  %278 = vmatprep.subr.mxu0 0.0
  %279 = vmatpush1.msra.mxu0 0.0
  %280 = vmatprep.subr.mxu0 0.0
  %281 = vmatpush1.msra.mxu0 0.0
  %282 = vmatprep.subr.mxu0 0.0
  %283 = vmatpush1.msra.mxu0 0.0
  %284 = vmatprep.subr.mxu0 0.0
  %285 = vmatpush1.msra.mxu0 0.0
  %286 = vmatprep.subr.mxu0 0.0
  %287 = vmatpush1.msra.mxu0 0.0
  %288 = vmatprep.subr.mxu0 0.0
  %289 = vmatpush1.msra.mxu0 0.0
  %290 = vmatprep.subr.mxu0 0.0
  %291 = vmatpush1.msra.mxu0 0.0
  %292 = vmatprep.subr.mxu0 0.0
  %293 = vmatpush1.msra.mxu0 0.0
  %294 = vmatprep.subr.mxu0 0.0
  %295 = vmatpush1.msra.mxu0 0.0
  %296 = vmatprep.subr.mxu0 0.0
  %297 = vmatpush1.msra.mxu0 0.0
  %298 = vmatprep.subr.mxu0 0.0
  %299 = vmatpush1.msra.mxu0 0.0
  %300 = vmatprep.subr.mxu0 0.0
  %301 = vmatpush1.msra.mxu0 0.0
  %302 = vmatprep.subr.mxu0 0.0
  %303 = vmatpush1.msra.mxu0 0.0
  %304 = vmatprep.subr.mxu0 0.0
  %305 = vmatpush1.msra.mxu0 0.0
  %306 = vmatprep.subr.mxu0 0.0
  %307 = vmatpush1.msra.mxu0 0.0
  %308 = vmatprep.subr.mxu0 0.0
  %309 = vmatpush1.msra.mxu0 0.0
  %310 = vmatprep.subr.mxu0 0.0
  %311 = vmatpush1.msra.mxu0 0.0
  %312 = vmatprep.subr.mxu0 0.0
  %313 = vmatpush1.msra.mxu0 0.0
  %314 = vmatprep.subr.mxu0 0.0
  %315 = vmatpush1.msra.mxu0 0.0
  %316 = vmatprep.subr.mxu0 0.0
  %317 = vmatpush1.msra.mxu0 0.0
  %318 = vmatprep.subr.mxu0 0.0
  %319 = vmatpush1.msra.mxu0 0.0
  %320 = vmatprep.subr.mxu0 0.0
  %321 = vmatpush1.msra.mxu0 0.0
  %322 = vmatprep.subr.mxu0 0.0
  %323 = vmatpush1.msra.mxu0 0.0
  %324 = vmatprep.subr.mxu0 0.0
  %325 = vmatpush1.msra.mxu0 0.0
  %326 = vmatprep.subr.mxu0 0.0
  %327 = vmatpush1.msra.mxu0 0.0
  %328 = vmatprep.subr.mxu0 0.0
  %329 = vmatpush1.msra.mxu0 0.0
  %330 = vmatprep.subr.mxu0 0.0
  %331 = vmatpush1.msra.mxu0 0.0
  %332 = vmatprep.subr.mxu0 0.0
  %333 = vmatpush1.msra.mxu0 0.0
  %334 = vmatprep.mubr.f32.mxu0 0.0
  %335 = vmatmul.mubr.f32.gmra.mrb[0].mxu0 %v191
  %v336 = vpop.f32.mrb[0].mxu0
  %v337 = vadd.f32 0.0, %v336
  %v338 = vpop.f32.mrb[0].mxu0
  %339 = vdwg.mxu0
  %v341 = vsel %vm189, %v269, 0
  %343 = vmatprep.subr.mxu0 0.0
  %344 = vmatpush1.msra.mxu0 %v20
  %345 = vmatprep.subr.mxu0 0.0
  %346 = vmatpush1.msra.mxu0 %v21
  %347 = vmatprep.subr.mxu0 0.0
  %348 = vmatpush1.msra.mxu0 %v22
  %349 = vmatprep.subr.mxu0 0.0
  %350 = vmatpush1.msra.mxu0 %v23
  %351 = vmatprep.subr.mxu0 0.0
  %352 = vmatpush1.msra.mxu0 0.0
  %353 = vmatprep.subr.mxu0 0.0
  %354 = vmatpush1.msra.mxu0 0.0
  %355 = vmatprep.subr.mxu0 0.0
  %356 = vmatpush1.msra.mxu0 0.0
  %357 = vmatprep.subr.mxu0 0.0
  %358 = vmatpush1.msra.mxu0 0.0
  %359 = vmatprep.subr.mxu0 0.0
  %360 = vmatpush1.msra.mxu0 0.0
  %361 = vmatprep.subr.mxu0 0.0
  %362 = vmatpush1.msra.mxu0 0.0
  %363 = vmatprep.subr.mxu0 0.0
  %364 = vmatpush1.msra.mxu0 0.0
  %365 = vmatprep.subr.mxu0 0.0
  %366 = vmatpush1.msra.mxu0 0.0
  %367 = vmatprep.subr.mxu0 0.0
  %368 = vmatpush1.msra.mxu0 0.0
  %369 = vmatprep.subr.mxu0 0.0
  %370 = vmatpush1.msra.mxu0 0.0
  %371 = vmatprep.subr.mxu0 0.0
  %372 = vmatpush1.msra.mxu0 0.0
  %373 = vmatprep.subr.mxu0 0.0
  %374 = vmatpush1.msra.mxu0 0.0
  %375 = vmatprep.subr.mxu0 0.0
  %376 = vmatpush1.msra.mxu0 0.0
  %377 = vmatprep.subr.mxu0 0.0
  %378 = vmatpush1.msra.mxu0 0.0
  %379 = vmatprep.subr.mxu0 0.0
  %380 = vmatpush1.msra.mxu0 0.0
  %381 = vmatprep.subr.mxu0 0.0
  %382 = vmatpush1.msra.mxu0 0.0
  %383 = vmatprep.subr.mxu0 0.0
  %384 = vmatpush1.msra.mxu0 0.0
  %385 = vmatprep.subr.mxu0 0.0
  %386 = vmatpush1.msra.mxu0 0.0
  %387 = vmatprep.subr.mxu0 0.0
  %388 = vmatpush1.msra.mxu0 0.0
  %389 = vmatprep.subr.mxu0 0.0
  %390 = vmatpush1.msra.mxu0 0.0
  %391 = vmatprep.subr.mxu0 0.0
  %392 = vmatpush1.msra.mxu0 0.0
  %393 = vmatprep.subr.mxu0 0.0
  %394 = vmatpush1.msra.mxu0 0.0
  %395 = vmatprep.subr.mxu0 0.0
  %396 = vmatpush1.msra.mxu0 0.0
  %397 = vmatprep.subr.mxu0 0.0
  %398 = vmatpush1.msra.mxu0 0.0
  %399 = vmatprep.subr.mxu0 0.0
  %400 = vmatpush1.msra.mxu0 0.0
  %401 = vmatprep.subr.mxu0 0.0
  %402 = vmatpush1.msra.mxu0 0.0
  %403 = vmatprep.subr.mxu0 0.0
  %404 = vmatpush1.msra.mxu0 0.0
  %405 = vmatprep.subr.mxu0 0.0
  %406 = vmatpush1.msra.mxu0 0.0
  %407 = vmatprep.mubr.f32.mxu0 0.0
  %408 = vmatmul.mubr.f32.gmra.mrb[0].mxu0 %v341
  %v409 = vpop.f32.mrb[0].mxu0
  %v410 = vadd.f32 %v337, %v409
  %v411 = vpop.f32.mrb[0].mxu0
  %412 = vdwg.mxu0
  %v413 = vlaneseq
  %v414 = vshrl.u32 %v413, 7
  %v415 = vsub.s32 0, %v414
  %v416 = vrot.slane %v33, %v415
  %v417 = vadd.f32 %v410, %v416
  %v418 = vtanh.pop %v417
  %v419 = vlaneseq
  %v420 = vshrl.u32 %v419, 7
  %v421 = vsub.s32 0, %v420
  %v422 = vrot.slane %v34, %v421
  %v424 = vsel %vm189, %v418, 0
  %426 = vmatprep.subr.mxu0 0.0
  %427 = vmatpush1.msra.mxu0 %v28
  %428 = vmatprep.subr.mxu0 0.0
  %429 = vmatpush1.msra.mxu0 %v29
  %430 = vmatprep.subr.mxu0 0.0
  %431 = vmatpush1.msra.mxu0 %v30
  %432 = vmatprep.subr.mxu0 0.0
  %433 = vmatpush1.msra.mxu0 %v31
  %434 = vmatprep.subr.mxu0 0.0
  %435 = vmatpush1.msra.mxu0 0.0
  %436 = vmatprep.subr.mxu0 0.0
  %437 = vmatpush1.msra.mxu0 0.0
  %438 = vmatprep.subr.mxu0 0.0
  %439 = vmatpush1.msra.mxu0 0.0
  %440 = vmatprep.subr.mxu0 0.0
  %441 = vmatpush1.msra.mxu0 0.0
  %442 = vmatprep.subr.mxu0 0.0
  %443 = vmatpush1.msra.mxu0 0.0
  %444 = vmatprep.subr.mxu0 0.0
  %445 = vmatpush1.msra.mxu0 0.0
  %446 = vmatprep.subr.mxu0 0.0
  %447 = vmatpush1.msra.mxu0 0.0
  %448 = vmatprep.subr.mxu0 0.0
  %449 = vmatpush1.msra.mxu0 0.0
  %450 = vmatprep.subr.mxu0 0.0
  %451 = vmatpush1.msra.mxu0 0.0
  %452 = vmatprep.subr.mxu0 0.0
  %453 = vmatpush1.msra.mxu0 0.0
  %454 = vmatprep.subr.mxu0 0.0
  %455 = vmatpush1.msra.mxu0 0.0
  %456 = vmatprep.subr.mxu0 0.0
  %457 = vmatpush1.msra.mxu0 0.0
  %458 = vmatprep.subr.mxu0 0.0
  %459 = vmatpush1.msra.mxu0 0.0
  %460 = vmatprep.subr.mxu0 0.0
  %461 = vmatpush1.msra.mxu0 0.0
  %462 = vmatprep.subr.mxu0 0.0
  %463 = vmatpush1.msra.mxu0 0.0
  %464 = vmatprep.subr.mxu0 0.0
  %465 = vmatpush1.msra.mxu0 0.0
  %466 = vmatprep.subr.mxu0 0.0
  %467 = vmatpush1.msra.mxu0 0.0
  %468 = vmatprep.subr.mxu0 0.0
  %469 = vmatpush1.msra.mxu0 0.0
  %470 = vmatprep.subr.mxu0 0.0
  %471 = vmatpush1.msra.mxu0 0.0
  %472 = vmatprep.subr.mxu0 0.0
  %473 = vmatpush1.msra.mxu0 0.0
  %474 = vmatprep.subr.mxu0 0.0
  %475 = vmatpush1.msra.mxu0 0.0
  %476 = vmatprep.subr.mxu0 0.0
  %477 = vmatpush1.msra.mxu0 0.0
  %478 = vmatprep.subr.mxu0 0.0
  %479 = vmatpush1.msra.mxu0 0.0
  %480 = vmatprep.subr.mxu0 0.0
  %481 = vmatpush1.msra.mxu0 0.0
  %482 = vmatprep.subr.mxu0 0.0
  %483 = vmatpush1.msra.mxu0 0.0
  %484 = vmatprep.subr.mxu0 0.0
  %485 = vmatpush1.msra.mxu0 0.0
  %486 = vmatprep.subr.mxu0 0.0
  %487 = vmatpush1.msra.mxu0 0.0
  %488 = vmatprep.subr.mxu0 0.0
  %489 = vmatpush1.msra.mxu0 0.0
  %490 = vmatprep.mubr.f32.mxu0 0.0
  %491 = vmatmul.mubr.f32.gmra.mrb[0].mxu0 %v424
  %v492 = vpop.f32.mrb[0].mxu0
  %v493 = vadd.f32 %v422, %v492
  %v494 = vpop.f32.mrb[0].mxu0
  %495 = vdwg.mxu0
  %496 = vrot.lane.b32.xlu0 %v36, 3
  %v497 = vpop.permute.xlu0 %496
  %v499 = vadd.f32 %v493, %v497
  %vm500 = vcmask 17408
  %v501 = vsel %vm500, %v493, -inf
  %502 = vmax.xlane.f32.xlu0 %v501
  %v503 = vpop.xlane.xlu0 %502
  %v504 = vsub.f32 %v493, %v503
  %v505 = vmul.f32 %v504, 1.442695
  %v506 = vpow.pop %v505
  %v507 = vsel %vm500, %v506, 0.0
  %508 = vadd.xlane.f32.xlu0 %v507
  %v509 = vpop.xlane.xlu0 %508
  %v510 = vrcp.pop %v509
  %v511 = vmul.f32 %v506, %v510
  %512 = vst.msk [vmem:[%s3] sm:$0x3] %vm500, %v511
  %s513 = scalar_lea.vmem %s0, 2
  %v514 = vld [vmem:[%s513] sm:$0x3]
  %s515 = scalar_lea.vmem %s1, 2
  %v516 = vld [vmem:[%s515] sm:$0x3]
  %vm517 = vcmp.ne.f32.partialorder %v514, %v514
  %v518 = vsel %vm517, %v511, %v514
  %vm519 = vcmp.ne.f32.partialorder %v516, %v516
  %521 = vrot.lane.b32.xlu0 %v499, 125
  %v522 = vpop.permute.xlu0 %521
  %v524 = vsel %vm519, %v522, %v516
  %v526 = vsel %vm37, %v524, 0
  %528 = vmatprep.subr.mxu0 0.0
  %529 = vmatpush1.msra.mxu0 %v15
  %530 = vmatprep.subr.mxu0 0.0
  %531 = vmatpush1.msra.mxu0 0.0
  %532 = vmatprep.subr.mxu0 0.0
  %533 = vmatpush1.msra.mxu0 0.0
  %534 = vmatprep.subr.mxu0 0.0
  %535 = vmatpush1.msra.mxu0 0.0
  %536 = vmatprep.subr.mxu0 0.0
  %537 = vmatpush1.msra.mxu0 0.0
  %538 = vmatprep.subr.mxu0 0.0
  %539 = vmatpush1.msra.mxu0 0.0
  %540 = vmatprep.subr.mxu0 0.0
  %541 = vmatpush1.msra.mxu0 0.0
  %542 = vmatprep.subr.mxu0 0.0
  %543 = vmatpush1.msra.mxu0 0.0
  %544 = vmatprep.subr.mxu0 0.0
  %545 = vmatpush1.msra.mxu0 0.0
  %546 = vmatprep.subr.mxu0 0.0
  %547 = vmatpush1.msra.mxu0 0.0
  %548 = vmatprep.subr.mxu0 0.0
  %549 = vmatpush1.msra.mxu0 0.0
  %550 = vmatprep.subr.mxu0 0.0
  %551 = vmatpush1.msra.mxu0 0.0
  %552 = vmatprep.subr.mxu0 0.0
  %553 = vmatpush1.msra.mxu0 0.0
  %554 = vmatprep.subr.mxu0 0.0
  %555 = vmatpush1.msra.mxu0 0.0
  %556 = vmatprep.subr.mxu0 0.0
  %557 = vmatpush1.msra.mxu0 0.0
  %558 = vmatprep.subr.mxu0 0.0
  %559 = vmatpush1.msra.mxu0 0.0
  %560 = vmatprep.subr.mxu0 0.0
  %561 = vmatpush1.msra.mxu0 0.0
  %562 = vmatprep.subr.mxu0 0.0
  %563 = vmatpush1.msra.mxu0 0.0
  %564 = vmatprep.subr.mxu0 0.0
  %565 = vmatpush1.msra.mxu0 0.0
  %566 = vmatprep.subr.mxu0 0.0
  %567 = vmatpush1.msra.mxu0 0.0
  %568 = vmatprep.subr.mxu0 0.0
  %569 = vmatpush1.msra.mxu0 0.0
  %570 = vmatprep.subr.mxu0 0.0
  %571 = vmatpush1.msra.mxu0 0.0
  %572 = vmatprep.subr.mxu0 0.0
  %573 = vmatpush1.msra.mxu0 0.0
  %574 = vmatprep.subr.mxu0 0.0
  %575 = vmatpush1.msra.mxu0 0.0
  %576 = vmatprep.subr.mxu0 0.0
  %577 = vmatpush1.msra.mxu0 0.0
  %578 = vmatprep.subr.mxu0 0.0
  %579 = vmatpush1.msra.mxu0 0.0
  %580 = vmatprep.subr.mxu0 0.0
  %581 = vmatpush1.msra.mxu0 0.0
  %582 = vmatprep.subr.mxu0 0.0
  %583 = vmatpush1.msra.mxu0 0.0
  %584 = vmatprep.subr.mxu0 0.0
  %585 = vmatpush1.msra.mxu0 0.0
  %586 = vmatprep.subr.mxu0 0.0
  %587 = vmatpush1.msra.mxu0 0.0
  %588 = vmatprep.subr.mxu0 0.0
  %589 = vmatpush1.msra.mxu0 0.0
  %590 = vmatprep.subr.mxu0 0.0
  %591 = vmatpush1.msra.mxu0 0.0
  %592 = vmatprep.mubr.f32.mxu0 0.0
  %593 = vmatmul.mubr.f32.gmra.mrb[0].mxu0 %v526
  %v594 = vpop.f32.mrb[0].mxu0
  %v595 = vadd.f32 0.0, %v594
  %v596 = vpop.f32.mrb[0].mxu0
  %597 = vdwg.mxu0
  %v599 = vsel %vm111, %v518, 0
  %601 = vmatprep.subr.mxu0 0.0
  %602 = vmatpush1.msra.mxu0 %v117
  %603 = vmatprep.subr.mxu0 0.0
  %604 = vmatpush1.msra.mxu0 0.0
  %605 = vmatprep.subr.mxu0 0.0
  %606 = vmatpush1.msra.mxu0 0.0
  %607 = vmatprep.subr.mxu0 0.0
  %608 = vmatpush1.msra.mxu0 0.0
  %609 = vmatprep.subr.mxu0 0.0
  %610 = vmatpush1.msra.mxu0 0.0
  %611 = vmatprep.subr.mxu0 0.0
  %612 = vmatpush1.msra.mxu0 0.0
  %613 = vmatprep.subr.mxu0 0.0
  %614 = vmatpush1.msra.mxu0 0.0
  %615 = vmatprep.subr.mxu0 0.0
  %616 = vmatpush1.msra.mxu0 0.0
  %617 = vmatprep.subr.mxu0 0.0
  %618 = vmatpush1.msra.mxu0 0.0
  %619 = vmatprep.subr.mxu0 0.0
  %620 = vmatpush1.msra.mxu0 0.0
  %621 = vmatprep.subr.mxu0 0.0
  %622 = vmatpush1.msra.mxu0 0.0
  %623 = vmatprep.subr.mxu0 0.0
  %624 = vmatpush1.msra.mxu0 0.0
  %625 = vmatprep.subr.mxu0 0.0
  %626 = vmatpush1.msra.mxu0 0.0
  %627 = vmatprep.subr.mxu0 0.0
  %628 = vmatpush1.msra.mxu0 0.0
  %629 = vmatprep.subr.mxu0 0.0
  %630 = vmatpush1.msra.mxu0 0.0
  %631 = vmatprep.subr.mxu0 0.0
  %632 = vmatpush1.msra.mxu0 0.0
  %633 = vmatprep.subr.mxu0 0.0
  %634 = vmatpush1.msra.mxu0 0.0
  %635 = vmatprep.subr.mxu0 0.0
  %636 = vmatpush1.msra.mxu0 0.0
  %637 = vmatprep.subr.mxu0 0.0
  %638 = vmatpush1.msra.mxu0 0.0
  %639 = vmatprep.subr.mxu0 0.0
  %640 = vmatpush1.msra.mxu0 0.0
  %641 = vmatprep.subr.mxu0 0.0
  %642 = vmatpush1.msra.mxu0 0.0
  %643 = vmatprep.subr.mxu0 0.0
  %644 = vmatpush1.msra.mxu0 0.0
  %645 = vmatprep.subr.mxu0 0.0
  %646 = vmatpush1.msra.mxu0 0.0
  %647 = vmatprep.subr.mxu0 0.0
  %648 = vmatpush1.msra.mxu0 0.0
  %649 = vmatprep.subr.mxu0 0.0
  %650 = vmatpush1.msra.mxu0 0.0
  %651 = vmatprep.subr.mxu0 0.0
  %652 = vmatpush1.msra.mxu0 0.0
  %653 = vmatprep.subr.mxu0 0.0
  %654 = vmatpush1.msra.mxu0 0.0
  %655 = vmatprep.subr.mxu0 0.0
  %656 = vmatpush1.msra.mxu0 0.0
  %657 = vmatprep.subr.mxu0 0.0
  %658 = vmatpush1.msra.mxu0 0.0
  %659 = vmatprep.subr.mxu0 0.0
  %660 = vmatpush1.msra.mxu0 0.0
  %661 = vmatprep.subr.mxu0 0.0
  %662 = vmatpush1.msra.mxu0 0.0
  %663 = vmatprep.subr.mxu0 0.0
  %664 = vmatpush1.msra.mxu0 0.0
  %665 = vmatprep.mubr.f32.mxu0 0.0
  %666 = vmatmul.mubr.f32.gmra.mrb[0].mxu0 %v599
  %v667 = vpop.f32.mrb[0].mxu0
  %v668 = vadd.f32 %v595, %v667
  %v669 = vpop.f32.mrb[0].mxu0
  %670 = vdwg.mxu0
  %671 = vmatprep.subr.mxu0 0.0
  %672 = vmatpush1.msra.mxu0 %v16
  %673 = vmatprep.subr.mxu0 0.0
  %674 = vmatpush1.msra.mxu0 %v17
  %675 = vmatprep.subr.mxu0 0.0
  %676 = vmatpush1.msra.mxu0 %v18
  %677 = vmatprep.subr.mxu0 0.0
  %678 = vmatpush1.msra.mxu0 %v19
  %679 = vmatprep.subr.mxu0 0.0
  %680 = vmatpush1.msra.mxu0 0.0
  %681 = vmatprep.subr.mxu0 0.0
  %682 = vmatpush1.msra.mxu0 0.0
  %683 = vmatprep.subr.mxu0 0.0
  %684 = vmatpush1.msra.mxu0 0.0
  %685 = vmatprep.subr.mxu0 0.0
  %686 = vmatpush1.msra.mxu0 0.0
  %687 = vmatprep.subr.mxu0 0.0
  %688 = vmatpush1.msra.mxu0 0.0
  %689 = vmatprep.subr.mxu0 0.0
  %690 = vmatpush1.msra.mxu0 0.0
  %691 = vmatprep.subr.mxu0 0.0
  %692 = vmatpush1.msra.mxu0 0.0
  %693 = vmatprep.subr.mxu0 0.0
  %694 = vmatpush1.msra.mxu0 0.0
  %695 = vmatprep.subr.mxu0 0.0
  %696 = vmatpush1.msra.mxu0 0.0
  %697 = vmatprep.subr.mxu0 0.0
  %698 = vmatpush1.msra.mxu0 0.0
  %699 = vmatprep.subr.mxu0 0.0
  %700 = vmatpush1.msra.mxu0 0.0
  %701 = vmatprep.subr.mxu0 0.0
  %702 = vmatpush1.msra.mxu0 0.0
  %703 = vmatprep.subr.mxu0 0.0
  %704 = vmatpush1.msra.mxu0 0.0
  %705 = vmatprep.subr.mxu0 0.0
  %706 = vmatpush1.msra.mxu0 0.0
  %707 = vmatprep.subr.mxu0 0.0
  %708 = vmatpush1.msra.mxu0 0.0
  %709 = vmatprep.subr.mxu0 0.0
  %710 = vmatpush1.msra.mxu0 0.0
  %711 = vmatprep.subr.mxu0 0.0
  %712 = vmatpush1.msra.mxu0 0.0
  %713 = vmatprep.subr.mxu0 0.0
  %714 = vmatpush1.msra.mxu0 0.0
  %715 = vmatprep.subr.mxu0 0.0
  %716 = vmatpush1.msra.mxu0 0.0
  %717 = vmatprep.subr.mxu0 0.0
  %718 = vmatpush1.msra.mxu0 0.0
  %719 = vmatprep.subr.mxu0 0.0
  %720 = vmatpush1.msra.mxu0 0.0
  %721 = vmatprep.subr.mxu0 0.0
  %722 = vmatpush1.msra.mxu0 0.0
  %723 = vmatprep.subr.mxu0 0.0
  %724 = vmatpush1.msra.mxu0 0.0
  %725 = vmatprep.subr.mxu0 0.0
  %726 = vmatpush1.msra.mxu0 0.0
  %727 = vmatprep.subr.mxu0 0.0
  %728 = vmatpush1.msra.mxu0 0.0
  %729 = vmatprep.subr.mxu0 0.0
  %730 = vmatpush1.msra.mxu0 0.0
  %731 = vmatprep.subr.mxu0 0.0
  %732 = vmatpush1.msra.mxu0 0.0
  %733 = vmatprep.subr.mxu0 0.0
  %734 = vmatpush1.msra.mxu0 0.0
  %735 = vmatprep.mubr.f32.mxu0 0.0
  %736 = vmatmul.mubr.f32.gmra.mrb[0].mxu0 %v341
  %v737 = vpop.f32.mrb[0].mxu0
  %v738 = vadd.f32 0.0, %v737
  %v739 = vpop.f32.mrb[0].mxu0
  %740 = vdwg.mxu0
  %v741 = vadd.f32 %v668, %v738
  %v742 = vadd.f32 %v741, %v267
  %v743 = vtanh.pop %v742
  %744 = vmatprep.subr.mxu0 0.0
  %745 = vmatpush1.msra.mxu0 %v24
  %746 = vmatprep.subr.mxu0 0.0
  %747 = vmatpush1.msra.mxu0 %v25
  %748 = vmatprep.subr.mxu0 0.0
  %749 = vmatpush1.msra.mxu0 %v26
  %750 = vmatprep.subr.mxu0 0.0
  %751 = vmatpush1.msra.mxu0 %v27
  %752 = vmatprep.subr.mxu0 0.0
  %753 = vmatpush1.msra.mxu0 0.0
  %754 = vmatprep.subr.mxu0 0.0
  %755 = vmatpush1.msra.mxu0 0.0
  %756 = vmatprep.subr.mxu0 0.0
  %757 = vmatpush1.msra.mxu0 0.0
  %758 = vmatprep.subr.mxu0 0.0
  %759 = vmatpush1.msra.mxu0 0.0
  %760 = vmatprep.subr.mxu0 0.0
  %761 = vmatpush1.msra.mxu0 0.0
  %762 = vmatprep.subr.mxu0 0.0
  %763 = vmatpush1.msra.mxu0 0.0
  %764 = vmatprep.subr.mxu0 0.0
  %765 = vmatpush1.msra.mxu0 0.0
  %766 = vmatprep.subr.mxu0 0.0
  %767 = vmatpush1.msra.mxu0 0.0
  %768 = vmatprep.subr.mxu0 0.0
  %769 = vmatpush1.msra.mxu0 0.0
  %770 = vmatprep.subr.mxu0 0.0
  %771 = vmatpush1.msra.mxu0 0.0
  %772 = vmatprep.subr.mxu0 0.0
  %773 = vmatpush1.msra.mxu0 0.0
  %774 = vmatprep.subr.mxu0 0.0
  %775 = vmatpush1.msra.mxu0 0.0
  %776 = vmatprep.subr.mxu0 0.0
  %777 = vmatpush1.msra.mxu0 0.0
  %778 = vmatprep.subr.mxu0 0.0
  %779 = vmatpush1.msra.mxu0 0.0
  %780 = vmatprep.subr.mxu0 0.0
  %781 = vmatpush1.msra.mxu0 0.0
  %782 = vmatprep.subr.mxu0 0.0
  %783 = vmatpush1.msra.mxu0 0.0
  %784 = vmatprep.subr.mxu0 0.0
  %785 = vmatpush1.msra.mxu0 0.0
  %786 = vmatprep.subr.mxu0 0.0
  %787 = vmatpush1.msra.mxu0 0.0
  %788 = vmatprep.subr.mxu0 0.0
  %789 = vmatpush1.msra.mxu0 0.0
  %790 = vmatprep.subr.mxu0 0.0
  %791 = vmatpush1.msra.mxu0 0.0
  %792 = vmatprep.subr.mxu0 0.0
  %793 = vmatpush1.msra.mxu0 0.0
  %794 = vmatprep.subr.mxu0 0.0
  %795 = vmatpush1.msra.mxu0 0.0
  %796 = vmatprep.subr.mxu0 0.0
  %797 = vmatpush1.msra.mxu0 0.0
  %798 = vmatprep.subr.mxu0 0.0
  %799 = vmatpush1.msra.mxu0 0.0
  %800 = vmatprep.subr.mxu0 0.0
  %801 = vmatpush1.msra.mxu0 0.0
  %802 = vmatprep.subr.mxu0 0.0
  %803 = vmatpush1.msra.mxu0 0.0
  %804 = vmatprep.subr.mxu0 0.0
  %805 = vmatpush1.msra.mxu0 0.0
  %806 = vmatprep.subr.mxu0 0.0
  %807 = vmatpush1.msra.mxu0 0.0
  %808 = vmatprep.mubr.f32.mxu0 0.0
  %809 = vmatmul.mubr.f32.gmra.mrb[0].mxu0 %v424
  %v810 = vpop.f32.mrb[0].mxu0
  %v811 = vadd.f32 0.0, %v810
  %v812 = vpop.f32.mrb[0].mxu0
  %813 = vdwg.mxu0
  %v815 = vsel %vm189, %v743, 0
  %817 = vmatprep.subr.mxu0 0.0
  %818 = vmatpush1.msra.mxu0 %v20
  %819 = vmatprep.subr.mxu0 0.0
  %820 = vmatpush1.msra.mxu0 %v21
  %821 = vmatprep.subr.mxu0 0.0
  %822 = vmatpush1.msra.mxu0 %v22
  %823 = vmatprep.subr.mxu0 0.0
  %824 = vmatpush1.msra.mxu0 %v23
  %825 = vmatprep.subr.mxu0 0.0
  %826 = vmatpush1.msra.mxu0 0.0
  %827 = vmatprep.subr.mxu0 0.0
  %828 = vmatpush1.msra.mxu0 0.0
  %829 = vmatprep.subr.mxu0 0.0
  %830 = vmatpush1.msra.mxu0 0.0
  %831 = vmatprep.subr.mxu0 0.0
  %832 = vmatpush1.msra.mxu0 0.0
  %833 = vmatprep.subr.mxu0 0.0
  %834 = vmatpush1.msra.mxu0 0.0
  %835 = vmatprep.subr.mxu0 0.0
  %836 = vmatpush1.msra.mxu0 0.0
  %837 = vmatprep.subr.mxu0 0.0
  %838 = vmatpush1.msra.mxu0 0.0
  %839 = vmatprep.subr.mxu0 0.0
  %840 = vmatpush1.msra.mxu0 0.0
  %841 = vmatprep.subr.mxu0 0.0
  %842 = vmatpush1.msra.mxu0 0.0
  %843 = vmatprep.subr.mxu0 0.0
  %844 = vmatpush1.msra.mxu0 0.0
  %845 = vmatprep.subr.mxu0 0.0
  %846 = vmatpush1.msra.mxu0 0.0
  %847 = vmatprep.subr.mxu0 0.0
  %848 = vmatpush1.msra.mxu0 0.0
  %849 = vmatprep.subr.mxu0 0.0
  %850 = vmatpush1.msra.mxu0 0.0
  %851 = vmatprep.subr.mxu0 0.0
  %852 = vmatpush1.msra.mxu0 0.0
  %853 = vmatprep.subr.mxu0 0.0
  %854 = vmatpush1.msra.mxu0 0.0
  %855 = vmatprep.subr.mxu0 0.0
  %856 = vmatpush1.msra.mxu0 0.0
  %857 = vmatprep.subr.mxu0 0.0
  %858 = vmatpush1.msra.mxu0 0.0
  %859 = vmatprep.subr.mxu0 0.0
  %860 = vmatpush1.msra.mxu0 0.0
  %861 = vmatprep.subr.mxu0 0.0
  %862 = vmatpush1.msra.mxu0 0.0
  %863 = vmatprep.subr.mxu0 0.0
  %864 = vmatpush1.msra.mxu0 0.0
  %865 = vmatprep.subr.mxu0 0.0
  %866 = vmatpush1.msra.mxu0 0.0
  %867 = vmatprep.subr.mxu0 0.0
  %868 = vmatpush1.msra.mxu0 0.0
  %869 = vmatprep.subr.mxu0 0.0
  %870 = vmatpush1.msra.mxu0 0.0
  %871 = vmatprep.subr.mxu0 0.0
  %872 = vmatpush1.msra.mxu0 0.0
  %873 = vmatprep.subr.mxu0 0.0
  %874 = vmatpush1.msra.mxu0 0.0
  %875 = vmatprep.subr.mxu0 0.0
  %876 = vmatpush1.msra.mxu0 0.0
  %877 = vmatprep.subr.mxu0 0.0
  %878 = vmatpush1.msra.mxu0 0.0
  %879 = vmatprep.subr.mxu0 0.0
  %880 = vmatpush1.msra.mxu0 0.0
  %881 = vmatprep.mubr.f32.mxu0 0.0
  %882 = vmatmul.mubr.f32.gmra.mrb[0].mxu0 %v815
  %v883 = vpop.f32.mrb[0].mxu0
  %v884 = vadd.f32 %v811, %v883
  %v885 = vpop.f32.mrb[0].mxu0
  %886 = vdwg.mxu0
  %v887 = vadd.f32 %v884, %v416
  %v888 = vtanh.pop %v887
  %v890 = vsel %vm189, %v888, 0
  %892 = vmatprep.subr.mxu0 0.0
  %893 = vmatpush1.msra.mxu0 %v28
  %894 = vmatprep.subr.mxu0 0.0
  %895 = vmatpush1.msra.mxu0 %v29
  %896 = vmatprep.subr.mxu0 0.0
  %897 = vmatpush1.msra.mxu0 %v30
  %898 = vmatprep.subr.mxu0 0.0
  %899 = vmatpush1.msra.mxu0 %v31
  %900 = vmatprep.subr.mxu0 0.0
  %901 = vmatpush1.msra.mxu0 0.0
  %902 = vmatprep.subr.mxu0 0.0
  %903 = vmatpush1.msra.mxu0 0.0
  %904 = vmatprep.subr.mxu0 0.0
  %905 = vmatpush1.msra.mxu0 0.0
  %906 = vmatprep.subr.mxu0 0.0
  %907 = vmatpush1.msra.mxu0 0.0
  %908 = vmatprep.subr.mxu0 0.0
  %909 = vmatpush1.msra.mxu0 0.0
  %910 = vmatprep.subr.mxu0 0.0
  %911 = vmatpush1.msra.mxu0 0.0
  %912 = vmatprep.subr.mxu0 0.0
  %913 = vmatpush1.msra.mxu0 0.0
  %914 = vmatprep.subr.mxu0 0.0
  %915 = vmatpush1.msra.mxu0 0.0
  %916 = vmatprep.subr.mxu0 0.0
  %917 = vmatpush1.msra.mxu0 0.0
  %918 = vmatprep.subr.mxu0 0.0
  %919 = vmatpush1.msra.mxu0 0.0
  %920 = vmatprep.subr.mxu0 0.0
  %921 = vmatpush1.msra.mxu0 0.0
  %922 = vmatprep.subr.mxu0 0.0
  %923 = vmatpush1.msra.mxu0 0.0
  %924 = vmatprep.subr.mxu0 0.0
  %925 = vmatpush1.msra.mxu0 0.0
  %926 = vmatprep.subr.mxu0 0.0
  %927 = vmatpush1.msra.mxu0 0.0
  %928 = vmatprep.subr.mxu0 0.0
  %929 = vmatpush1.msra.mxu0 0.0
  %930 = vmatprep.subr.mxu0 0.0
  %931 = vmatpush1.msra.mxu0 0.0
  %932 = vmatprep.subr.mxu0 0.0
  %933 = vmatpush1.msra.mxu0 0.0
  %934 = vmatprep.subr.mxu0 0.0
  %935 = vmatpush1.msra.mxu0 0.0
  %936 = vmatprep.subr.mxu0 0.0
  %937 = vmatpush1.msra.mxu0 0.0
  %938 = vmatprep.subr.mxu0 0.0
  %939 = vmatpush1.msra.mxu0 0.0
  %940 = vmatprep.subr.mxu0 0.0
  %941 = vmatpush1.msra.mxu0 0.0
  %942 = vmatprep.subr.mxu0 0.0
  %943 = vmatpush1.msra.mxu0 0.0
  %944 = vmatprep.subr.mxu0 0.0
  %945 = vmatpush1.msra.mxu0 0.0
  %946 = vmatprep.subr.mxu0 0.0
  %947 = vmatpush1.msra.mxu0 0.0
  %948 = vmatprep.subr.mxu0 0.0
  %949 = vmatpush1.msra.mxu0 0.0
  %950 = vmatprep.subr.mxu0 0.0
  %951 = vmatpush1.msra.mxu0 0.0
  %952 = vmatprep.subr.mxu0 0.0
  %953 = vmatpush1.msra.mxu0 0.0
  %954 = vmatprep.subr.mxu0 0.0
  %955 = vmatpush1.msra.mxu0 0.0
  %956 = vmatprep.mubr.f32.mxu0 0.0
  %957 = vmatmul.mubr.f32.gmra.mrb[0].mxu0 %v890
  %v958 = vpop.f32.mrb[0].mxu0
  %v959 = vadd.f32 %v422, %v958
  %v960 = vpop.f32.mrb[0].mxu0
  %961 = vdwg.mxu0
  %962 = vrot.lane.b32.xlu0 %v524, 3
  %v963 = vpop.permute.xlu0 %962
  %v965 = vadd.f32 %v959, %v963
  %v966 = vsel %vm500, %v959, -inf
  %967 = vmax.xlane.f32.xlu0 %v966
  %v968 = vpop.xlane.xlu0 %967
  %v969 = vsub.f32 %v959, %v968
  %v970 = vmul.f32 %v969, 1.442695
  %v971 = vpow.pop %v970
  %v972 = vsel %vm500, %v971, 0.0
  %973 = vadd.xlane.f32.xlu0 %v972
  %v974 = vpop.xlane.xlu0 %973
  %v975 = vrcp.pop %v974
  %v976 = vmul.f32 %v971, %v975
  %s977 = scalar_lea.vmem %s3, 2
  %978 = vst.msk [vmem:[%s977] sm:$0x3] %vm500, %v976
  %s979 = scalar_lea.vmem %s0, 4
  %v980 = vld [vmem:[%s979] sm:$0x3]
  %s981 = scalar_lea.vmem %s1, 4
  %v982 = vld [vmem:[%s981] sm:$0x3]
  %vm983 = vcmp.ne.f32.partialorder %v980, %v980
  %v984 = vsel %vm983, %v976, %v980
  %vm985 = vcmp.ne.f32.partialorder %v982, %v982
  %987 = vrot.lane.b32.xlu0 %v965, 125
  %v988 = vpop.permute.xlu0 %987
  %v990 = vsel %vm985, %v988, %v982
  %v992 = vsel %vm37, %v990, 0
  %994 = vmatprep.subr.mxu0 0.0
  %995 = vmatpush1.msra.mxu0 %v15
  %996 = vmatprep.subr.mxu0 0.0
  %997 = vmatpush1.msra.mxu0 0.0
  %998 = vmatprep.subr.mxu0 0.0
  %999 = vmatpush1.msra.mxu0 0.0
  %1000 = vmatprep.subr.mxu0 0.0
  %1001 = vmatpush1.msra.mxu0 0.0
  %1002 = vmatprep.subr.mxu0 0.0
  %1003 = vmatpush1.msra.mxu0 0.0
  %1004 = vmatprep.subr.mxu0 0.0
  %1005 = vmatpush1.msra.mxu0 0.0
  %1006 = vmatprep.subr.mxu0 0.0
  %1007 = vmatpush1.msra.mxu0 0.0
  %1008 = vmatprep.subr.mxu0 0.0
  %1009 = vmatpush1.msra.mxu0 0.0
  %1010 = vmatprep.subr.mxu0 0.0
  %1011 = vmatpush1.msra.mxu0 0.0
  %1012 = vmatprep.subr.mxu0 0.0
  %1013 = vmatpush1.msra.mxu0 0.0
  %1014 = vmatprep.subr.mxu0 0.0
  %1015 = vmatpush1.msra.mxu0 0.0
  %1016 = vmatprep.subr.mxu0 0.0
  %1017 = vmatpush1.msra.mxu0 0.0
  %1018 = vmatprep.subr.mxu0 0.0
  %1019 = vmatpush1.msra.mxu0 0.0
  %1020 = vmatprep.subr.mxu0 0.0
  %1021 = vmatpush1.msra.mxu0 0.0
  %1022 = vmatprep.subr.mxu0 0.0
  %1023 = vmatpush1.msra.mxu0 0.0
  %1024 = vmatprep.subr.mxu0 0.0
  %1025 = vmatpush1.msra.mxu0 0.0
  %1026 = vmatprep.subr.mxu0 0.0
  %1027 = vmatpush1.msra.mxu0 0.0
  %1028 = vmatprep.subr.mxu0 0.0
  %1029 = vmatpush1.msra.mxu0 0.0
  %1030 = vmatprep.subr.mxu0 0.0
  %1031 = vmatpush1.msra.mxu0 0.0
  %1032 = vmatprep.subr.mxu0 0.0
  %1033 = vmatpush1.msra.mxu0 0.0
  %1034 = vmatprep.subr.mxu0 0.0
  %1035 = vmatpush1.msra.mxu0 0.0
  %1036 = vmatprep.subr.mxu0 0.0
  %1037 = vmatpush1.msra.mxu0 0.0
  %1038 = vmatprep.subr.mxu0 0.0
  %1039 = vmatpush1.msra.mxu0 0.0
  %1040 = vmatprep.subr.mxu0 0.0
  %1041 = vmatpush1.msra.mxu0 0.0
  %1042 = vmatprep.subr.mxu0 0.0
  %1043 = vmatpush1.msra.mxu0 0.0
  %1044 = vmatprep.subr.mxu0 0.0
  %1045 = vmatpush1.msra.mxu0 0.0
  %1046 = vmatprep.subr.mxu0 0.0
  %1047 = vmatpush1.msra.mxu0 0.0
  %1048 = vmatprep.subr.mxu0 0.0
  %1049 = vmatpush1.msra.mxu0 0.0
  %1050 = vmatprep.subr.mxu0 0.0
  %1051 = vmatpush1.msra.mxu0 0.0
  %1052 = vmatprep.subr.mxu0 0.0
  %1053 = vmatpush1.msra.mxu0 0.0
  %1054 = vmatprep.subr.mxu0 0.0
  %1055 = vmatpush1.msra.mxu0 0.0
  %1056 = vmatprep.subr.mxu0 0.0
  %1057 = vmatpush1.msra.mxu0 0.0
  %1058 = vmatprep.mubr.f32.mxu0 0.0
  %1059 = vmatmul.mubr.f32.gmra.mrb[0].mxu0 %v992
  %v1060 = vpop.f32.mrb[0].mxu0
  %v1061 = vadd.f32 0.0, %v1060
  %v1062 = vpop.f32.mrb[0].mxu0
  %1063 = vdwg.mxu0
  %v1065 = vsel %vm111, %v984, 0
  %1067 = vmatprep.subr.mxu0 0.0
  %1068 = vmatpush1.msra.mxu0 %v117
  %1069 = vmatprep.subr.mxu0 0.0
  %1070 = vmatpush1.msra.mxu0 0.0
  %1071 = vmatprep.subr.mxu0 0.0
  %1072 = vmatpush1.msra.mxu0 0.0
  %1073 = vmatprep.subr.mxu0 0.0
  %1074 = vmatpush1.msra.mxu0 0.0
  %1075 = vmatprep.subr.mxu0 0.0
  %1076 = vmatpush1.msra.mxu0 0.0
  %1077 = vmatprep.subr.mxu0 0.0
  %1078 = vmatpush1.msra.mxu0 0.0
  %1079 = vmatprep.subr.mxu0 0.0
  %1080 = vmatpush1.msra.mxu0 0.0
  %1081 = vmatprep.subr.mxu0 0.0
  %1082 = vmatpush1.msra.mxu0 0.0
  %1083 = vmatprep.subr.mxu0 0.0
  %1084 = vmatpush1.msra.mxu0 0.0
  %1085 = vmatprep.subr.mxu0 0.0
  %1086 = vmatpush1.msra.mxu0 0.0
  %1087 = vmatprep.subr.mxu0 0.0
  %1088 = vmatpush1.msra.mxu0 0.0
  %1089 = vmatprep.subr.mxu0 0.0
  %1090 = vmatpush1.msra.mxu0 0.0
  %1091 = vmatprep.subr.mxu0 0.0
  %1092 = vmatpush1.msra.mxu0 0.0
  %1093 = vmatprep.subr.mxu0 0.0
  %1094 = vmatpush1.msra.mxu0 0.0
  %1095 = vmatprep.subr.mxu0 0.0
  %1096 = vmatpush1.msra.mxu0 0.0
  %1097 = vmatprep.subr.mxu0 0.0
  %1098 = vmatpush1.msra.mxu0 0.0
  %1099 = vmatprep.subr.mxu0 0.0
  %1100 = vmatpush1.msra.mxu0 0.0
  %1101 = vmatprep.subr.mxu0 0.0
  %1102 = vmatpush1.msra.mxu0 0.0
  %1103 = vmatprep.subr.mxu0 0.0
  %1104 = vmatpush1.msra.mxu0 0.0
  %1105 = vmatprep.subr.mxu0 0.0
  %1106 = vmatpush1.msra.mxu0 0.0
  %1107 = vmatprep.subr.mxu0 0.0
  %1108 = vmatpush1.msra.mxu0 0.0
  %1109 = vmatprep.subr.mxu0 0.0
  %1110 = vmatpush1.msra.mxu0 0.0
  %1111 = vmatprep.subr.mxu0 0.0
  %1112 = vmatpush1.msra.mxu0 0.0
  %1113 = vmatprep.subr.mxu0 0.0
  %1114 = vmatpush1.msra.mxu0 0.0
  %1115 = vmatprep.subr.mxu0 0.0
  %1116 = vmatpush1.msra.mxu0 0.0
  %1117 = vmatprep.subr.mxu0 0.0
  %1118 = vmatpush1.msra.mxu0 0.0
  %1119 = vmatprep.subr.mxu0 0.0
  %1120 = vmatpush1.msra.mxu0 0.0
  %1121 = vmatprep.subr.mxu0 0.0
  %1122 = vmatpush1.msra.mxu0 0.0
  %1123 = vmatprep.subr.mxu0 0.0
  %1124 = vmatpush1.msra.mxu0 0.0
  %1125 = vmatprep.subr.mxu0 0.0
  %1126 = vmatpush1.msra.mxu0 0.0
  %1127 = vmatprep.subr.mxu0 0.0
  %1128 = vmatpush1.msra.mxu0 0.0
  %1129 = vmatprep.subr.mxu0 0.0
  %1130 = vmatpush1.msra.mxu0 0.0
  %1131 = vmatprep.mubr.f32.mxu0 0.0
  %1132 = vmatmul.mubr.f32.gmra.mrb[0].mxu0 %v1065
  %v1133 = vpop.f32.mrb[0].mxu0
  %v1134 = vadd.f32 %v1061, %v1133
  %v1135 = vpop.f32.mrb[0].mxu0
  %1136 = vdwg.mxu0
  %1137 = vmatprep.subr.mxu0 0.0
  %1138 = vmatpush1.msra.mxu0 %v16
  %1139 = vmatprep.subr.mxu0 0.0
  %1140 = vmatpush1.msra.mxu0 %v17
  %1141 = vmatprep.subr.mxu0 0.0
  %1142 = vmatpush1.msra.mxu0 %v18
  %1143 = vmatprep.subr.mxu0 0.0
  %1144 = vmatpush1.msra.mxu0 %v19
  %1145 = vmatprep.subr.mxu0 0.0
  %1146 = vmatpush1.msra.mxu0 0.0
  %1147 = vmatprep.subr.mxu0 0.0
  %1148 = vmatpush1.msra.mxu0 0.0
  %1149 = vmatprep.subr.mxu0 0.0
  %1150 = vmatpush1.msra.mxu0 0.0
  %1151 = vmatprep.subr.mxu0 0.0
  %1152 = vmatpush1.msra.mxu0 0.0
  %1153 = vmatprep.subr.mxu0 0.0
  %1154 = vmatpush1.msra.mxu0 0.0
  %1155 = vmatprep.subr.mxu0 0.0
  %1156 = vmatpush1.msra.mxu0 0.0
  %1157 = vmatprep.subr.mxu0 0.0
  %1158 = vmatpush1.msra.mxu0 0.0
  %1159 = vmatprep.subr.mxu0 0.0
  %1160 = vmatpush1.msra.mxu0 0.0
  %1161 = vmatprep.subr.mxu0 0.0
  %1162 = vmatpush1.msra.mxu0 0.0
  %1163 = vmatprep.subr.mxu0 0.0
  %1164 = vmatpush1.msra.mxu0 0.0
  %1165 = vmatprep.subr.mxu0 0.0
  %1166 = vmatpush1.msra.mxu0 0.0
  %1167 = vmatprep.subr.mxu0 0.0
  %1168 = vmatpush1.msra.mxu0 0.0
  %1169 = vmatprep.subr.mxu0 0.0
  %1170 = vmatpush1.msra.mxu0 0.0
  %1171 = vmatprep.subr.mxu0 0.0
  %1172 = vmatpush1.msra.mxu0 0.0
  %1173 = vmatprep.subr.mxu0 0.0
  %1174 = vmatpush1.msra.mxu0 0.0
  %1175 = vmatprep.subr.mxu0 0.0
  %1176 = vmatpush1.msra.mxu0 0.0
  %1177 = vmatprep.subr.mxu0 0.0
  %1178 = vmatpush1.msra.mxu0 0.0
  %1179 = vmatprep.subr.mxu0 0.0
  %1180 = vmatpush1.msra.mxu0 0.0
  %1181 = vmatprep.subr.mxu0 0.0
  %1182 = vmatpush1.msra.mxu0 0.0
  %1183 = vmatprep.subr.mxu0 0.0
  %1184 = vmatpush1.msra.mxu0 0.0
  %1185 = vmatprep.subr.mxu0 0.0
  %1186 = vmatpush1.msra.mxu0 0.0
  %1187 = vmatprep.subr.mxu0 0.0
  %1188 = vmatpush1.msra.mxu0 0.0
  %1189 = vmatprep.subr.mxu0 0.0
  %1190 = vmatpush1.msra.mxu0 0.0
  %1191 = vmatprep.subr.mxu0 0.0
  %1192 = vmatpush1.msra.mxu0 0.0
  %1193 = vmatprep.subr.mxu0 0.0
  %1194 = vmatpush1.msra.mxu0 0.0
  %1195 = vmatprep.subr.mxu0 0.0
  %1196 = vmatpush1.msra.mxu0 0.0
  %1197 = vmatprep.subr.mxu0 0.0
  %1198 = vmatpush1.msra.mxu0 0.0
  %1199 = vmatprep.subr.mxu0 0.0
  %1200 = vmatpush1.msra.mxu0 0.0
  %1201 = vmatprep.mubr.f32.mxu0 0.0
  %1202 = vmatmul.mubr.f32.gmra.mrb[0].mxu0 %v815
  %v1203 = vpop.f32.mrb[0].mxu0
  %v1204 = vadd.f32 0.0, %v1203
  %v1205 = vpop.f32.mrb[0].mxu0
  %1206 = vdwg.mxu0
  %v1207 = vadd.f32 %v1134, %v1204
  %v1208 = vadd.f32 %v1207, %v267
  %v1209 = vtanh.pop %v1208
  %1210 = vmatprep.subr.mxu0 0.0
  %1211 = vmatpush1.msra.mxu0 %v24
  %1212 = vmatprep.subr.mxu0 0.0
  %1213 = vmatpush1.msra.mxu0 %v25
  %1214 = vmatprep.subr.mxu0 0.0
  %1215 = vmatpush1.msra.mxu0 %v26
  %1216 = vmatprep.subr.mxu0 0.0
  %1217 = vmatpush1.msra.mxu0 %v27
  %1218 = vmatprep.subr.mxu0 0.0
  %1219 = vmatpush1.msra.mxu0 0.0
  %1220 = vmatprep.subr.mxu0 0.0
  %1221 = vmatpush1.msra.mxu0 0.0
  %1222 = vmatprep.subr.mxu0 0.0
  %1223 = vmatpush1.msra.mxu0 0.0
  %1224 = vmatprep.subr.mxu0 0.0
  %1225 = vmatpush1.msra.mxu0 0.0
  %1226 = vmatprep.subr.mxu0 0.0
  %1227 = vmatpush1.msra.mxu0 0.0
  %1228 = vmatprep.subr.mxu0 0.0
  %1229 = vmatpush1.msra.mxu0 0.0
  %1230 = vmatprep.subr.mxu0 0.0
  %1231 = vmatpush1.msra.mxu0 0.0
  %1232 = vmatprep.subr.mxu0 0.0
  %1233 = vmatpush1.msra.mxu0 0.0
  %1234 = vmatprep.subr.mxu0 0.0
  %1235 = vmatpush1.msra.mxu0 0.0
  %1236 = vmatprep.subr.mxu0 0.0
  %1237 = vmatpush1.msra.mxu0 0.0
  %1238 = vmatprep.subr.mxu0 0.0
  %1239 = vmatpush1.msra.mxu0 0.0
  %1240 = vmatprep.subr.mxu0 0.0
  %1241 = vmatpush1.msra.mxu0 0.0
  %1242 = vmatprep.subr.mxu0 0.0
  %1243 = vmatpush1.msra.mxu0 0.0
  %1244 = vmatprep.subr.mxu0 0.0
  %1245 = vmatpush1.msra.mxu0 0.0
  %1246 = vmatprep.subr.mxu0 0.0
  %1247 = vmatpush1.msra.mxu0 0.0
  %1248 = vmatprep.subr.mxu0 0.0
  %1249 = vmatpush1.msra.mxu0 0.0
  %1250 = vmatprep.subr.mxu0 0.0
  %1251 = vmatpush1.msra.mxu0 0.0
  %1252 = vmatprep.subr.mxu0 0.0
  %1253 = vmatpush1.msra.mxu0 0.0
  %1254 = vmatprep.subr.mxu0 0.0
  %1255 = vmatpush1.msra.mxu0 0.0
  %1256 = vmatprep.subr.mxu0 0.0
  %1257 = vmatpush1.msra.mxu0 0.0
  %1258 = vmatprep.subr.mxu0 0.0
  %1259 = vmatpush1.msra.mxu0 0.0
  %1260 = vmatprep.subr.mxu0 0.0
  %1261 = vmatpush1.msra.mxu0 0.0
  %1262 = vmatprep.subr.mxu0 0.0
  %1263 = vmatpush1.msra.mxu0 0.0
  %1264 = vmatprep.subr.mxu0 0.0
  %1265 = vmatpush1.msra.mxu0 0.0
  %1266 = vmatprep.subr.mxu0 0.0
  %1267 = vmatpush1.msra.mxu0 0.0
  %1268 = vmatprep.subr.mxu0 0.0
  %1269 = vmatpush1.msra.mxu0 0.0
  %1270 = vmatprep.subr.mxu0 0.0
  %1271 = vmatpush1.msra.mxu0 0.0
  %1272 = vmatprep.subr.mxu0 0.0
  %1273 = vmatpush1.msra.mxu0 0.0
  %1274 = vmatprep.mubr.f32.mxu0 0.0
  %1275 = vmatmul.mubr.f32.gmra.mrb[0].mxu0 %v890
  %v1276 = vpop.f32.mrb[0].mxu0
  %v1277 = vadd.f32 0.0, %v1276
  %v1278 = vpop.f32.mrb[0].mxu0
  %1279 = vdwg.mxu0
  %v1281 = vsel %vm189, %v1209, 0
  %1283 = vmatprep.subr.mxu0 0.0
  %1284 = vmatpush1.msra.mxu0 %v20
  %1285 = vmatprep.subr.mxu0 0.0
  %1286 = vmatpush1.msra.mxu0 %v21
  %1287 = vmatprep.subr.mxu0 0.0
  %1288 = vmatpush1.msra.mxu0 %v22
  %1289 = vmatprep.subr.mxu0 0.0
  %1290 = vmatpush1.msra.mxu0 %v23
  %1291 = vmatprep.subr.mxu0 0.0
  %1292 = vmatpush1.msra.mxu0 0.0
  %1293 = vmatprep.subr.mxu0 0.0
  %1294 = vmatpush1.msra.mxu0 0.0
  %1295 = vmatprep.subr.mxu0 0.0
  %1296 = vmatpush1.msra.mxu0 0.0
  %1297 = vmatprep.subr.mxu0 0.0
  %1298 = vmatpush1.msra.mxu0 0.0
  %1299 = vmatprep.subr.mxu0 0.0
  %1300 = vmatpush1.msra.mxu0 0.0
  %1301 = vmatprep.subr.mxu0 0.0
  %1302 = vmatpush1.msra.mxu0 0.0
  %1303 = vmatprep.subr.mxu0 0.0
  %1304 = vmatpush1.msra.mxu0 0.0
  %1305 = vmatprep.subr.mxu0 0.0
  %1306 = vmatpush1.msra.mxu0 0.0
  %1307 = vmatprep.subr.mxu0 0.0
  %1308 = vmatpush1.msra.mxu0 0.0
  %1309 = vmatprep.subr.mxu0 0.0
  %1310 = vmatpush1.msra.mxu0 0.0
  %1311 = vmatprep.subr.mxu0 0.0
  %1312 = vmatpush1.msra.mxu0 0.0
  %1313 = vmatprep.subr.mxu0 0.0
  %1314 = vmatpush1.msra.mxu0 0.0
  %1315 = vmatprep.subr.mxu0 0.0
  %1316 = vmatpush1.msra.mxu0 0.0
  %1317 = vmatprep.subr.mxu0 0.0
  %1318 = vmatpush1.msra.mxu0 0.0
  %1319 = vmatprep.subr.mxu0 0.0
  %1320 = vmatpush1.msra.mxu0 0.0
  %1321 = vmatprep.subr.mxu0 0.0
  %1322 = vmatpush1.msra.mxu0 0.0
  %1323 = vmatprep.subr.mxu0 0.0
  %1324 = vmatpush1.msra.mxu0 0.0
  %1325 = vmatprep.subr.mxu0 0.0
  %1326 = vmatpush1.msra.mxu0 0.0
  %1327 = vmatprep.subr.mxu0 0.0
  %1328 = vmatpush1.msra.mxu0 0.0
  %1329 = vmatprep.subr.mxu0 0.0
  %1330 = vmatpush1.msra.mxu0 0.0
  %1331 = vmatprep.subr.mxu0 0.0
  %1332 = vmatpush1.msra.mxu0 0.0
  %1333 = vmatprep.subr.mxu0 0.0
  %1334 = vmatpush1.msra.mxu0 0.0
  %1335 = vmatprep.subr.mxu0 0.0
  %1336 = vmatpush1.msra.mxu0 0.0
  %1337 = vmatprep.subr.mxu0 0.0
  %1338 = vmatpush1.msra.mxu0 0.0
  %1339 = vmatprep.subr.mxu0 0.0
  %1340 = vmatpush1.msra.mxu0 0.0
  %1341 = vmatprep.subr.mxu0 0.0
  %1342 = vmatpush1.msra.mxu0 0.0
  %1343 = vmatprep.subr.mxu0 0.0
  %1344 = vmatpush1.msra.mxu0 0.0
  %1345 = vmatprep.subr.mxu0 0.0
  %1346 = vmatpush1.msra.mxu0 0.0
  %1347 = vmatprep.mubr.f32.mxu0 0.0
  %1348 = vmatmul.mubr.f32.gmra.mrb[0].mxu0 %v1281
  %v1349 = vpop.f32.mrb[0].mxu0
  %v1350 = vadd.f32 %v1277, %v1349
  %v1351 = vpop.f32.mrb[0].mxu0
  %1352 = vdwg.mxu0
  %v1353 = vadd.f32 %v1350, %v416
  %v1354 = vtanh.pop %v1353
  %v1356 = vsel %vm189, %v1354, 0
  %1358 = vmatprep.subr.mxu0 0.0
  %1359 = vmatpush1.msra.mxu0 %v28
  %1360 = vmatprep.subr.mxu0 0.0
  %1361 = vmatpush1.msra.mxu0 %v29
  %1362 = vmatprep.subr.mxu0 0.0
  %1363 = vmatpush1.msra.mxu0 %v30
  %1364 = vmatprep.subr.mxu0 0.0
  %1365 = vmatpush1.msra.mxu0 %v31
  %1366 = vmatprep.subr.mxu0 0.0
  %1367 = vmatpush1.msra.mxu0 0.0
  %1368 = vmatprep.subr.mxu0 0.0
  %1369 = vmatpush1.msra.mxu0 0.0
  %1370 = vmatprep.subr.mxu0 0.0
  %1371 = vmatpush1.msra.mxu0 0.0
  %1372 = vmatprep.subr.mxu0 0.0
  %1373 = vmatpush1.msra.mxu0 0.0
  %1374 = vmatprep.subr.mxu0 0.0
  %1375 = vmatpush1.msra.mxu0 0.0
  %1376 = vmatprep.subr.mxu0 0.0
  %1377 = vmatpush1.msra.mxu0 0.0
  %1378 = vmatprep.subr.mxu0 0.0
  %1379 = vmatpush1.msra.mxu0 0.0
  %1380 = vmatprep.subr.mxu0 0.0
  %1381 = vmatpush1.msra.mxu0 0.0
  %1382 = vmatprep.subr.mxu0 0.0
  %1383 = vmatpush1.msra.mxu0 0.0
  %1384 = vmatprep.subr.mxu0 0.0
  %1385 = vmatpush1.msra.mxu0 0.0
  %1386 = vmatprep.subr.mxu0 0.0
  %1387 = vmatpush1.msra.mxu0 0.0
  %1388 = vmatprep.subr.mxu0 0.0
  %1389 = vmatpush1.msra.mxu0 0.0
  %1390 = vmatprep.subr.mxu0 0.0
  %1391 = vmatpush1.msra.mxu0 0.0
  %1392 = vmatprep.subr.mxu0 0.0
  %1393 = vmatpush1.msra.mxu0 0.0
  %1394 = vmatprep.subr.mxu0 0.0
  %1395 = vmatpush1.msra.mxu0 0.0
  %1396 = vmatprep.subr.mxu0 0.0
  %1397 = vmatpush1.msra.mxu0 0.0
  %1398 = vmatprep.subr.mxu0 0.0
  %1399 = vmatpush1.msra.mxu0 0.0
  %1400 = vmatprep.subr.mxu0 0.0
  %1401 = vmatpush1.msra.mxu0 0.0
  %1402 = vmatprep.subr.mxu0 0.0
  %1403 = vmatpush1.msra.mxu0 0.0
  %1404 = vmatprep.subr.mxu0 0.0
  %1405 = vmatpush1.msra.mxu0 0.0
  %1406 = vmatprep.subr.mxu0 0.0
  %1407 = vmatpush1.msra.mxu0 0.0
  %1408 = vmatprep.subr.mxu0 0.0
  %1409 = vmatpush1.msra.mxu0 0.0
  %1410 = vmatprep.subr.mxu0 0.0
  %1411 = vmatpush1.msra.mxu0 0.0
  %1412 = vmatprep.subr.mxu0 0.0
  %1413 = vmatpush1.msra.mxu0 0.0
  %1414 = vmatprep.subr.mxu0 0.0
  %1415 = vmatpush1.msra.mxu0 0.0
  %1416 = vmatprep.subr.mxu0 0.0
  %1417 = vmatpush1.msra.mxu0 0.0
  %1418 = vmatprep.subr.mxu0 0.0
  %1419 = vmatpush1.msra.mxu0 0.0
  %1420 = vmatprep.subr.mxu0 0.0
  %1421 = vmatpush1.msra.mxu0 0.0
  %1422 = vmatprep.mubr.f32.mxu0 0.0
  %1423 = vmatmul.mubr.f32.gmra.mrb[0].mxu0 %v1356
  %v1424 = vpop.f32.mrb[0].mxu0
  %v1425 = vadd.f32 %v422, %v1424
  %v1426 = vpop.f32.mrb[0].mxu0
  %1427 = vdwg.mxu0
  %1428 = vrot.lane.b32.xlu0 %v990, 3
  %v1429 = vpop.permute.xlu0 %1428
  %v1431 = vadd.f32 %v1425, %v1429
  %v1432 = vsel %vm500, %v1425, -inf
  %1433 = vmax.xlane.f32.xlu0 %v1432
  %v1434 = vpop.xlane.xlu0 %1433
  %v1435 = vsub.f32 %v1425, %v1434
  %v1436 = vmul.f32 %v1435, 1.442695
  %v1437 = vpow.pop %v1436
  %v1438 = vsel %vm500, %v1437, 0.0
  %1439 = vadd.xlane.f32.xlu0 %v1438
  %v1440 = vpop.xlane.xlu0 %1439
  %v1441 = vrcp.pop %v1440
  %v1442 = vmul.f32 %v1437, %v1441
  %s1443 = scalar_lea.vmem %s3, 4
  %1444 = vst.msk [vmem:[%s1443] sm:$0x3] %vm500, %v1442
  %s1445 = scalar_lea.vmem %s0, 6
  %v1446 = vld [vmem:[%s1445] sm:$0x3]
  %s1447 = scalar_lea.vmem %s1, 6
  %v1448 = vld [vmem:[%s1447] sm:$0x3]
  %vm1449 = vcmp.ne.f32.partialorder %v1446, %v1446
  %v1450 = vsel %vm1449, %v1442, %v1446
  %vm1451 = vcmp.ne.f32.partialorder %v1448, %v1448
  %1453 = vrot.lane.b32.xlu0 %v1431, 125
  %v1454 = vpop.permute.xlu0 %1453
  %v1456 = vsel %vm1451, %v1454, %v1448
  %v1458 = vsel %vm37, %v1456, 0
  %1460 = vmatprep.subr.mxu0 0.0
  %1461 = vmatpush1.msra.mxu0 %v15
  %1462 = vmatprep.subr.mxu0 0.0
  %1463 = vmatpush1.msra.mxu0 0.0
  %1464 = vmatprep.subr.mxu0 0.0
  %1465 = vmatpush1.msra.mxu0 0.0
  %1466 = vmatprep.subr.mxu0 0.0
  %1467 = vmatpush1.msra.mxu0 0.0
  %1468 = vmatprep.subr.mxu0 0.0
  %1469 = vmatpush1.msra.mxu0 0.0
  %1470 = vmatprep.subr.mxu0 0.0
  %1471 = vmatpush1.msra.mxu0 0.0
  %1472 = vmatprep.subr.mxu0 0.0
  %1473 = vmatpush1.msra.mxu0 0.0
  %1474 = vmatprep.subr.mxu0 0.0
  %1475 = vmatpush1.msra.mxu0 0.0
  %1476 = vmatprep.subr.mxu0 0.0
  %1477 = vmatpush1.msra.mxu0 0.0
  %1478 = vmatprep.subr.mxu0 0.0
  %1479 = vmatpush1.msra.mxu0 0.0
  %1480 = vmatprep.subr.mxu0 0.0
  %1481 = vmatpush1.msra.mxu0 0.0
  %1482 = vmatprep.subr.mxu0 0.0
  %1483 = vmatpush1.msra.mxu0 0.0
  %1484 = vmatprep.subr.mxu0 0.0
  %1485 = vmatpush1.msra.mxu0 0.0
  %1486 = vmatprep.subr.mxu0 0.0
  %1487 = vmatpush1.msra.mxu0 0.0
  %1488 = vmatprep.subr.mxu0 0.0
  %1489 = vmatpush1.msra.mxu0 0.0
  %1490 = vmatprep.subr.mxu0 0.0
  %1491 = vmatpush1.msra.mxu0 0.0
  %1492 = vmatprep.subr.mxu0 0.0
  %1493 = vmatpush1.msra.mxu0 0.0
  %1494 = vmatprep.subr.mxu0 0.0
  %1495 = vmatpush1.msra.mxu0 0.0
  %1496 = vmatprep.subr.mxu0 0.0
  %1497 = vmatpush1.msra.mxu0 0.0
  %1498 = vmatprep.subr.mxu0 0.0
  %1499 = vmatpush1.msra.mxu0 0.0
  %1500 = vmatprep.subr.mxu0 0.0
  %1501 = vmatpush1.msra.mxu0 0.0
  %1502 = vmatprep.subr.mxu0 0.0
  %1503 = vmatpush1.msra.mxu0 0.0
  %1504 = vmatprep.subr.mxu0 0.0
  %1505 = vmatpush1.msra.mxu0 0.0
  %1506 = vmatprep.subr.mxu0 0.0
  %1507 = vmatpush1.msra.mxu0 0.0
  %1508 = vmatprep.subr.mxu0 0.0
  %1509 = vmatpush1.msra.mxu0 0.0
  %1510 = vmatprep.subr.mxu0 0.0
  %1511 = vmatpush1.msra.mxu0 0.0
  %1512 = vmatprep.subr.mxu0 0.0
  %1513 = vmatpush1.msra.mxu0 0.0
  %1514 = vmatprep.subr.mxu0 0.0
  %1515 = vmatpush1.msra.mxu0 0.0
  %1516 = vmatprep.subr.mxu0 0.0
  %1517 = vmatpush1.msra.mxu0 0.0
  %1518 = vmatprep.subr.mxu0 0.0
  %1519 = vmatpush1.msra.mxu0 0.0
  %1520 = vmatprep.subr.mxu0 0.0
  %1521 = vmatpush1.msra.mxu0 0.0
  %1522 = vmatprep.subr.mxu0 0.0
  %1523 = vmatpush1.msra.mxu0 0.0
  %1524 = vmatprep.mubr.f32.mxu0 0.0
  %1525 = vmatmul.mubr.f32.gmra.mrb[0].mxu0 %v1458
  %v1526 = vpop.f32.mrb[0].mxu0
  %v1527 = vadd.f32 0.0, %v1526
  %v1528 = vpop.f32.mrb[0].mxu0
  %1529 = vdwg.mxu0
  %v1531 = vsel %vm111, %v1450, 0
  %1533 = vmatprep.subr.mxu0 0.0
  %1534 = vmatpush1.msra.mxu0 %v117
  %1535 = vmatprep.subr.mxu0 0.0
  %1536 = vmatpush1.msra.mxu0 0.0
  %1537 = vmatprep.subr.mxu0 0.0
  %1538 = vmatpush1.msra.mxu0 0.0
  %1539 = vmatprep.subr.mxu0 0.0
  %1540 = vmatpush1.msra.mxu0 0.0
  %1541 = vmatprep.subr.mxu0 0.0
  %1542 = vmatpush1.msra.mxu0 0.0
  %1543 = vmatprep.subr.mxu0 0.0
  %1544 = vmatpush1.msra.mxu0 0.0
  %1545 = vmatprep.subr.mxu0 0.0
  %1546 = vmatpush1.msra.mxu0 0.0
  %1547 = vmatprep.subr.mxu0 0.0
  %1548 = vmatpush1.msra.mxu0 0.0
  %1549 = vmatprep.subr.mxu0 0.0
  %1550 = vmatpush1.msra.mxu0 0.0
  %1551 = vmatprep.subr.mxu0 0.0
  %1552 = vmatpush1.msra.mxu0 0.0
  %1553 = vmatprep.subr.mxu0 0.0
  %1554 = vmatpush1.msra.mxu0 0.0
  %1555 = vmatprep.subr.mxu0 0.0
  %1556 = vmatpush1.msra.mxu0 0.0
  %1557 = vmatprep.subr.mxu0 0.0
  %1558 = vmatpush1.msra.mxu0 0.0
  %1559 = vmatprep.subr.mxu0 0.0
  %1560 = vmatpush1.msra.mxu0 0.0
  %1561 = vmatprep.subr.mxu0 0.0
  %1562 = vmatpush1.msra.mxu0 0.0
  %1563 = vmatprep.subr.mxu0 0.0
  %1564 = vmatpush1.msra.mxu0 0.0
  %1565 = vmatprep.subr.mxu0 0.0
  %1566 = vmatpush1.msra.mxu0 0.0
  %1567 = vmatprep.subr.mxu0 0.0
  %1568 = vmatpush1.msra.mxu0 0.0
  %1569 = vmatprep.subr.mxu0 0.0
  %1570 = vmatpush1.msra.mxu0 0.0
  %1571 = vmatprep.subr.mxu0 0.0
  %1572 = vmatpush1.msra.mxu0 0.0
  %1573 = vmatprep.subr.mxu0 0.0
  %1574 = vmatpush1.msra.mxu0 0.0
  %1575 = vmatprep.subr.mxu0 0.0
  %1576 = vmatpush1.msra.mxu0 0.0
  %1577 = vmatprep.subr.mxu0 0.0
  %1578 = vmatpush1.msra.mxu0 0.0
  %1579 = vmatprep.subr.mxu0 0.0
  %1580 = vmatpush1.msra.mxu0 0.0
  %1581 = vmatprep.subr.mxu0 0.0
  %1582 = vmatpush1.msra.mxu0 0.0
  %1583 = vmatprep.subr.mxu0 0.0
  %1584 = vmatpush1.msra.mxu0 0.0
  %1585 = vmatprep.subr.mxu0 0.0
  %1586 = vmatpush1.msra.mxu0 0.0
  %1587 = vmatprep.subr.mxu0 0.0
  %1588 = vmatpush1.msra.mxu0 0.0
  %1589 = vmatprep.subr.mxu0 0.0
  %1590 = vmatpush1.msra.mxu0 0.0
  %1591 = vmatprep.subr.mxu0 0.0
  %1592 = vmatpush1.msra.mxu0 0.0
  %1593 = vmatprep.subr.mxu0 0.0
  %1594 = vmatpush1.msra.mxu0 0.0
  %1595 = vmatprep.subr.mxu0 0.0
  %1596 = vmatpush1.msra.mxu0 0.0
  %1597 = vmatprep.mubr.f32.mxu0 0.0
  %1598 = vmatmul.mubr.f32.gmra.mrb[0].mxu0 %v1531
  %v1599 = vpop.f32.mrb[0].mxu0
  %v1600 = vadd.f32 %v1527, %v1599
  %v1601 = vpop.f32.mrb[0].mxu0
  %1602 = vdwg.mxu0
  %1603 = vmatprep.subr.mxu0 0.0
  %1604 = vmatpush1.msra.mxu0 %v16
  %1605 = vmatprep.subr.mxu0 0.0
  %1606 = vmatpush1.msra.mxu0 %v17
  %1607 = vmatprep.subr.mxu0 0.0
  %1608 = vmatpush1.msra.mxu0 %v18
  %1609 = vmatprep.subr.mxu0 0.0
  %1610 = vmatpush1.msra.mxu0 %v19
  %1611 = vmatprep.subr.mxu0 0.0
  %1612 = vmatpush1.msra.mxu0 0.0
  %1613 = vmatprep.subr.mxu0 0.0
  %1614 = vmatpush1.msra.mxu0 0.0
  %1615 = vmatprep.subr.mxu0 0.0
  %1616 = vmatpush1.msra.mxu0 0.0
  %1617 = vmatprep.subr.mxu0 0.0
  %1618 = vmatpush1.msra.mxu0 0.0
  %1619 = vmatprep.subr.mxu0 0.0
  %1620 = vmatpush1.msra.mxu0 0.0
  %1621 = vmatprep.subr.mxu0 0.0
  %1622 = vmatpush1.msra.mxu0 0.0
  %1623 = vmatprep.subr.mxu0 0.0
  %1624 = vmatpush1.msra.mxu0 0.0
  %1625 = vmatprep.subr.mxu0 0.0
  %1626 = vmatpush1.msra.mxu0 0.0
  %1627 = vmatprep.subr.mxu0 0.0
  %1628 = vmatpush1.msra.mxu0 0.0
  %1629 = vmatprep.subr.mxu0 0.0
  %1630 = vmatpush1.msra.mxu0 0.0
  %1631 = vmatprep.subr.mxu0 0.0
  %1632 = vmatpush1.msra.mxu0 0.0
  %1633 = vmatprep.subr.mxu0 0.0
  %1634 = vmatpush1.msra.mxu0 0.0
  %1635 = vmatprep.subr.mxu0 0.0
  %1636 = vmatpush1.msra.mxu0 0.0
  %1637 = vmatprep.subr.mxu0 0.0
  %1638 = vmatpush1.msra.mxu0 0.0
  %1639 = vmatprep.subr.mxu0 0.0
  %1640 = vmatpush1.msra.mxu0 0.0
  %1641 = vmatprep.subr.mxu0 0.0
  %1642 = vmatpush1.msra.mxu0 0.0
  %1643 = vmatprep.subr.mxu0 0.0
  %1644 = vmatpush1.msra.mxu0 0.0
  %1645 = vmatprep.subr.mxu0 0.0
  %1646 = vmatpush1.msra.mxu0 0.0
  %1647 = vmatprep.subr.mxu0 0.0
  %1648 = vmatpush1.msra.mxu0 0.0
  %1649 = vmatprep.subr.mxu0 0.0
  %1650 = vmatpush1.msra.mxu0 0.0
  %1651 = vmatprep.subr.mxu0 0.0
  %1652 = vmatpush1.msra.mxu0 0.0
  %1653 = vmatprep.subr.mxu0 0.0
  %1654 = vmatpush1.msra.mxu0 0.0
  %1655 = vmatprep.subr.mxu0 0.0
  %1656 = vmatpush1.msra.mxu0 0.0
  %1657 = vmatprep.subr.mxu0 0.0
  %1658 = vmatpush1.msra.mxu0 0.0
  %1659 = vmatprep.subr.mxu0 0.0
  %1660 = vmatpush1.msra.mxu0 0.0
  %1661 = vmatprep.subr.mxu0 0.0
  %1662 = vmatpush1.msra.mxu0 0.0
  %1663 = vmatprep.subr.mxu0 0.0
  %1664 = vmatpush1.msra.mxu0 0.0
  %1665 = vmatprep.subr.mxu0 0.0
  %1666 = vmatpush1.msra.mxu0 0.0
  %1667 = vmatprep.mubr.f32.mxu0 0.0
  %1668 = vmatmul.mubr.f32.gmra.mrb[0].mxu0 %v1281
  %v1669 = vpop.f32.mrb[0].mxu0
  %v1670 = vadd.f32 0.0, %v1669
  %v1671 = vpop.f32.mrb[0].mxu0
  %1672 = vdwg.mxu0
  %v1673 = vadd.f32 %v1600, %v1670
  %v1674 = vadd.f32 %v1673, %v267
  %v1675 = vtanh.pop %v1674
  %1676 = vmatprep.subr.mxu0 0.0
  %1677 = vmatpush1.msra.mxu0 %v24
  %1678 = vmatprep.subr.mxu0 0.0
  %1679 = vmatpush1.msra.mxu0 %v25
  %1680 = vmatprep.subr.mxu0 0.0
  %1681 = vmatpush1.msra.mxu0 %v26
  %1682 = vmatprep.subr.mxu0 0.0
  %1683 = vmatpush1.msra.mxu0 %v27
  %1684 = vmatprep.subr.mxu0 0.0
  %1685 = vmatpush1.msra.mxu0 0.0
  %1686 = vmatprep.subr.mxu0 0.0
  %1687 = vmatpush1.msra.mxu0 0.0
  %1688 = vmatprep.subr.mxu0 0.0
  %1689 = vmatpush1.msra.mxu0 0.0
  %1690 = vmatprep.subr.mxu0 0.0
  %1691 = vmatpush1.msra.mxu0 0.0
  %1692 = vmatprep.subr.mxu0 0.0
  %1693 = vmatpush1.msra.mxu0 0.0
  %1694 = vmatprep.subr.mxu0 0.0
  %1695 = vmatpush1.msra.mxu0 0.0
  %1696 = vmatprep.subr.mxu0 0.0
  %1697 = vmatpush1.msra.mxu0 0.0
  %1698 = vmatprep.subr.mxu0 0.0
  %1699 = vmatpush1.msra.mxu0 0.0
  %1700 = vmatprep.subr.mxu0 0.0
  %1701 = vmatpush1.msra.mxu0 0.0
  %1702 = vmatprep.subr.mxu0 0.0
  %1703 = vmatpush1.msra.mxu0 0.0
  %1704 = vmatprep.subr.mxu0 0.0
  %1705 = vmatpush1.msra.mxu0 0.0
  %1706 = vmatprep.subr.mxu0 0.0
  %1707 = vmatpush1.msra.mxu0 0.0
  %1708 = vmatprep.subr.mxu0 0.0
  %1709 = vmatpush1.msra.mxu0 0.0
  %1710 = vmatprep.subr.mxu0 0.0
  %1711 = vmatpush1.msra.mxu0 0.0
  %1712 = vmatprep.subr.mxu0 0.0
  %1713 = vmatpush1.msra.mxu0 0.0
  %1714 = vmatprep.subr.mxu0 0.0
  %1715 = vmatpush1.msra.mxu0 0.0
  %1716 = vmatprep.subr.mxu0 0.0
  %1717 = vmatpush1.msra.mxu0 0.0
  %1718 = vmatprep.subr.mxu0 0.0
  %1719 = vmatpush1.msra.mxu0 0.0
  %1720 = vmatprep.subr.mxu0 0.0
  %1721 = vmatpush1.msra.mxu0 0.0
  %1722 = vmatprep.subr.mxu0 0.0
  %1723 = vmatpush1.msra.mxu0 0.0
  %1724 = vmatprep.subr.mxu0 0.0
  %1725 = vmatpush1.msra.mxu0 0.0
  %1726 = vmatprep.subr.mxu0 0.0
  %1727 = vmatpush1.msra.mxu0 0.0
  %1728 = vmatprep.subr.mxu0 0.0
  %1729 = vmatpush1.msra.mxu0 0.0
  %1730 = vmatprep.subr.mxu0 0.0
  %1731 = vmatpush1.msra.mxu0 0.0
  %1732 = vmatprep.subr.mxu0 0.0
  %1733 = vmatpush1.msra.mxu0 0.0
  %1734 = vmatprep.subr.mxu0 0.0
  %1735 = vmatpush1.msra.mxu0 0.0
  %1736 = vmatprep.subr.mxu0 0.0
  %1737 = vmatpush1.msra.mxu0 0.0
  %1738 = vmatprep.subr.mxu0 0.0
  %1739 = vmatpush1.msra.mxu0 0.0
  %1740 = vmatprep.mubr.f32.mxu0 0.0
  %1741 = vmatmul.mubr.f32.gmra.mrb[0].mxu0 %v1356
  %v1742 = vpop.f32.mrb[0].mxu0
  %v1743 = vadd.f32 0.0, %v1742
  %v1744 = vpop.f32.mrb[0].mxu0
  %1745 = vdwg.mxu0
  %v1747 = vsel %vm189, %v1675, 0
  %1749 = vmatprep.subr.mxu0 0.0
  %1750 = vmatpush1.msra.mxu0 %v20
  %1751 = vmatprep.subr.mxu0 0.0
  %1752 = vmatpush1.msra.mxu0 %v21
  %1753 = vmatprep.subr.mxu0 0.0
  %1754 = vmatpush1.msra.mxu0 %v22
  %1755 = vmatprep.subr.mxu0 0.0
  %1756 = vmatpush1.msra.mxu0 %v23
  %1757 = vmatprep.subr.mxu0 0.0
  %1758 = vmatpush1.msra.mxu0 0.0
  %1759 = vmatprep.subr.mxu0 0.0
  %1760 = vmatpush1.msra.mxu0 0.0
  %1761 = vmatprep.subr.mxu0 0.0
  %1762 = vmatpush1.msra.mxu0 0.0
  %1763 = vmatprep.subr.mxu0 0.0
  %1764 = vmatpush1.msra.mxu0 0.0
  %1765 = vmatprep.subr.mxu0 0.0
  %1766 = vmatpush1.msra.mxu0 0.0
  %1767 = vmatprep.subr.mxu0 0.0
  %1768 = vmatpush1.msra.mxu0 0.0
  %1769 = vmatprep.subr.mxu0 0.0
  %1770 = vmatpush1.msra.mxu0 0.0
  %1771 = vmatprep.subr.mxu0 0.0
  %1772 = vmatpush1.msra.mxu0 0.0
  %1773 = vmatprep.subr.mxu0 0.0
  %1774 = vmatpush1.msra.mxu0 0.0
  %1775 = vmatprep.subr.mxu0 0.0
  %1776 = vmatpush1.msra.mxu0 0.0
  %1777 = vmatprep.subr.mxu0 0.0
  %1778 = vmatpush1.msra.mxu0 0.0
  %1779 = vmatprep.subr.mxu0 0.0
  %1780 = vmatpush1.msra.mxu0 0.0
  %1781 = vmatprep.subr.mxu0 0.0
  %1782 = vmatpush1.msra.mxu0 0.0
  %1783 = vmatprep.subr.mxu0 0.0
  %1784 = vmatpush1.msra.mxu0 0.0
  %1785 = vmatprep.subr.mxu0 0.0
  %1786 = vmatpush1.msra.mxu0 0.0
  %1787 = vmatprep.subr.mxu0 0.0
  %1788 = vmatpush1.msra.mxu0 0.0
  %1789 = vmatprep.subr.mxu0 0.0
  %1790 = vmatpush1.msra.mxu0 0.0
  %1791 = vmatprep.subr.mxu0 0.0
  %1792 = vmatpush1.msra.mxu0 0.0
  %1793 = vmatprep.subr.mxu0 0.0
  %1794 = vmatpush1.msra.mxu0 0.0
  %1795 = vmatprep.subr.mxu0 0.0
  %1796 = vmatpush1.msra.mxu0 0.0
  %1797 = vmatprep.subr.mxu0 0.0
  %1798 = vmatpush1.msra.mxu0 0.0
  %1799 = vmatprep.subr.mxu0 0.0
  %1800 = vmatpush1.msra.mxu0 0.0
  %1801 = vmatprep.subr.mxu0 0.0
  %1802 = vmatpush1.msra.mxu0 0.0
  %1803 = vmatprep.subr.mxu0 0.0
  %1804 = vmatpush1.msra.mxu0 0.0
  %1805 = vmatprep.subr.mxu0 0.0
  %1806 = vmatpush1.msra.mxu0 0.0
  %1807 = vmatprep.subr.mxu0 0.0
  %1808 = vmatpush1.msra.mxu0 0.0
  %1809 = vmatprep.subr.mxu0 0.0
  %1810 = vmatpush1.msra.mxu0 0.0
  %1811 = vmatprep.subr.mxu0 0.0
  %1812 = vmatpush1.msra.mxu0 0.0
  %1813 = vmatprep.mubr.f32.mxu0 0.0
  %1814 = vmatmul.mubr.f32.gmra.mrb[0].mxu0 %v1747
  %v1815 = vpop.f32.mrb[0].mxu0
  %v1816 = vadd.f32 %v1743, %v1815
  %v1817 = vpop.f32.mrb[0].mxu0
  %1818 = vdwg.mxu0
  %v1819 = vadd.f32 %v1816, %v416
  %v1820 = vtanh.pop %v1819
  %v1822 = vsel %vm189, %v1820, 0
  %1824 = vmatprep.subr.mxu0 0.0
  %1825 = vmatpush1.msra.mxu0 %v28
  %1826 = vmatprep.subr.mxu0 0.0
  %1827 = vmatpush1.msra.mxu0 %v29
  %1828 = vmatprep.subr.mxu0 0.0
  %1829 = vmatpush1.msra.mxu0 %v30
  %1830 = vmatprep.subr.mxu0 0.0
  %1831 = vmatpush1.msra.mxu0 %v31
  %1832 = vmatprep.subr.mxu0 0.0
  %1833 = vmatpush1.msra.mxu0 0.0
  %1834 = vmatprep.subr.mxu0 0.0
  %1835 = vmatpush1.msra.mxu0 0.0
  %1836 = vmatprep.subr.mxu0 0.0
  %1837 = vmatpush1.msra.mxu0 0.0
  %1838 = vmatprep.subr.mxu0 0.0
  %1839 = vmatpush1.msra.mxu0 0.0
  %1840 = vmatprep.subr.mxu0 0.0
  %1841 = vmatpush1.msra.mxu0 0.0
  %1842 = vmatprep.subr.mxu0 0.0
  %1843 = vmatpush1.msra.mxu0 0.0
  %1844 = vmatprep.subr.mxu0 0.0
  %1845 = vmatpush1.msra.mxu0 0.0
  %1846 = vmatprep.subr.mxu0 0.0
  %1847 = vmatpush1.msra.mxu0 0.0
  %1848 = vmatprep.subr.mxu0 0.0
  %1849 = vmatpush1.msra.mxu0 0.0
  %1850 = vmatprep.subr.mxu0 0.0
  %1851 = vmatpush1.msra.mxu0 0.0
  %1852 = vmatprep.subr.mxu0 0.0
  %1853 = vmatpush1.msra.mxu0 0.0
  %1854 = vmatprep.subr.mxu0 0.0
  %1855 = vmatpush1.msra.mxu0 0.0
  %1856 = vmatprep.subr.mxu0 0.0
  %1857 = vmatpush1.msra.mxu0 0.0
  %1858 = vmatprep.subr.mxu0 0.0
  %1859 = vmatpush1.msra.mxu0 0.0
  %1860 = vmatprep.subr.mxu0 0.0
  %1861 = vmatpush1.msra.mxu0 0.0
  %1862 = vmatprep.subr.mxu0 0.0
  %1863 = vmatpush1.msra.mxu0 0.0
  %1864 = vmatprep.subr.mxu0 0.0
  %1865 = vmatpush1.msra.mxu0 0.0
  %1866 = vmatprep.subr.mxu0 0.0
  %1867 = vmatpush1.msra.mxu0 0.0
  %1868 = vmatprep.subr.mxu0 0.0
  %1869 = vmatpush1.msra.mxu0 0.0
  %1870 = vmatprep.subr.mxu0 0.0
  %1871 = vmatpush1.msra.mxu0 0.0
  %1872 = vmatprep.subr.mxu0 0.0
  %1873 = vmatpush1.msra.mxu0 0.0
  %1874 = vmatprep.subr.mxu0 0.0
  %1875 = vmatpush1.msra.mxu0 0.0
  %1876 = vmatprep.subr.mxu0 0.0
  %1877 = vmatpush1.msra.mxu0 0.0
  %1878 = vmatprep.subr.mxu0 0.0
  %1879 = vmatpush1.msra.mxu0 0.0
  %1880 = vmatprep.subr.mxu0 0.0
  %1881 = vmatpush1.msra.mxu0 0.0
  %1882 = vmatprep.subr.mxu0 0.0
  %1883 = vmatpush1.msra.mxu0 0.0
  %1884 = vmatprep.subr.mxu0 0.0
  %1885 = vmatpush1.msra.mxu0 0.0
  %1886 = vmatprep.subr.mxu0 0.0
  %1887 = vmatpush1.msra.mxu0 0.0
  %1888 = vmatprep.mubr.f32.mxu0 0.0
  %1889 = vmatmul.mubr.f32.gmra.mrb[0].mxu0 %v1822
  %v1890 = vpop.f32.mrb[0].mxu0
  %v1891 = vadd.f32 %v422, %v1890
  %v1892 = vpop.f32.mrb[0].mxu0
  %1893 = vdwg.mxu0
  %1894 = vrot.lane.b32.xlu0 %v1456, 3
  %v1895 = vpop.permute.xlu0 %1894
  %v1897 = vadd.f32 %v1891, %v1895
  %v1898 = vsel %vm500, %v1891, -inf
  %1899 = vmax.xlane.f32.xlu0 %v1898
  %v1900 = vpop.xlane.xlu0 %1899
  %v1901 = vsub.f32 %v1891, %v1900
  %v1902 = vmul.f32 %v1901, 1.442695
  %v1903 = vpow.pop %v1902
  %v1904 = vsel %vm500, %v1903, 0.0
  %1905 = vadd.xlane.f32.xlu0 %v1904
  %v1906 = vpop.xlane.xlu0 %1905
  %v1907 = vrcp.pop %v1906
  %v1908 = vmul.f32 %v1903, %v1907
  %s1909 = scalar_lea.vmem %s3, 6
  %1910 = vst.msk [vmem:[%s1909] sm:$0x3] %vm500, %v1908
  %s1911 = scalar_lea.vmem %s0, 8
  %v1912 = vld [vmem:[%s1911] sm:$0x3]
  %s1913 = scalar_lea.vmem %s1, 8
  %v1914 = vld [vmem:[%s1913] sm:$0x3]
  %vm1915 = vcmp.ne.f32.partialorder %v1912, %v1912
  %v1916 = vsel %vm1915, %v1908, %v1912
  %vm1917 = vcmp.ne.f32.partialorder %v1914, %v1914
  %1919 = vrot.lane.b32.xlu0 %v1897, 125
  %v1920 = vpop.permute.xlu0 %1919
  %v1922 = vsel %vm1917, %v1920, %v1914
  %v1924 = vsel %vm37, %v1922, 0
  %1926 = vmatprep.subr.mxu0 0.0
  %1927 = vmatpush1.msra.mxu0 %v15
  %1928 = vmatprep.subr.mxu0 0.0
  %1929 = vmatpush1.msra.mxu0 0.0
  %1930 = vmatprep.subr.mxu0 0.0
  %1931 = vmatpush1.msra.mxu0 0.0
  %1932 = vmatprep.subr.mxu0 0.0
  %1933 = vmatpush1.msra.mxu0 0.0
  %1934 = vmatprep.subr.mxu0 0.0
  %1935 = vmatpush1.msra.mxu0 0.0
  %1936 = vmatprep.subr.mxu0 0.0
  %1937 = vmatpush1.msra.mxu0 0.0
  %1938 = vmatprep.subr.mxu0 0.0
  %1939 = vmatpush1.msra.mxu0 0.0
  %1940 = vmatprep.subr.mxu0 0.0
  %1941 = vmatpush1.msra.mxu0 0.0
  %1942 = vmatprep.subr.mxu0 0.0
  %1943 = vmatpush1.msra.mxu0 0.0
  %1944 = vmatprep.subr.mxu0 0.0
  %1945 = vmatpush1.msra.mxu0 0.0
  %1946 = vmatprep.subr.mxu0 0.0
  %1947 = vmatpush1.msra.mxu0 0.0
  %1948 = vmatprep.subr.mxu0 0.0
  %1949 = vmatpush1.msra.mxu0 0.0
  %1950 = vmatprep.subr.mxu0 0.0
  %1951 = vmatpush1.msra.mxu0 0.0
  %1952 = vmatprep.subr.mxu0 0.0
  %1953 = vmatpush1.msra.mxu0 0.0
  %1954 = vmatprep.subr.mxu0 0.0
  %1955 = vmatpush1.msra.mxu0 0.0
  %1956 = vmatprep.subr.mxu0 0.0
  %1957 = vmatpush1.msra.mxu0 0.0
  %1958 = vmatprep.subr.mxu0 0.0
  %1959 = vmatpush1.msra.mxu0 0.0
  %1960 = vmatprep.subr.mxu0 0.0
  %1961 = vmatpush1.msra.mxu0 0.0
  %1962 = vmatprep.subr.mxu0 0.0
  %1963 = vmatpush1.msra.mxu0 0.0
  %1964 = vmatprep.subr.mxu0 0.0
  %1965 = vmatpush1.msra.mxu0 0.0
  %1966 = vmatprep.subr.mxu0 0.0
  %1967 = vmatpush1.msra.mxu0 0.0
  %1968 = vmatprep.subr.mxu0 0.0
  %1969 = vmatpush1.msra.mxu0 0.0
  %1970 = vmatprep.subr.mxu0 0.0
  %1971 = vmatpush1.msra.mxu0 0.0
  %1972 = vmatprep.subr.mxu0 0.0
  %1973 = vmatpush1.msra.mxu0 0.0
  %1974 = vmatprep.subr.mxu0 0.0
  %1975 = vmatpush1.msra.mxu0 0.0
  %1976 = vmatprep.subr.mxu0 0.0
  %1977 = vmatpush1.msra.mxu0 0.0
  %1978 = vmatprep.subr.mxu0 0.0
  %1979 = vmatpush1.msra.mxu0 0.0
  %1980 = vmatprep.subr.mxu0 0.0
  %1981 = vmatpush1.msra.mxu0 0.0
  %1982 = vmatprep.subr.mxu0 0.0
  %1983 = vmatpush1.msra.mxu0 0.0
  %1984 = vmatprep.subr.mxu0 0.0
  %1985 = vmatpush1.msra.mxu0 0.0
  %1986 = vmatprep.subr.mxu0 0.0
  %1987 = vmatpush1.msra.mxu0 0.0
  %1988 = vmatprep.subr.mxu0 0.0
  %1989 = vmatpush1.msra.mxu0 0.0
  %1990 = vmatprep.mubr.f32.mxu0 0.0
  %1991 = vmatmul.mubr.f32.gmra.mrb[0].mxu0 %v1924
  %v1992 = vpop.f32.mrb[0].mxu0
  %v1993 = vadd.f32 0.0, %v1992
  %v1994 = vpop.f32.mrb[0].mxu0
  %1995 = vdwg.mxu0
  %v1997 = vsel %vm111, %v1916, 0
  %1999 = vmatprep.subr.mxu0 0.0
  %2000 = vmatpush1.msra.mxu0 %v117
  %2001 = vmatprep.subr.mxu0 0.0
  %2002 = vmatpush1.msra.mxu0 0.0
  %2003 = vmatprep.subr.mxu0 0.0
  %2004 = vmatpush1.msra.mxu0 0.0
  %2005 = vmatprep.subr.mxu0 0.0
  %2006 = vmatpush1.msra.mxu0 0.0
  %2007 = vmatprep.subr.mxu0 0.0
  %2008 = vmatpush1.msra.mxu0 0.0
  %2009 = vmatprep.subr.mxu0 0.0
  %2010 = vmatpush1.msra.mxu0 0.0
  %2011 = vmatprep.subr.mxu0 0.0
  %2012 = vmatpush1.msra.mxu0 0.0
  %2013 = vmatprep.subr.mxu0 0.0
  %2014 = vmatpush1.msra.mxu0 0.0
  %2015 = vmatprep.subr.mxu0 0.0
  %2016 = vmatpush1.msra.mxu0 0.0
  %2017 = vmatprep.subr.mxu0 0.0
  %2018 = vmatpush1.msra.mxu0 0.0
  %2019 = vmatprep.subr.mxu0 0.0
  %2020 = vmatpush1.msra.mxu0 0.0
  %2021 = vmatprep.subr.mxu0 0.0
  %2022 = vmatpush1.msra.mxu0 0.0
  %2023 = vmatprep.subr.mxu0 0.0
  %2024 = vmatpush1.msra.mxu0 0.0
  %2025 = vmatprep.subr.mxu0 0.0
  %2026 = vmatpush1.msra.mxu0 0.0
  %2027 = vmatprep.subr.mxu0 0.0
  %2028 = vmatpush1.msra.mxu0 0.0
  %2029 = vmatprep.subr.mxu0 0.0
  %2030 = vmatpush1.msra.mxu0 0.0
  %2031 = vmatprep.subr.mxu0 0.0
  %2032 = vmatpush1.msra.mxu0 0.0
  %2033 = vmatprep.subr.mxu0 0.0
  %2034 = vmatpush1.msra.mxu0 0.0
  %2035 = vmatprep.subr.mxu0 0.0
  %2036 = vmatpush1.msra.mxu0 0.0
  %2037 = vmatprep.subr.mxu0 0.0
  %2038 = vmatpush1.msra.mxu0 0.0
  %2039 = vmatprep.subr.mxu0 0.0
  %2040 = vmatpush1.msra.mxu0 0.0
  %2041 = vmatprep.subr.mxu0 0.0
  %2042 = vmatpush1.msra.mxu0 0.0
  %2043 = vmatprep.subr.mxu0 0.0
  %2044 = vmatpush1.msra.mxu0 0.0
  %2045 = vmatprep.subr.mxu0 0.0
  %2046 = vmatpush1.msra.mxu0 0.0
  %2047 = vmatprep.subr.mxu0 0.0
  %2048 = vmatpush1.msra.mxu0 0.0
  %2049 = vmatprep.subr.mxu0 0.0
  %2050 = vmatpush1.msra.mxu0 0.0
  %2051 = vmatprep.subr.mxu0 0.0
  %2052 = vmatpush1.msra.mxu0 0.0
  %2053 = vmatprep.subr.mxu0 0.0
  %2054 = vmatpush1.msra.mxu0 0.0
  %2055 = vmatprep.subr.mxu0 0.0
  %2056 = vmatpush1.msra.mxu0 0.0
  %2057 = vmatprep.subr.mxu0 0.0
  %2058 = vmatpush1.msra.mxu0 0.0
  %2059 = vmatprep.subr.mxu0 0.0
  %2060 = vmatpush1.msra.mxu0 0.0
  %2061 = vmatprep.subr.mxu0 0.0
  %2062 = vmatpush1.msra.mxu0 0.0
  %2063 = vmatprep.mubr.f32.mxu0 0.0
  %2064 = vmatmul.mubr.f32.gmra.mrb[0].mxu0 %v1997
  %v2065 = vpop.f32.mrb[0].mxu0
  %v2066 = vadd.f32 %v1993, %v2065
  %v2067 = vpop.f32.mrb[0].mxu0
  %2068 = vdwg.mxu0
  %2069 = vmatprep.subr.mxu0 0.0
  %2070 = vmatpush1.msra.mxu0 %v16
  %2071 = vmatprep.subr.mxu0 0.0
  %2072 = vmatpush1.msra.mxu0 %v17
  %2073 = vmatprep.subr.mxu0 0.0
  %2074 = vmatpush1.msra.mxu0 %v18
  %2075 = vmatprep.subr.mxu0 0.0
  %2076 = vmatpush1.msra.mxu0 %v19
  %2077 = vmatprep.subr.mxu0 0.0
  %2078 = vmatpush1.msra.mxu0 0.0
  %2079 = vmatprep.subr.mxu0 0.0
  %2080 = vmatpush1.msra.mxu0 0.0
  %2081 = vmatprep.subr.mxu0 0.0
  %2082 = vmatpush1.msra.mxu0 0.0
  %2083 = vmatprep.subr.mxu0 0.0
  %2084 = vmatpush1.msra.mxu0 0.0
  %2085 = vmatprep.subr.mxu0 0.0
  %2086 = vmatpush1.msra.mxu0 0.0
  %2087 = vmatprep.subr.mxu0 0.0
  %2088 = vmatpush1.msra.mxu0 0.0
  %2089 = vmatprep.subr.mxu0 0.0
  %2090 = vmatpush1.msra.mxu0 0.0
  %2091 = vmatprep.subr.mxu0 0.0
  %2092 = vmatpush1.msra.mxu0 0.0
  %2093 = vmatprep.subr.mxu0 0.0
  %2094 = vmatpush1.msra.mxu0 0.0
  %2095 = vmatprep.subr.mxu0 0.0
  %2096 = vmatpush1.msra.mxu0 0.0
  %2097 = vmatprep.subr.mxu0 0.0
  %2098 = vmatpush1.msra.mxu0 0.0
  %2099 = vmatprep.subr.mxu0 0.0
  %2100 = vmatpush1.msra.mxu0 0.0
  %2101 = vmatprep.subr.mxu0 0.0
  %2102 = vmatpush1.msra.mxu0 0.0
  %2103 = vmatprep.subr.mxu0 0.0
  %2104 = vmatpush1.msra.mxu0 0.0
  %2105 = vmatprep.subr.mxu0 0.0
  %2106 = vmatpush1.msra.mxu0 0.0
  %2107 = vmatprep.subr.mxu0 0.0
  %2108 = vmatpush1.msra.mxu0 0.0
  %2109 = vmatprep.subr.mxu0 0.0
  %2110 = vmatpush1.msra.mxu0 0.0
  %2111 = vmatprep.subr.mxu0 0.0
  %2112 = vmatpush1.msra.mxu0 0.0
  %2113 = vmatprep.subr.mxu0 0.0
  %2114 = vmatpush1.msra.mxu0 0.0
  %2115 = vmatprep.subr.mxu0 0.0
  %2116 = vmatpush1.msra.mxu0 0.0
  %2117 = vmatprep.subr.mxu0 0.0
  %2118 = vmatpush1.msra.mxu0 0.0
  %2119 = vmatprep.subr.mxu0 0.0
  %2120 = vmatpush1.msra.mxu0 0.0
  %2121 = vmatprep.subr.mxu0 0.0
  %2122 = vmatpush1.msra.mxu0 0.0
  %2123 = vmatprep.subr.mxu0 0.0
  %2124 = vmatpush1.msra.mxu0 0.0
  %2125 = vmatprep.subr.mxu0 0.0
  %2126 = vmatpush1.msra.mxu0 0.0
  %2127 = vmatprep.subr.mxu0 0.0
  %2128 = vmatpush1.msra.mxu0 0.0
  %2129 = vmatprep.subr.mxu0 0.0
  %2130 = vmatpush1.msra.mxu0 0.0
  %2131 = vmatprep.subr.mxu0 0.0
  %2132 = vmatpush1.msra.mxu0 0.0
  %2133 = vmatprep.mubr.f32.mxu0 0.0
  %2134 = vmatmul.mubr.f32.gmra.mrb[0].mxu0 %v1747
  %v2135 = vpop.f32.mrb[0].mxu0
  %v2136 = vadd.f32 0.0, %v2135
  %v2137 = vpop.f32.mrb[0].mxu0
  %2138 = vdwg.mxu0
  %v2139 = vadd.f32 %v2066, %v2136
  %v2140 = vadd.f32 %v2139, %v267
  %v2141 = vtanh.pop %v2140
  %2142 = vmatprep.subr.mxu0 0.0
  %2143 = vmatpush1.msra.mxu0 %v24
  %2144 = vmatprep.subr.mxu0 0.0
  %2145 = vmatpush1.msra.mxu0 %v25
  %2146 = vmatprep.subr.mxu0 0.0
  %2147 = vmatpush1.msra.mxu0 %v26
  %2148 = vmatprep.subr.mxu0 0.0
  %2149 = vmatpush1.msra.mxu0 %v27
  %2150 = vmatprep.subr.mxu0 0.0
  %2151 = vmatpush1.msra.mxu0 0.0
  %2152 = vmatprep.subr.mxu0 0.0
  %2153 = vmatpush1.msra.mxu0 0.0
  %2154 = vmatprep.subr.mxu0 0.0
  %2155 = vmatpush1.msra.mxu0 0.0
  %2156 = vmatprep.subr.mxu0 0.0
  %2157 = vmatpush1.msra.mxu0 0.0
  %2158 = vmatprep.subr.mxu0 0.0
  %2159 = vmatpush1.msra.mxu0 0.0
  %2160 = vmatprep.subr.mxu0 0.0
  %2161 = vmatpush1.msra.mxu0 0.0
  %2162 = vmatprep.subr.mxu0 0.0
  %2163 = vmatpush1.msra.mxu0 0.0
  %2164 = vmatprep.subr.mxu0 0.0
  %2165 = vmatpush1.msra.mxu0 0.0
  %2166 = vmatprep.subr.mxu0 0.0
  %2167 = vmatpush1.msra.mxu0 0.0
  %2168 = vmatprep.subr.mxu0 0.0
  %2169 = vmatpush1.msra.mxu0 0.0
  %2170 = vmatprep.subr.mxu0 0.0
  %2171 = vmatpush1.msra.mxu0 0.0
  %2172 = vmatprep.subr.mxu0 0.0
  %2173 = vmatpush1.msra.mxu0 0.0
  %2174 = vmatprep.subr.mxu0 0.0
  %2175 = vmatpush1.msra.mxu0 0.0
  %2176 = vmatprep.subr.mxu0 0.0
  %2177 = vmatpush1.msra.mxu0 0.0
  %2178 = vmatprep.subr.mxu0 0.0
  %2179 = vmatpush1.msra.mxu0 0.0
  %2180 = vmatprep.subr.mxu0 0.0
  %2181 = vmatpush1.msra.mxu0 0.0
  %2182 = vmatprep.subr.mxu0 0.0
  %2183 = vmatpush1.msra.mxu0 0.0
  %2184 = vmatprep.subr.mxu0 0.0
  %2185 = vmatpush1.msra.mxu0 0.0
  %2186 = vmatprep.subr.mxu0 0.0
  %2187 = vmatpush1.msra.mxu0 0.0
  %2188 = vmatprep.subr.mxu0 0.0
  %2189 = vmatpush1.msra.mxu0 0.0
  %2190 = vmatprep.subr.mxu0 0.0
  %2191 = vmatpush1.msra.mxu0 0.0
  %2192 = vmatprep.subr.mxu0 0.0
  %2193 = vmatpush1.msra.mxu0 0.0
  %2194 = vmatprep.subr.mxu0 0.0
  %2195 = vmatpush1.msra.mxu0 0.0
  %2196 = vmatprep.subr.mxu0 0.0
  %2197 = vmatpush1.msra.mxu0 0.0
  %2198 = vmatprep.subr.mxu0 0.0
  %2199 = vmatpush1.msra.mxu0 0.0
  %2200 = vmatprep.subr.mxu0 0.0
  %2201 = vmatpush1.msra.mxu0 0.0
  %2202 = vmatprep.subr.mxu0 0.0
  %2203 = vmatpush1.msra.mxu0 0.0
  %2204 = vmatprep.subr.mxu0 0.0
  %2205 = vmatpush1.msra.mxu0 0.0
  %2206 = vmatprep.mubr.f32.mxu0 0.0
  %2207 = vmatmul.mubr.f32.gmra.mrb[0].mxu0 %v1822
  %v2208 = vpop.f32.mrb[0].mxu0
  %v2209 = vadd.f32 0.0, %v2208
  %v2210 = vpop.f32.mrb[0].mxu0
  %2211 = vdwg.mxu0
  %v2213 = vsel %vm189, %v2141, 0
  %2215 = vmatprep.subr.mxu0 0.0
  %2216 = vmatpush1.msra.mxu0 %v20
  %2217 = vmatprep.subr.mxu0 0.0
  %2218 = vmatpush1.msra.mxu0 %v21
  %2219 = vmatprep.subr.mxu0 0.0
  %2220 = vmatpush1.msra.mxu0 %v22
  %2221 = vmatprep.subr.mxu0 0.0
  %2222 = vmatpush1.msra.mxu0 %v23
  %2223 = vmatprep.subr.mxu0 0.0
  %2224 = vmatpush1.msra.mxu0 0.0
  %2225 = vmatprep.subr.mxu0 0.0
  %2226 = vmatpush1.msra.mxu0 0.0
  %2227 = vmatprep.subr.mxu0 0.0
  %2228 = vmatpush1.msra.mxu0 0.0
  %2229 = vmatprep.subr.mxu0 0.0
  %2230 = vmatpush1.msra.mxu0 0.0
  %2231 = vmatprep.subr.mxu0 0.0
  %2232 = vmatpush1.msra.mxu0 0.0
  %2233 = vmatprep.subr.mxu0 0.0
  %2234 = vmatpush1.msra.mxu0 0.0
  %2235 = vmatprep.subr.mxu0 0.0
  %2236 = vmatpush1.msra.mxu0 0.0
  %2237 = vmatprep.subr.mxu0 0.0
  %2238 = vmatpush1.msra.mxu0 0.0
  %2239 = vmatprep.subr.mxu0 0.0
  %2240 = vmatpush1.msra.mxu0 0.0
  %2241 = vmatprep.subr.mxu0 0.0
  %2242 = vmatpush1.msra.mxu0 0.0
  %2243 = vmatprep.subr.mxu0 0.0
  %2244 = vmatpush1.msra.mxu0 0.0
  %2245 = vmatprep.subr.mxu0 0.0
  %2246 = vmatpush1.msra.mxu0 0.0
  %2247 = vmatprep.subr.mxu0 0.0
  %2248 = vmatpush1.msra.mxu0 0.0
  %2249 = vmatprep.subr.mxu0 0.0
  %2250 = vmatpush1.msra.mxu0 0.0
  %2251 = vmatprep.subr.mxu0 0.0
  %2252 = vmatpush1.msra.mxu0 0.0
  %2253 = vmatprep.subr.mxu0 0.0
  %2254 = vmatpush1.msra.mxu0 0.0
  %2255 = vmatprep.subr.mxu0 0.0
  %2256 = vmatpush1.msra.mxu0 0.0
  %2257 = vmatprep.subr.mxu0 0.0
  %2258 = vmatpush1.msra.mxu0 0.0
  %2259 = vmatprep.subr.mxu0 0.0
  %2260 = vmatpush1.msra.mxu0 0.0
  %2261 = vmatprep.subr.mxu0 0.0
  %2262 = vmatpush1.msra.mxu0 0.0
  %2263 = vmatprep.subr.mxu0 0.0
  %2264 = vmatpush1.msra.mxu0 0.0
  %2265 = vmatprep.subr.mxu0 0.0
  %2266 = vmatpush1.msra.mxu0 0.0
  %2267 = vmatprep.subr.mxu0 0.0
  %2268 = vmatpush1.msra.mxu0 0.0
  %2269 = vmatprep.subr.mxu0 0.0
  %2270 = vmatpush1.msra.mxu0 0.0
  %2271 = vmatprep.subr.mxu0 0.0
  %2272 = vmatpush1.msra.mxu0 0.0
  %2273 = vmatprep.subr.mxu0 0.0
  %2274 = vmatpush1.msra.mxu0 0.0
  %2275 = vmatprep.subr.mxu0 0.0
  %2276 = vmatpush1.msra.mxu0 0.0
  %2277 = vmatprep.subr.mxu0 0.0
  %2278 = vmatpush1.msra.mxu0 0.0
  %2279 = vmatprep.mubr.f32.mxu0 0.0
  %2280 = vmatmul.mubr.f32.gmra.mrb[0].mxu0 %v2213
  %v2281 = vpop.f32.mrb[0].mxu0
  %v2282 = vadd.f32 %v2209, %v2281
  %v2283 = vpop.f32.mrb[0].mxu0
  %2284 = vdwg.mxu0
  %v2285 = vadd.f32 %v2282, %v416
  %v2286 = vtanh.pop %v2285
  %v2288 = vsel %vm189, %v2286, 0
  %2290 = vmatprep.subr.mxu0 0.0
  %2291 = vmatpush1.msra.mxu0 %v28
  %2292 = vmatprep.subr.mxu0 0.0
  %2293 = vmatpush1.msra.mxu0 %v29
  %2294 = vmatprep.subr.mxu0 0.0
  %2295 = vmatpush1.msra.mxu0 %v30
  %2296 = vmatprep.subr.mxu0 0.0
  %2297 = vmatpush1.msra.mxu0 %v31
  %2298 = vmatprep.subr.mxu0 0.0
  %2299 = vmatpush1.msra.mxu0 0.0
  %2300 = vmatprep.subr.mxu0 0.0
  %2301 = vmatpush1.msra.mxu0 0.0
  %2302 = vmatprep.subr.mxu0 0.0
  %2303 = vmatpush1.msra.mxu0 0.0
  %2304 = vmatprep.subr.mxu0 0.0
  %2305 = vmatpush1.msra.mxu0 0.0
  %2306 = vmatprep.subr.mxu0 0.0
  %2307 = vmatpush1.msra.mxu0 0.0
  %2308 = vmatprep.subr.mxu0 0.0
  %2309 = vmatpush1.msra.mxu0 0.0
  %2310 = vmatprep.subr.mxu0 0.0
  %2311 = vmatpush1.msra.mxu0 0.0
  %2312 = vmatprep.subr.mxu0 0.0
  %2313 = vmatpush1.msra.mxu0 0.0
  %2314 = vmatprep.subr.mxu0 0.0
  %2315 = vmatpush1.msra.mxu0 0.0
  %2316 = vmatprep.subr.mxu0 0.0
  %2317 = vmatpush1.msra.mxu0 0.0
  %2318 = vmatprep.subr.mxu0 0.0
  %2319 = vmatpush1.msra.mxu0 0.0
  %2320 = vmatprep.subr.mxu0 0.0
  %2321 = vmatpush1.msra.mxu0 0.0
  %2322 = vmatprep.subr.mxu0 0.0
  %2323 = vmatpush1.msra.mxu0 0.0
  %2324 = vmatprep.subr.mxu0 0.0
  %2325 = vmatpush1.msra.mxu0 0.0
  %2326 = vmatprep.subr.mxu0 0.0
  %2327 = vmatpush1.msra.mxu0 0.0
  %2328 = vmatprep.subr.mxu0 0.0
  %2329 = vmatpush1.msra.mxu0 0.0
  %2330 = vmatprep.subr.mxu0 0.0
  %2331 = vmatpush1.msra.mxu0 0.0
  %2332 = vmatprep.subr.mxu0 0.0
  %2333 = vmatpush1.msra.mxu0 0.0
  %2334 = vmatprep.subr.mxu0 0.0
  %2335 = vmatpush1.msra.mxu0 0.0
  %2336 = vmatprep.subr.mxu0 0.0
  %2337 = vmatpush1.msra.mxu0 0.0
  %2338 = vmatprep.subr.mxu0 0.0
  %2339 = vmatpush1.msra.mxu0 0.0
  %2340 = vmatprep.subr.mxu0 0.0
  %2341 = vmatpush1.msra.mxu0 0.0
  %2342 = vmatprep.subr.mxu0 0.0
  %2343 = vmatpush1.msra.mxu0 0.0
  %2344 = vmatprep.subr.mxu0 0.0
  %2345 = vmatpush1.msra.mxu0 0.0
  %2346 = vmatprep.subr.mxu0 0.0
  %2347 = vmatpush1.msra.mxu0 0.0
  %2348 = vmatprep.subr.mxu0 0.0
  %2349 = vmatpush1.msra.mxu0 0.0
  %2350 = vmatprep.subr.mxu0 0.0
  %2351 = vmatpush1.msra.mxu0 0.0
  %2352 = vmatprep.subr.mxu0 0.0
  %2353 = vmatpush1.msra.mxu0 0.0
  %2354 = vmatprep.mubr.f32.mxu0 0.0
  %2355 = vmatmul.mubr.f32.gmra.mrb[0].mxu0 %v2288
  %v2356 = vpop.f32.mrb[0].mxu0
  %v2357 = vadd.f32 %v422, %v2356
  %v2358 = vpop.f32.mrb[0].mxu0
  %2359 = vdwg.mxu0
  %2360 = vrot.lane.b32.xlu0 %v1922, 3
  %v2361 = vpop.permute.xlu0 %2360
  %v2363 = vadd.f32 %v2357, %v2361
  %v2364 = vsel %vm500, %v2357, -inf
  %2365 = vmax.xlane.f32.xlu0 %v2364
  %v2366 = vpop.xlane.xlu0 %2365
  %v2367 = vsub.f32 %v2357, %v2366
  %v2368 = vmul.f32 %v2367, 1.442695
  %v2369 = vpow.pop %v2368
  %v2370 = vsel %vm500, %v2369, 0.0
  %2371 = vadd.xlane.f32.xlu0 %v2370
  %v2372 = vpop.xlane.xlu0 %2371
  %v2373 = vrcp.pop %v2372
  %v2374 = vmul.f32 %v2369, %v2373
  %s2375 = scalar_lea.vmem %s3, 8
  %2376 = vst.msk [vmem:[%s2375] sm:$0x3] %vm500, %v2374
  %s2377 = scalar_lea.vmem %s0, 10
  %v2378 = vld [vmem:[%s2377] sm:$0x3]
  %s2379 = scalar_lea.vmem %s1, 10
  %v2380 = vld [vmem:[%s2379] sm:$0x3]
  %vm2381 = vcmp.ne.f32.partialorder %v2378, %v2378
  %v2382 = vsel %vm2381, %v2374, %v2378
  %vm2383 = vcmp.ne.f32.partialorder %v2380, %v2380
  %2385 = vrot.lane.b32.xlu0 %v2363, 125
  %v2386 = vpop.permute.xlu0 %2385
  %v2388 = vsel %vm2383, %v2386, %v2380
  %v2390 = vsel %vm37, %v2388, 0
  %2392 = vmatprep.subr.mxu0 0.0
  %2393 = vmatpush1.msra.mxu0 %v15
  %2394 = vmatprep.subr.mxu0 0.0
  %2395 = vmatpush1.msra.mxu0 0.0
  %2396 = vmatprep.subr.mxu0 0.0
  %2397 = vmatpush1.msra.mxu0 0.0
  %2398 = vmatprep.subr.mxu0 0.0
  %2399 = vmatpush1.msra.mxu0 0.0
  %2400 = vmatprep.subr.mxu0 0.0
  %2401 = vmatpush1.msra.mxu0 0.0
  %2402 = vmatprep.subr.mxu0 0.0
  %2403 = vmatpush1.msra.mxu0 0.0
  %2404 = vmatprep.subr.mxu0 0.0
  %2405 = vmatpush1.msra.mxu0 0.0
  %2406 = vmatprep.subr.mxu0 0.0
  %2407 = vmatpush1.msra.mxu0 0.0
  %2408 = vmatprep.subr.mxu0 0.0
  %2409 = vmatpush1.msra.mxu0 0.0
  %2410 = vmatprep.subr.mxu0 0.0
  %2411 = vmatpush1.msra.mxu0 0.0
  %2412 = vmatprep.subr.mxu0 0.0
  %2413 = vmatpush1.msra.mxu0 0.0
  %2414 = vmatprep.subr.mxu0 0.0
  %2415 = vmatpush1.msra.mxu0 0.0
  %2416 = vmatprep.subr.mxu0 0.0
  %2417 = vmatpush1.msra.mxu0 0.0
  %2418 = vmatprep.subr.mxu0 0.0
  %2419 = vmatpush1.msra.mxu0 0.0
  %2420 = vmatprep.subr.mxu0 0.0
  %2421 = vmatpush1.msra.mxu0 0.0
  %2422 = vmatprep.subr.mxu0 0.0
  %2423 = vmatpush1.msra.mxu0 0.0
  %2424 = vmatprep.subr.mxu0 0.0
  %2425 = vmatpush1.msra.mxu0 0.0
  %2426 = vmatprep.subr.mxu0 0.0
  %2427 = vmatpush1.msra.mxu0 0.0
  %2428 = vmatprep.subr.mxu0 0.0
  %2429 = vmatpush1.msra.mxu0 0.0
  %2430 = vmatprep.subr.mxu0 0.0
  %2431 = vmatpush1.msra.mxu0 0.0
  %2432 = vmatprep.subr.mxu0 0.0
  %2433 = vmatpush1.msra.mxu0 0.0
  %2434 = vmatprep.subr.mxu0 0.0
  %2435 = vmatpush1.msra.mxu0 0.0
  %2436 = vmatprep.subr.mxu0 0.0
  %2437 = vmatpush1.msra.mxu0 0.0
  %2438 = vmatprep.subr.mxu0 0.0
  %2439 = vmatpush1.msra.mxu0 0.0
  %2440 = vmatprep.subr.mxu0 0.0
  %2441 = vmatpush1.msra.mxu0 0.0
  %2442 = vmatprep.subr.mxu0 0.0
  %2443 = vmatpush1.msra.mxu0 0.0
  %2444 = vmatprep.subr.mxu0 0.0
  %2445 = vmatpush1.msra.mxu0 0.0
  %2446 = vmatprep.subr.mxu0 0.0
  %2447 = vmatpush1.msra.mxu0 0.0
  %2448 = vmatprep.subr.mxu0 0.0
  %2449 = vmatpush1.msra.mxu0 0.0
  %2450 = vmatprep.subr.mxu0 0.0
  %2451 = vmatpush1.msra.mxu0 0.0
  %2452 = vmatprep.subr.mxu0 0.0
  %2453 = vmatpush1.msra.mxu0 0.0
  %2454 = vmatprep.subr.mxu0 0.0
  %2455 = vmatpush1.msra.mxu0 0.0
  %2456 = vmatprep.mubr.f32.mxu0 0.0
  %2457 = vmatmul.mubr.f32.gmra.mrb[0].mxu0 %v2390
  %v2458 = vpop.f32.mrb[0].mxu0
  %v2459 = vadd.f32 0.0, %v2458
  %v2460 = vpop.f32.mrb[0].mxu0
  %2461 = vdwg.mxu0
  %v2463 = vsel %vm111, %v2382, 0
  %2465 = vmatprep.subr.mxu0 0.0
  %2466 = vmatpush1.msra.mxu0 %v117
  %2467 = vmatprep.subr.mxu0 0.0
  %2468 = vmatpush1.msra.mxu0 0.0
  %2469 = vmatprep.subr.mxu0 0.0
  %2470 = vmatpush1.msra.mxu0 0.0
  %2471 = vmatprep.subr.mxu0 0.0
  %2472 = vmatpush1.msra.mxu0 0.0
  %2473 = vmatprep.subr.mxu0 0.0
  %2474 = vmatpush1.msra.mxu0 0.0
  %2475 = vmatprep.subr.mxu0 0.0
  %2476 = vmatpush1.msra.mxu0 0.0
  %2477 = vmatprep.subr.mxu0 0.0
  %2478 = vmatpush1.msra.mxu0 0.0
  %2479 = vmatprep.subr.mxu0 0.0
  %2480 = vmatpush1.msra.mxu0 0.0
  %2481 = vmatprep.subr.mxu0 0.0
  %2482 = vmatpush1.msra.mxu0 0.0
  %2483 = vmatprep.subr.mxu0 0.0
  %2484 = vmatpush1.msra.mxu0 0.0
  %2485 = vmatprep.subr.mxu0 0.0
  %2486 = vmatpush1.msra.mxu0 0.0
  %2487 = vmatprep.subr.mxu0 0.0
  %2488 = vmatpush1.msra.mxu0 0.0
  %2489 = vmatprep.subr.mxu0 0.0
  %2490 = vmatpush1.msra.mxu0 0.0
  %2491 = vmatprep.subr.mxu0 0.0
  %2492 = vmatpush1.msra.mxu0 0.0
  %2493 = vmatprep.subr.mxu0 0.0
  %2494 = vmatpush1.msra.mxu0 0.0
  %2495 = vmatprep.subr.mxu0 0.0
  %2496 = vmatpush1.msra.mxu0 0.0
  %2497 = vmatprep.subr.mxu0 0.0
  %2498 = vmatpush1.msra.mxu0 0.0
  %2499 = vmatprep.subr.mxu0 0.0
  %2500 = vmatpush1.msra.mxu0 0.0
  %2501 = vmatprep.subr.mxu0 0.0
  %2502 = vmatpush1.msra.mxu0 0.0
  %2503 = vmatprep.subr.mxu0 0.0
  %2504 = vmatpush1.msra.mxu0 0.0
  %2505 = vmatprep.subr.mxu0 0.0
  %2506 = vmatpush1.msra.mxu0 0.0
  %2507 = vmatprep.subr.mxu0 0.0
  %2508 = vmatpush1.msra.mxu0 0.0
  %2509 = vmatprep.subr.mxu0 0.0
  %2510 = vmatpush1.msra.mxu0 0.0
  %2511 = vmatprep.subr.mxu0 0.0
  %2512 = vmatpush1.msra.mxu0 0.0
  %2513 = vmatprep.subr.mxu0 0.0
  %2514 = vmatpush1.msra.mxu0 0.0
  %2515 = vmatprep.subr.mxu0 0.0
  %2516 = vmatpush1.msra.mxu0 0.0
  %2517 = vmatprep.subr.mxu0 0.0
  %2518 = vmatpush1.msra.mxu0 0.0
  %2519 = vmatprep.subr.mxu0 0.0
  %2520 = vmatpush1.msra.mxu0 0.0
  %2521 = vmatprep.subr.mxu0 0.0
  %2522 = vmatpush1.msra.mxu0 0.0
  %2523 = vmatprep.subr.mxu0 0.0
  %2524 = vmatpush1.msra.mxu0 0.0
  %2525 = vmatprep.subr.mxu0 0.0
  %2526 = vmatpush1.msra.mxu0 0.0
  %2527 = vmatprep.subr.mxu0 0.0
  %2528 = vmatpush1.msra.mxu0 0.0
  %2529 = vmatprep.mubr.f32.mxu0 0.0
  %2530 = vmatmul.mubr.f32.gmra.mrb[0].mxu0 %v2463
  %v2531 = vpop.f32.mrb[0].mxu0
  %v2532 = vadd.f32 %v2459, %v2531
  %v2533 = vpop.f32.mrb[0].mxu0
  %2534 = vdwg.mxu0
  %2535 = vmatprep.subr.mxu0 0.0
  %2536 = vmatpush1.msra.mxu0 %v16
  %2537 = vmatprep.subr.mxu0 0.0
  %2538 = vmatpush1.msra.mxu0 %v17
  %2539 = vmatprep.subr.mxu0 0.0
  %2540 = vmatpush1.msra.mxu0 %v18
  %2541 = vmatprep.subr.mxu0 0.0
  %2542 = vmatpush1.msra.mxu0 %v19
  %2543 = vmatprep.subr.mxu0 0.0
  %2544 = vmatpush1.msra.mxu0 0.0
  %2545 = vmatprep.subr.mxu0 0.0
  %2546 = vmatpush1.msra.mxu0 0.0
  %2547 = vmatprep.subr.mxu0 0.0
  %2548 = vmatpush1.msra.mxu0 0.0
  %2549 = vmatprep.subr.mxu0 0.0
  %2550 = vmatpush1.msra.mxu0 0.0
  %2551 = vmatprep.subr.mxu0 0.0
  %2552 = vmatpush1.msra.mxu0 0.0
  %2553 = vmatprep.subr.mxu0 0.0
  %2554 = vmatpush1.msra.mxu0 0.0
  %2555 = vmatprep.subr.mxu0 0.0
  %2556 = vmatpush1.msra.mxu0 0.0
  %2557 = vmatprep.subr.mxu0 0.0
  %2558 = vmatpush1.msra.mxu0 0.0
  %2559 = vmatprep.subr.mxu0 0.0
  %2560 = vmatpush1.msra.mxu0 0.0
  %2561 = vmatprep.subr.mxu0 0.0
  %2562 = vmatpush1.msra.mxu0 0.0
  %2563 = vmatprep.subr.mxu0 0.0
  %2564 = vmatpush1.msra.mxu0 0.0
  %2565 = vmatprep.subr.mxu0 0.0
  %2566 = vmatpush1.msra.mxu0 0.0
  %2567 = vmatprep.subr.mxu0 0.0
  %2568 = vmatpush1.msra.mxu0 0.0
  %2569 = vmatprep.subr.mxu0 0.0
  %2570 = vmatpush1.msra.mxu0 0.0
  %2571 = vmatprep.subr.mxu0 0.0
  %2572 = vmatpush1.msra.mxu0 0.0
  %2573 = vmatprep.subr.mxu0 0.0
  %2574 = vmatpush1.msra.mxu0 0.0
  %2575 = vmatprep.subr.mxu0 0.0
  %2576 = vmatpush1.msra.mxu0 0.0
  %2577 = vmatprep.subr.mxu0 0.0
  %2578 = vmatpush1.msra.mxu0 0.0
  %2579 = vmatprep.subr.mxu0 0.0
  %2580 = vmatpush1.msra.mxu0 0.0
  %2581 = vmatprep.subr.mxu0 0.0
  %2582 = vmatpush1.msra.mxu0 0.0
  %2583 = vmatprep.subr.mxu0 0.0
  %2584 = vmatpush1.msra.mxu0 0.0
  %2585 = vmatprep.subr.mxu0 0.0
  %2586 = vmatpush1.msra.mxu0 0.0
  %2587 = vmatprep.subr.mxu0 0.0
  %2588 = vmatpush1.msra.mxu0 0.0
  %2589 = vmatprep.subr.mxu0 0.0
  %2590 = vmatpush1.msra.mxu0 0.0
  %2591 = vmatprep.subr.mxu0 0.0
  %2592 = vmatpush1.msra.mxu0 0.0
  %2593 = vmatprep.subr.mxu0 0.0
  %2594 = vmatpush1.msra.mxu0 0.0
  %2595 = vmatprep.subr.mxu0 0.0
  %2596 = vmatpush1.msra.mxu0 0.0
  %2597 = vmatprep.subr.mxu0 0.0
  %2598 = vmatpush1.msra.mxu0 0.0
  %2599 = vmatprep.mubr.f32.mxu0 0.0
  %2600 = vmatmul.mubr.f32.gmra.mrb[0].mxu0 %v2213
  %v2601 = vpop.f32.mrb[0].mxu0
  %v2602 = vadd.f32 0.0, %v2601
  %v2603 = vpop.f32.mrb[0].mxu0
  %2604 = vdwg.mxu0
  %v2605 = vadd.f32 %v2532, %v2602
  %v2606 = vadd.f32 %v2605, %v267
  %v2607 = vtanh.pop %v2606
  %2608 = vmatprep.subr.mxu0 0.0
  %2609 = vmatpush1.msra.mxu0 %v24
  %2610 = vmatprep.subr.mxu0 0.0
  %2611 = vmatpush1.msra.mxu0 %v25
  %2612 = vmatprep.subr.mxu0 0.0
  %2613 = vmatpush1.msra.mxu0 %v26
  %2614 = vmatprep.subr.mxu0 0.0
  %2615 = vmatpush1.msra.mxu0 %v27
  %2616 = vmatprep.subr.mxu0 0.0
  %2617 = vmatpush1.msra.mxu0 0.0
  %2618 = vmatprep.subr.mxu0 0.0
  %2619 = vmatpush1.msra.mxu0 0.0
  %2620 = vmatprep.subr.mxu0 0.0
  %2621 = vmatpush1.msra.mxu0 0.0
  %2622 = vmatprep.subr.mxu0 0.0
  %2623 = vmatpush1.msra.mxu0 0.0
  %2624 = vmatprep.subr.mxu0 0.0
  %2625 = vmatpush1.msra.mxu0 0.0
  %2626 = vmatprep.subr.mxu0 0.0
  %2627 = vmatpush1.msra.mxu0 0.0
  %2628 = vmatprep.subr.mxu0 0.0
  %2629 = vmatpush1.msra.mxu0 0.0
  %2630 = vmatprep.subr.mxu0 0.0
  %2631 = vmatpush1.msra.mxu0 0.0
  %2632 = vmatprep.subr.mxu0 0.0
  %2633 = vmatpush1.msra.mxu0 0.0
  %2634 = vmatprep.subr.mxu0 0.0
  %2635 = vmatpush1.msra.mxu0 0.0
  %2636 = vmatprep.subr.mxu0 0.0
  %2637 = vmatpush1.msra.mxu0 0.0
  %2638 = vmatprep.subr.mxu0 0.0
  %2639 = vmatpush1.msra.mxu0 0.0
  %2640 = vmatprep.subr.mxu0 0.0
  %2641 = vmatpush1.msra.mxu0 0.0
  %2642 = vmatprep.subr.mxu0 0.0
  %2643 = vmatpush1.msra.mxu0 0.0
  %2644 = vmatprep.subr.mxu0 0.0
  %2645 = vmatpush1.msra.mxu0 0.0
  %2646 = vmatprep.subr.mxu0 0.0
  %2647 = vmatpush1.msra.mxu0 0.0
  %2648 = vmatprep.subr.mxu0 0.0
  %2649 = vmatpush1.msra.mxu0 0.0
  %2650 = vmatprep.subr.mxu0 0.0
  %2651 = vmatpush1.msra.mxu0 0.0
  %2652 = vmatprep.subr.mxu0 0.0
  %2653 = vmatpush1.msra.mxu0 0.0
  %2654 = vmatprep.subr.mxu0 0.0
  %2655 = vmatpush1.msra.mxu0 0.0
  %2656 = vmatprep.subr.mxu0 0.0
  %2657 = vmatpush1.msra.mxu0 0.0
  %2658 = vmatprep.subr.mxu0 0.0
  %2659 = vmatpush1.msra.mxu0 0.0
  %2660 = vmatprep.subr.mxu0 0.0
  %2661 = vmatpush1.msra.mxu0 0.0
  %2662 = vmatprep.subr.mxu0 0.0
  %2663 = vmatpush1.msra.mxu0 0.0
  %2664 = vmatprep.subr.mxu0 0.0
  %2665 = vmatpush1.msra.mxu0 0.0
  %2666 = vmatprep.subr.mxu0 0.0
  %2667 = vmatpush1.msra.mxu0 0.0
  %2668 = vmatprep.subr.mxu0 0.0
  %2669 = vmatpush1.msra.mxu0 0.0
  %2670 = vmatprep.subr.mxu0 0.0
  %2671 = vmatpush1.msra.mxu0 0.0
  %2672 = vmatprep.mubr.f32.mxu0 0.0
  %2673 = vmatmul.mubr.f32.gmra.mrb[0].mxu0 %v2288
  %v2674 = vpop.f32.mrb[0].mxu0
  %v2675 = vadd.f32 0.0, %v2674
  %v2676 = vpop.f32.mrb[0].mxu0
  %2677 = vdwg.mxu0
  %v2679 = vsel %vm189, %v2607, 0
  %2681 = vmatprep.subr.mxu0 0.0
  %2682 = vmatpush1.msra.mxu0 %v20
  %2683 = vmatprep.subr.mxu0 0.0
  %2684 = vmatpush1.msra.mxu0 %v21
  %2685 = vmatprep.subr.mxu0 0.0
  %2686 = vmatpush1.msra.mxu0 %v22
  %2687 = vmatprep.subr.mxu0 0.0
  %2688 = vmatpush1.msra.mxu0 %v23
  %2689 = vmatprep.subr.mxu0 0.0
  %2690 = vmatpush1.msra.mxu0 0.0
  %2691 = vmatprep.subr.mxu0 0.0
  %2692 = vmatpush1.msra.mxu0 0.0
  %2693 = vmatprep.subr.mxu0 0.0
  %2694 = vmatpush1.msra.mxu0 0.0
  %2695 = vmatprep.subr.mxu0 0.0
  %2696 = vmatpush1.msra.mxu0 0.0
  %2697 = vmatprep.subr.mxu0 0.0
  %2698 = vmatpush1.msra.mxu0 0.0
  %2699 = vmatprep.subr.mxu0 0.0
  %2700 = vmatpush1.msra.mxu0 0.0
  %2701 = vmatprep.subr.mxu0 0.0
  %2702 = vmatpush1.msra.mxu0 0.0
  %2703 = vmatprep.subr.mxu0 0.0
  %2704 = vmatpush1.msra.mxu0 0.0
  %2705 = vmatprep.subr.mxu0 0.0
  %2706 = vmatpush1.msra.mxu0 0.0
  %2707 = vmatprep.subr.mxu0 0.0
  %2708 = vmatpush1.msra.mxu0 0.0
  %2709 = vmatprep.subr.mxu0 0.0
  %2710 = vmatpush1.msra.mxu0 0.0
  %2711 = vmatprep.subr.mxu0 0.0
  %2712 = vmatpush1.msra.mxu0 0.0
  %2713 = vmatprep.subr.mxu0 0.0
  %2714 = vmatpush1.msra.mxu0 0.0
  %2715 = vmatprep.subr.mxu0 0.0
  %2716 = vmatpush1.msra.mxu0 0.0
  %2717 = vmatprep.subr.mxu0 0.0
  %2718 = vmatpush1.msra.mxu0 0.0
  %2719 = vmatprep.subr.mxu0 0.0
  %2720 = vmatpush1.msra.mxu0 0.0
  %2721 = vmatprep.subr.mxu0 0.0
  %2722 = vmatpush1.msra.mxu0 0.0
  %2723 = vmatprep.subr.mxu0 0.0
  %2724 = vmatpush1.msra.mxu0 0.0
  %2725 = vmatprep.subr.mxu0 0.0
  %2726 = vmatpush1.msra.mxu0 0.0
  %2727 = vmatprep.subr.mxu0 0.0
  %2728 = vmatpush1.msra.mxu0 0.0
  %2729 = vmatprep.subr.mxu0 0.0
  %2730 = vmatpush1.msra.mxu0 0.0
  %2731 = vmatprep.subr.mxu0 0.0
  %2732 = vmatpush1.msra.mxu0 0.0
  %2733 = vmatprep.subr.mxu0 0.0
  %2734 = vmatpush1.msra.mxu0 0.0
  %2735 = vmatprep.subr.mxu0 0.0
  %2736 = vmatpush1.msra.mxu0 0.0
  %2737 = vmatprep.subr.mxu0 0.0
  %2738 = vmatpush1.msra.mxu0 0.0
  %2739 = vmatprep.subr.mxu0 0.0
  %2740 = vmatpush1.msra.mxu0 0.0
  %2741 = vmatprep.subr.mxu0 0.0
  %2742 = vmatpush1.msra.mxu0 0.0
  %2743 = vmatprep.subr.mxu0 0.0
  %2744 = vmatpush1.msra.mxu0 0.0
  %2745 = vmatprep.mubr.f32.mxu0 0.0
  %2746 = vmatmul.mubr.f32.gmra.mrb[0].mxu0 %v2679
  %v2747 = vpop.f32.mrb[0].mxu0
  %v2748 = vadd.f32 %v2675, %v2747
  %v2749 = vpop.f32.mrb[0].mxu0
  %2750 = vdwg.mxu0
  %v2751 = vadd.f32 %v2748, %v416
  %v2752 = vtanh.pop %v2751
  %v2754 = vsel %vm189, %v2752, 0
  %2756 = vmatprep.subr.mxu0 0.0
  %2757 = vmatpush1.msra.mxu0 %v28
  %2758 = vmatprep.subr.mxu0 0.0
  %2759 = vmatpush1.msra.mxu0 %v29
  %2760 = vmatprep.subr.mxu0 0.0
  %2761 = vmatpush1.msra.mxu0 %v30
  %2762 = vmatprep.subr.mxu0 0.0
  %2763 = vmatpush1.msra.mxu0 %v31
  %2764 = vmatprep.subr.mxu0 0.0
  %2765 = vmatpush1.msra.mxu0 0.0
  %2766 = vmatprep.subr.mxu0 0.0
  %2767 = vmatpush1.msra.mxu0 0.0
  %2768 = vmatprep.subr.mxu0 0.0
  %2769 = vmatpush1.msra.mxu0 0.0
  %2770 = vmatprep.subr.mxu0 0.0
  %2771 = vmatpush1.msra.mxu0 0.0
  %2772 = vmatprep.subr.mxu0 0.0
  %2773 = vmatpush1.msra.mxu0 0.0
  %2774 = vmatprep.subr.mxu0 0.0
  %2775 = vmatpush1.msra.mxu0 0.0
  %2776 = vmatprep.subr.mxu0 0.0
  %2777 = vmatpush1.msra.mxu0 0.0
  %2778 = vmatprep.subr.mxu0 0.0
  %2779 = vmatpush1.msra.mxu0 0.0
  %2780 = vmatprep.subr.mxu0 0.0
  %2781 = vmatpush1.msra.mxu0 0.0
  %2782 = vmatprep.subr.mxu0 0.0
  %2783 = vmatpush1.msra.mxu0 0.0
  %2784 = vmatprep.subr.mxu0 0.0
  %2785 = vmatpush1.msra.mxu0 0.0
  %2786 = vmatprep.subr.mxu0 0.0
  %2787 = vmatpush1.msra.mxu0 0.0
  %2788 = vmatprep.subr.mxu0 0.0
  %2789 = vmatpush1.msra.mxu0 0.0
  %2790 = vmatprep.subr.mxu0 0.0
  %2791 = vmatpush1.msra.mxu0 0.0
  %2792 = vmatprep.subr.mxu0 0.0
  %2793 = vmatpush1.msra.mxu0 0.0
  %2794 = vmatprep.subr.mxu0 0.0
  %2795 = vmatpush1.msra.mxu0 0.0
  %2796 = vmatprep.subr.mxu0 0.0
  %2797 = vmatpush1.msra.mxu0 0.0
  %2798 = vmatprep.subr.mxu0 0.0
  %2799 = vmatpush1.msra.mxu0 0.0
  %2800 = vmatprep.subr.mxu0 0.0
  %2801 = vmatpush1.msra.mxu0 0.0
  %2802 = vmatprep.subr.mxu0 0.0
  %2803 = vmatpush1.msra.mxu0 0.0
  %2804 = vmatprep.subr.mxu0 0.0
  %2805 = vmatpush1.msra.mxu0 0.0
  %2806 = vmatprep.subr.mxu0 0.0
  %2807 = vmatpush1.msra.mxu0 0.0
  %2808 = vmatprep.subr.mxu0 0.0
  %2809 = vmatpush1.msra.mxu0 0.0
  %2810 = vmatprep.subr.mxu0 0.0
  %2811 = vmatpush1.msra.mxu0 0.0
  %2812 = vmatprep.subr.mxu0 0.0
  %2813 = vmatpush1.msra.mxu0 0.0
  %2814 = vmatprep.subr.mxu0 0.0
  %2815 = vmatpush1.msra.mxu0 0.0
  %2816 = vmatprep.subr.mxu0 0.0
  %2817 = vmatpush1.msra.mxu0 0.0
  %2818 = vmatprep.subr.mxu0 0.0
  %2819 = vmatpush1.msra.mxu0 0.0
  %2820 = vmatprep.mubr.f32.mxu0 0.0
  %2821 = vmatmul.mubr.f32.gmra.mrb[0].mxu0 %v2754
  %v2822 = vpop.f32.mrb[0].mxu0
  %v2823 = vadd.f32 %v422, %v2822
  %v2824 = vpop.f32.mrb[0].mxu0
  %2825 = vdwg.mxu0
  %2826 = vrot.lane.b32.xlu0 %v2388, 3
  %v2827 = vpop.permute.xlu0 %2826
  %v2829 = vadd.f32 %v2823, %v2827
  %v2830 = vsel %vm500, %v2823, -inf
  %2831 = vmax.xlane.f32.xlu0 %v2830
  %v2832 = vpop.xlane.xlu0 %2831
  %v2833 = vsub.f32 %v2823, %v2832
  %v2834 = vmul.f32 %v2833, 1.442695
  %v2835 = vpow.pop %v2834
  %v2836 = vsel %vm500, %v2835, 0.0
  %2837 = vadd.xlane.f32.xlu0 %v2836
  %v2838 = vpop.xlane.xlu0 %2837
  %v2839 = vrcp.pop %v2838
  %v2840 = vmul.f32 %v2835, %v2839
  %s2841 = scalar_lea.vmem %s3, 10
  %2842 = vst.msk [vmem:[%s2841] sm:$0x3] %vm500, %v2840
  %s2843 = scalar_lea.vmem %s0, 12
  %v2844 = vld [vmem:[%s2843] sm:$0x3]
  %s2845 = scalar_lea.vmem %s1, 12
  %v2846 = vld [vmem:[%s2845] sm:$0x3]
  %vm2847 = vcmp.ne.f32.partialorder %v2844, %v2844
  %v2848 = vsel %vm2847, %v2840, %v2844
  %vm2849 = vcmp.ne.f32.partialorder %v2846, %v2846
  %2851 = vrot.lane.b32.xlu0 %v2829, 125
  %v2852 = vpop.permute.xlu0 %2851
  %v2854 = vsel %vm2849, %v2852, %v2846
  %v2856 = vsel %vm37, %v2854, 0
  %2858 = vmatprep.subr.mxu0 0.0
  %2859 = vmatpush1.msra.mxu0 %v15
  %2860 = vmatprep.subr.mxu0 0.0
  %2861 = vmatpush1.msra.mxu0 0.0
  %2862 = vmatprep.subr.mxu0 0.0
  %2863 = vmatpush1.msra.mxu0 0.0
  %2864 = vmatprep.subr.mxu0 0.0
  %2865 = vmatpush1.msra.mxu0 0.0
  %2866 = vmatprep.subr.mxu0 0.0
  %2867 = vmatpush1.msra.mxu0 0.0
  %2868 = vmatprep.subr.mxu0 0.0
  %2869 = vmatpush1.msra.mxu0 0.0
  %2870 = vmatprep.subr.mxu0 0.0
  %2871 = vmatpush1.msra.mxu0 0.0
  %2872 = vmatprep.subr.mxu0 0.0
  %2873 = vmatpush1.msra.mxu0 0.0
  %2874 = vmatprep.subr.mxu0 0.0
  %2875 = vmatpush1.msra.mxu0 0.0
  %2876 = vmatprep.subr.mxu0 0.0
  %2877 = vmatpush1.msra.mxu0 0.0
  %2878 = vmatprep.subr.mxu0 0.0
  %2879 = vmatpush1.msra.mxu0 0.0
  %2880 = vmatprep.subr.mxu0 0.0
  %2881 = vmatpush1.msra.mxu0 0.0
  %2882 = vmatprep.subr.mxu0 0.0
  %2883 = vmatpush1.msra.mxu0 0.0
  %2884 = vmatprep.subr.mxu0 0.0
  %2885 = vmatpush1.msra.mxu0 0.0
  %2886 = vmatprep.subr.mxu0 0.0
  %2887 = vmatpush1.msra.mxu0 0.0
  %2888 = vmatprep.subr.mxu0 0.0
  %2889 = vmatpush1.msra.mxu0 0.0
  %2890 = vmatprep.subr.mxu0 0.0
  %2891 = vmatpush1.msra.mxu0 0.0
  %2892 = vmatprep.subr.mxu0 0.0
  %2893 = vmatpush1.msra.mxu0 0.0
  %2894 = vmatprep.subr.mxu0 0.0
  %2895 = vmatpush1.msra.mxu0 0.0
  %2896 = vmatprep.subr.mxu0 0.0
  %2897 = vmatpush1.msra.mxu0 0.0
  %2898 = vmatprep.subr.mxu0 0.0
  %2899 = vmatpush1.msra.mxu0 0.0
  %2900 = vmatprep.subr.mxu0 0.0
  %2901 = vmatpush1.msra.mxu0 0.0
  %2902 = vmatprep.subr.mxu0 0.0
  %2903 = vmatpush1.msra.mxu0 0.0
  %2904 = vmatprep.subr.mxu0 0.0
  %2905 = vmatpush1.msra.mxu0 0.0
  %2906 = vmatprep.subr.mxu0 0.0
  %2907 = vmatpush1.msra.mxu0 0.0
  %2908 = vmatprep.subr.mxu0 0.0
  %2909 = vmatpush1.msra.mxu0 0.0
  %2910 = vmatprep.subr.mxu0 0.0
  %2911 = vmatpush1.msra.mxu0 0.0
  %2912 = vmatprep.subr.mxu0 0.0
  %2913 = vmatpush1.msra.mxu0 0.0
  %2914 = vmatprep.subr.mxu0 0.0
  %2915 = vmatpush1.msra.mxu0 0.0
  %2916 = vmatprep.subr.mxu0 0.0
  %2917 = vmatpush1.msra.mxu0 0.0
  %2918 = vmatprep.subr.mxu0 0.0
  %2919 = vmatpush1.msra.mxu0 0.0
  %2920 = vmatprep.subr.mxu0 0.0
  %2921 = vmatpush1.msra.mxu0 0.0
  %2922 = vmatprep.mubr.f32.mxu0 0.0
  %2923 = vmatmul.mubr.f32.gmra.mrb[0].mxu0 %v2856
  %v2924 = vpop.f32.mrb[0].mxu0
  %v2925 = vadd.f32 0.0, %v2924
  %v2926 = vpop.f32.mrb[0].mxu0
  %2927 = vdwg.mxu0
  %v2929 = vsel %vm111, %v2848, 0
  %2931 = vmatprep.subr.mxu0 0.0
  %2932 = vmatpush1.msra.mxu0 %v117
  %2933 = vmatprep.subr.mxu0 0.0
  %2934 = vmatpush1.msra.mxu0 0.0
  %2935 = vmatprep.subr.mxu0 0.0
  %2936 = vmatpush1.msra.mxu0 0.0
  %2937 = vmatprep.subr.mxu0 0.0
  %2938 = vmatpush1.msra.mxu0 0.0
  %2939 = vmatprep.subr.mxu0 0.0
  %2940 = vmatpush1.msra.mxu0 0.0
  %2941 = vmatprep.subr.mxu0 0.0
  %2942 = vmatpush1.msra.mxu0 0.0
  %2943 = vmatprep.subr.mxu0 0.0
  %2944 = vmatpush1.msra.mxu0 0.0
  %2945 = vmatprep.subr.mxu0 0.0
  %2946 = vmatpush1.msra.mxu0 0.0
  %2947 = vmatprep.subr.mxu0 0.0
  %2948 = vmatpush1.msra.mxu0 0.0
  %2949 = vmatprep.subr.mxu0 0.0
  %2950 = vmatpush1.msra.mxu0 0.0
  %2951 = vmatprep.subr.mxu0 0.0
  %2952 = vmatpush1.msra.mxu0 0.0
  %2953 = vmatprep.subr.mxu0 0.0
  %2954 = vmatpush1.msra.mxu0 0.0
  %2955 = vmatprep.subr.mxu0 0.0
  %2956 = vmatpush1.msra.mxu0 0.0
  %2957 = vmatprep.subr.mxu0 0.0
  %2958 = vmatpush1.msra.mxu0 0.0
  %2959 = vmatprep.subr.mxu0 0.0
  %2960 = vmatpush1.msra.mxu0 0.0
  %2961 = vmatprep.subr.mxu0 0.0
  %2962 = vmatpush1.msra.mxu0 0.0
  %2963 = vmatprep.subr.mxu0 0.0
  %2964 = vmatpush1.msra.mxu0 0.0
  %2965 = vmatprep.subr.mxu0 0.0
  %2966 = vmatpush1.msra.mxu0 0.0
  %2967 = vmatprep.subr.mxu0 0.0
  %2968 = vmatpush1.msra.mxu0 0.0
  %2969 = vmatprep.subr.mxu0 0.0
  %2970 = vmatpush1.msra.mxu0 0.0
  %2971 = vmatprep.subr.mxu0 0.0
  %2972 = vmatpush1.msra.mxu0 0.0
  %2973 = vmatprep.subr.mxu0 0.0
  %2974 = vmatpush1.msra.mxu0 0.0
  %2975 = vmatprep.subr.mxu0 0.0
  %2976 = vmatpush1.msra.mxu0 0.0
  %2977 = vmatprep.subr.mxu0 0.0
  %2978 = vmatpush1.msra.mxu0 0.0
  %2979 = vmatprep.subr.mxu0 0.0
  %2980 = vmatpush1.msra.mxu0 0.0
  %2981 = vmatprep.subr.mxu0 0.0
  %2982 = vmatpush1.msra.mxu0 0.0
  %2983 = vmatprep.subr.mxu0 0.0
  %2984 = vmatpush1.msra.mxu0 0.0
  %2985 = vmatprep.subr.mxu0 0.0
  %2986 = vmatpush1.msra.mxu0 0.0
  %2987 = vmatprep.subr.mxu0 0.0
  %2988 = vmatpush1.msra.mxu0 0.0
  %2989 = vmatprep.subr.mxu0 0.0
  %2990 = vmatpush1.msra.mxu0 0.0
  %2991 = vmatprep.subr.mxu0 0.0
  %2992 = vmatpush1.msra.mxu0 0.0
  %2993 = vmatprep.subr.mxu0 0.0
  %2994 = vmatpush1.msra.mxu0 0.0
  %2995 = vmatprep.mubr.f32.mxu0 0.0
  %2996 = vmatmul.mubr.f32.gmra.mrb[0].mxu0 %v2929
  %v2997 = vpop.f32.mrb[0].mxu0
  %v2998 = vadd.f32 %v2925, %v2997
  %v2999 = vpop.f32.mrb[0].mxu0
  %3000 = vdwg.mxu0
  %3001 = vmatprep.subr.mxu0 0.0
  %3002 = vmatpush1.msra.mxu0 %v16
  %3003 = vmatprep.subr.mxu0 0.0
  %3004 = vmatpush1.msra.mxu0 %v17
  %3005 = vmatprep.subr.mxu0 0.0
  %3006 = vmatpush1.msra.mxu0 %v18
  %3007 = vmatprep.subr.mxu0 0.0
  %3008 = vmatpush1.msra.mxu0 %v19
  %3009 = vmatprep.subr.mxu0 0.0
  %3010 = vmatpush1.msra.mxu0 0.0
  %3011 = vmatprep.subr.mxu0 0.0
  %3012 = vmatpush1.msra.mxu0 0.0
  %3013 = vmatprep.subr.mxu0 0.0
  %3014 = vmatpush1.msra.mxu0 0.0
  %3015 = vmatprep.subr.mxu0 0.0
  %3016 = vmatpush1.msra.mxu0 0.0
  %3017 = vmatprep.subr.mxu0 0.0
  %3018 = vmatpush1.msra.mxu0 0.0
  %3019 = vmatprep.subr.mxu0 0.0
  %3020 = vmatpush1.msra.mxu0 0.0
  %3021 = vmatprep.subr.mxu0 0.0
  %3022 = vmatpush1.msra.mxu0 0.0
  %3023 = vmatprep.subr.mxu0 0.0
  %3024 = vmatpush1.msra.mxu0 0.0
  %3025 = vmatprep.subr.mxu0 0.0
  %3026 = vmatpush1.msra.mxu0 0.0
  %3027 = vmatprep.subr.mxu0 0.0
  %3028 = vmatpush1.msra.mxu0 0.0
  %3029 = vmatprep.subr.mxu0 0.0
  %3030 = vmatpush1.msra.mxu0 0.0
  %3031 = vmatprep.subr.mxu0 0.0
  %3032 = vmatpush1.msra.mxu0 0.0
  %3033 = vmatprep.subr.mxu0 0.0
  %3034 = vmatpush1.msra.mxu0 0.0
  %3035 = vmatprep.subr.mxu0 0.0
  %3036 = vmatpush1.msra.mxu0 0.0
  %3037 = vmatprep.subr.mxu0 0.0
  %3038 = vmatpush1.msra.mxu0 0.0
  %3039 = vmatprep.subr.mxu0 0.0
  %3040 = vmatpush1.msra.mxu0 0.0
  %3041 = vmatprep.subr.mxu0 0.0
  %3042 = vmatpush1.msra.mxu0 0.0
  %3043 = vmatprep.subr.mxu0 0.0
  %3044 = vmatpush1.msra.mxu0 0.0
  %3045 = vmatprep.subr.mxu0 0.0
  %3046 = vmatpush1.msra.mxu0 0.0
  %3047 = vmatprep.subr.mxu0 0.0
  %3048 = vmatpush1.msra.mxu0 0.0
  %3049 = vmatprep.subr.mxu0 0.0
  %3050 = vmatpush1.msra.mxu0 0.0
  %3051 = vmatprep.subr.mxu0 0.0
  %3052 = vmatpush1.msra.mxu0 0.0
  %3053 = vmatprep.subr.mxu0 0.0
  %3054 = vmatpush1.msra.mxu0 0.0
  %3055 = vmatprep.subr.mxu0 0.0
  %3056 = vmatpush1.msra.mxu0 0.0
  %3057 = vmatprep.subr.mxu0 0.0
  %3058 = vmatpush1.msra.mxu0 0.0
  %3059 = vmatprep.subr.mxu0 0.0
  %3060 = vmatpush1.msra.mxu0 0.0
  %3061 = vmatprep.subr.mxu0 0.0
  %3062 = vmatpush1.msra.mxu0 0.0
  %3063 = vmatprep.subr.mxu0 0.0
  %3064 = vmatpush1.msra.mxu0 0.0
  %3065 = vmatprep.mubr.f32.mxu0 0.0
  %3066 = vmatmul.mubr.f32.gmra.mrb[0].mxu0 %v2679
  %v3067 = vpop.f32.mrb[0].mxu0
  %v3068 = vadd.f32 0.0, %v3067
  %v3069 = vpop.f32.mrb[0].mxu0
  %3070 = vdwg.mxu0
  %v3071 = vadd.f32 %v2998, %v3068
  %v3072 = vadd.f32 %v3071, %v267
  %v3073 = vtanh.pop %v3072
  %3074 = vmatprep.subr.mxu0 0.0
  %3075 = vmatpush1.msra.mxu0 %v24
  %3076 = vmatprep.subr.mxu0 0.0
  %3077 = vmatpush1.msra.mxu0 %v25
  %3078 = vmatprep.subr.mxu0 0.0
  %3079 = vmatpush1.msra.mxu0 %v26
  %3080 = vmatprep.subr.mxu0 0.0
  %3081 = vmatpush1.msra.mxu0 %v27
  %3082 = vmatprep.subr.mxu0 0.0
  %3083 = vmatpush1.msra.mxu0 0.0
  %3084 = vmatprep.subr.mxu0 0.0
  %3085 = vmatpush1.msra.mxu0 0.0
  %3086 = vmatprep.subr.mxu0 0.0
  %3087 = vmatpush1.msra.mxu0 0.0
  %3088 = vmatprep.subr.mxu0 0.0
  %3089 = vmatpush1.msra.mxu0 0.0
  %3090 = vmatprep.subr.mxu0 0.0
  %3091 = vmatpush1.msra.mxu0 0.0
  %3092 = vmatprep.subr.mxu0 0.0
  %3093 = vmatpush1.msra.mxu0 0.0
  %3094 = vmatprep.subr.mxu0 0.0
  %3095 = vmatpush1.msra.mxu0 0.0
  %3096 = vmatprep.subr.mxu0 0.0
  %3097 = vmatpush1.msra.mxu0 0.0
  %3098 = vmatprep.subr.mxu0 0.0
  %3099 = vmatpush1.msra.mxu0 0.0
  %3100 = vmatprep.subr.mxu0 0.0
  %3101 = vmatpush1.msra.mxu0 0.0
  %3102 = vmatprep.subr.mxu0 0.0
  %3103 = vmatpush1.msra.mxu0 0.0
  %3104 = vmatprep.subr.mxu0 0.0
  %3105 = vmatpush1.msra.mxu0 0.0
  %3106 = vmatprep.subr.mxu0 0.0
  %3107 = vmatpush1.msra.mxu0 0.0
  %3108 = vmatprep.subr.mxu0 0.0
  %3109 = vmatpush1.msra.mxu0 0.0
  %3110 = vmatprep.subr.mxu0 0.0
  %3111 = vmatpush1.msra.mxu0 0.0
  %3112 = vmatprep.subr.mxu0 0.0
  %3113 = vmatpush1.msra.mxu0 0.0
  %3114 = vmatprep.subr.mxu0 0.0
  %3115 = vmatpush1.msra.mxu0 0.0
  %3116 = vmatprep.subr.mxu0 0.0
  %3117 = vmatpush1.msra.mxu0 0.0
  %3118 = vmatprep.subr.mxu0 0.0
  %3119 = vmatpush1.msra.mxu0 0.0
  %3120 = vmatprep.subr.mxu0 0.0
  %3121 = vmatpush1.msra.mxu0 0.0
  %3122 = vmatprep.subr.mxu0 0.0
  %3123 = vmatpush1.msra.mxu0 0.0
  %3124 = vmatprep.subr.mxu0 0.0
  %3125 = vmatpush1.msra.mxu0 0.0
  %3126 = vmatprep.subr.mxu0 0.0
  %3127 = vmatpush1.msra.mxu0 0.0
  %3128 = vmatprep.subr.mxu0 0.0
  %3129 = vmatpush1.msra.mxu0 0.0
  %3130 = vmatprep.subr.mxu0 0.0
  %3131 = vmatpush1.msra.mxu0 0.0
  %3132 = vmatprep.subr.mxu0 0.0
  %3133 = vmatpush1.msra.mxu0 0.0
  %3134 = vmatprep.subr.mxu0 0.0
  %3135 = vmatpush1.msra.mxu0 0.0
  %3136 = vmatprep.subr.mxu0 0.0
  %3137 = vmatpush1.msra.mxu0 0.0
  %3138 = vmatprep.mubr.f32.mxu0 0.0
  %3139 = vmatmul.mubr.f32.gmra.mrb[0].mxu0 %v2754
  %v3140 = vpop.f32.mrb[0].mxu0
  %v3141 = vadd.f32 0.0, %v3140
  %v3142 = vpop.f32.mrb[0].mxu0
  %3143 = vdwg.mxu0
  %v3145 = vsel %vm189, %v3073, 0
  %3147 = vmatprep.subr.mxu0 0.0
  %3148 = vmatpush1.msra.mxu0 %v20
  %3149 = vmatprep.subr.mxu0 0.0
  %3150 = vmatpush1.msra.mxu0 %v21
  %3151 = vmatprep.subr.mxu0 0.0
  %3152 = vmatpush1.msra.mxu0 %v22
  %3153 = vmatprep.subr.mxu0 0.0
  %3154 = vmatpush1.msra.mxu0 %v23
  %3155 = vmatprep.subr.mxu0 0.0
  %3156 = vmatpush1.msra.mxu0 0.0
  %3157 = vmatprep.subr.mxu0 0.0
  %3158 = vmatpush1.msra.mxu0 0.0
  %3159 = vmatprep.subr.mxu0 0.0
  %3160 = vmatpush1.msra.mxu0 0.0
  %3161 = vmatprep.subr.mxu0 0.0
  %3162 = vmatpush1.msra.mxu0 0.0
  %3163 = vmatprep.subr.mxu0 0.0
  %3164 = vmatpush1.msra.mxu0 0.0
  %3165 = vmatprep.subr.mxu0 0.0
  %3166 = vmatpush1.msra.mxu0 0.0
  %3167 = vmatprep.subr.mxu0 0.0
  %3168 = vmatpush1.msra.mxu0 0.0
  %3169 = vmatprep.subr.mxu0 0.0
  %3170 = vmatpush1.msra.mxu0 0.0
  %3171 = vmatprep.subr.mxu0 0.0
  %3172 = vmatpush1.msra.mxu0 0.0
  %3173 = vmatprep.subr.mxu0 0.0
  %3174 = vmatpush1.msra.mxu0 0.0
  %3175 = vmatprep.subr.mxu0 0.0
  %3176 = vmatpush1.msra.mxu0 0.0
  %3177 = vmatprep.subr.mxu0 0.0
  %3178 = vmatpush1.msra.mxu0 0.0
  %3179 = vmatprep.subr.mxu0 0.0
  %3180 = vmatpush1.msra.mxu0 0.0
  %3181 = vmatprep.subr.mxu0 0.0
  %3182 = vmatpush1.msra.mxu0 0.0
  %3183 = vmatprep.subr.mxu0 0.0
  %3184 = vmatpush1.msra.mxu0 0.0
  %3185 = vmatprep.subr.mxu0 0.0
  %3186 = vmatpush1.msra.mxu0 0.0
  %3187 = vmatprep.subr.mxu0 0.0
  %3188 = vmatpush1.msra.mxu0 0.0
  %3189 = vmatprep.subr.mxu0 0.0
  %3190 = vmatpush1.msra.mxu0 0.0
  %3191 = vmatprep.subr.mxu0 0.0
  %3192 = vmatpush1.msra.mxu0 0.0
  %3193 = vmatprep.subr.mxu0 0.0
  %3194 = vmatpush1.msra.mxu0 0.0
  %3195 = vmatprep.subr.mxu0 0.0
  %3196 = vmatpush1.msra.mxu0 0.0
  %3197 = vmatprep.subr.mxu0 0.0
  %3198 = vmatpush1.msra.mxu0 0.0
  %3199 = vmatprep.subr.mxu0 0.0
  %3200 = vmatpush1.msra.mxu0 0.0
  %3201 = vmatprep.subr.mxu0 0.0
  %3202 = vmatpush1.msra.mxu0 0.0
  %3203 = vmatprep.subr.mxu0 0.0
  %3204 = vmatpush1.msra.mxu0 0.0
  %3205 = vmatprep.subr.mxu0 0.0
  %3206 = vmatpush1.msra.mxu0 0.0
  %3207 = vmatprep.subr.mxu0 0.0
  %3208 = vmatpush1.msra.mxu0 0.0
  %3209 = vmatprep.subr.mxu0 0.0
  %3210 = vmatpush1.msra.mxu0 0.0
  %3211 = vmatprep.mubr.f32.mxu0 0.0
  %3212 = vmatmul.mubr.f32.gmra.mrb[0].mxu0 %v3145
  %v3213 = vpop.f32.mrb[0].mxu0
  %v3214 = vadd.f32 %v3141, %v3213
  %v3215 = vpop.f32.mrb[0].mxu0
  %3216 = vdwg.mxu0
  %v3217 = vadd.f32 %v3214, %v416
  %v3218 = vtanh.pop %v3217
  %v3220 = vsel %vm189, %v3218, 0
  %3222 = vmatprep.subr.mxu0 0.0
  %3223 = vmatpush1.msra.mxu0 %v28
  %3224 = vmatprep.subr.mxu0 0.0
  %3225 = vmatpush1.msra.mxu0 %v29
  %3226 = vmatprep.subr.mxu0 0.0
  %3227 = vmatpush1.msra.mxu0 %v30
  %3228 = vmatprep.subr.mxu0 0.0
  %3229 = vmatpush1.msra.mxu0 %v31
  %3230 = vmatprep.subr.mxu0 0.0
  %3231 = vmatpush1.msra.mxu0 0.0
  %3232 = vmatprep.subr.mxu0 0.0
  %3233 = vmatpush1.msra.mxu0 0.0
  %3234 = vmatprep.subr.mxu0 0.0
  %3235 = vmatpush1.msra.mxu0 0.0
  %3236 = vmatprep.subr.mxu0 0.0
  %3237 = vmatpush1.msra.mxu0 0.0
  %3238 = vmatprep.subr.mxu0 0.0
  %3239 = vmatpush1.msra.mxu0 0.0
  %3240 = vmatprep.subr.mxu0 0.0
  %3241 = vmatpush1.msra.mxu0 0.0
  %3242 = vmatprep.subr.mxu0 0.0
  %3243 = vmatpush1.msra.mxu0 0.0
  %3244 = vmatprep.subr.mxu0 0.0
  %3245 = vmatpush1.msra.mxu0 0.0
  %3246 = vmatprep.subr.mxu0 0.0
  %3247 = vmatpush1.msra.mxu0 0.0
  %3248 = vmatprep.subr.mxu0 0.0
  %3249 = vmatpush1.msra.mxu0 0.0
  %3250 = vmatprep.subr.mxu0 0.0
  %3251 = vmatpush1.msra.mxu0 0.0
  %3252 = vmatprep.subr.mxu0 0.0
  %3253 = vmatpush1.msra.mxu0 0.0
  %3254 = vmatprep.subr.mxu0 0.0
  %3255 = vmatpush1.msra.mxu0 0.0
  %3256 = vmatprep.subr.mxu0 0.0
  %3257 = vmatpush1.msra.mxu0 0.0
  %3258 = vmatprep.subr.mxu0 0.0
  %3259 = vmatpush1.msra.mxu0 0.0
  %3260 = vmatprep.subr.mxu0 0.0
  %3261 = vmatpush1.msra.mxu0 0.0
  %3262 = vmatprep.subr.mxu0 0.0
  %3263 = vmatpush1.msra.mxu0 0.0
  %3264 = vmatprep.subr.mxu0 0.0
  %3265 = vmatpush1.msra.mxu0 0.0
  %3266 = vmatprep.subr.mxu0 0.0
  %3267 = vmatpush1.msra.mxu0 0.0
  %3268 = vmatprep.subr.mxu0 0.0
  %3269 = vmatpush1.msra.mxu0 0.0
  %3270 = vmatprep.subr.mxu0 0.0
  %3271 = vmatpush1.msra.mxu0 0.0
  %3272 = vmatprep.subr.mxu0 0.0
  %3273 = vmatpush1.msra.mxu0 0.0
  %3274 = vmatprep.subr.mxu0 0.0
  %3275 = vmatpush1.msra.mxu0 0.0
  %3276 = vmatprep.subr.mxu0 0.0
  %3277 = vmatpush1.msra.mxu0 0.0
  %3278 = vmatprep.subr.mxu0 0.0
  %3279 = vmatpush1.msra.mxu0 0.0
  %3280 = vmatprep.subr.mxu0 0.0
  %3281 = vmatpush1.msra.mxu0 0.0
  %3282 = vmatprep.subr.mxu0 0.0
  %3283 = vmatpush1.msra.mxu0 0.0
  %3284 = vmatprep.subr.mxu0 0.0
  %3285 = vmatpush1.msra.mxu0 0.0
  %3286 = vmatprep.mubr.f32.mxu0 0.0
  %3287 = vmatmul.mubr.f32.gmra.mrb[0].mxu0 %v3220
  %v3288 = vpop.f32.mrb[0].mxu0
  %v3289 = vadd.f32 %v422, %v3288
  %v3290 = vpop.f32.mrb[0].mxu0
  %3291 = vdwg.mxu0
  %v3292 = vsel %vm500, %v3289, -inf
  %3293 = vmax.xlane.f32.xlu0 %v3292
  %v3294 = vpop.xlane.xlu0 %3293
  %v3295 = vsub.f32 %v3289, %v3294
  %v3296 = vmul.f32 %v3295, 1.442695
  %v3297 = vpow.pop %v3296
  %v3298 = vsel %vm500, %v3297, 0.0
  %3299 = vadd.xlane.f32.xlu0 %v3298
  %v3300 = vpop.xlane.xlu0 %3299
  %v3301 = vrcp.pop %v3300
  %v3302 = vmul.f32 %v3297, %v3301
  %s3303 = scalar_lea.vmem %s3, 12
  %3304 = vst.msk [vmem:[%s3303] sm:$0x3] %vm500, %v3302
  // Predicated region
  $region14: #{tpu_custom_call.1} parent=0 // pred_check
    _
  $region15: #{tpu_custom_call.1} parent=0 // pred_check_branch
    %3306 = sbr.rel (0) target = $region17
  $region16: #{tpu_custom_call.1} parent=0 // pred_region
    _
  $region17: #{tpu_custom_call.1} parent=0 // pred_fallthru
    _
  // Predicated region
  $region18: #{tpu_custom_call.1} parent=0 // pred_check
    _
  $region19: #{tpu_custom_call.1} parent=0 // pred_check_branch
    %3308 = sbr.rel (0) target = $region21
  $region20: #{tpu_custom_call.1} parent=0 // pred_region
    _
  $region21: #{tpu_custom_call.1} parent=0 // pred_fallthru
    _

</llo_original>
